<compile_context>
chip_gen: v7x
topology: tpu7x:2x2x1
jax: 0.10.0
libtpu: 0.0.40
codegen_flags: <defaults>
</compile_context>

<pallas_src>
import math

import jax
import jax.numpy as jnp
from jax import lax
from jax.experimental import pallas as pl
from jax.experimental.pallas import tpu as pltpu

_EPS = 1e-5


def _round_up(x, m):
    return ((x + m - 1) // m) * m


def _pick_tm(M, tm_max=1024):
    # Largest row tile in {tm_max, tm_max/2, tm_max/4} that still yields >= 2
    # grid steps (keeps both v7x TensorCores busy); fall back to 256.
    for t in (tm_max, tm_max // 2, tm_max // 4):
        if t >= 256 and _round_up(M, t) // t >= 2:
            return t
    return 256


def _mosaic_params():
    return pltpu.CompilerParams(
        dimension_semantics=("parallel",),
        vmem_limit_bytes=64 * 1024 * 1024)


# ----------------------------------------------------------------------------
# Pass 1: stats-only.  Dual 1x1 conv (bf16 MXU, f32 acc) + bias, emit ONLY the
# per-tile per-channel sum / sum^2 partials for the two BatchNorms.
# ----------------------------------------------------------------------------
def _make_stats_kernel(tm, m_valid):
    def kernel(g_ref, x_ref, wg_ref, wx_ref, bg_ref, bx_ref,
               sg_ref, ssg_ref, sx_ref, ssx_ref):
        yg = jnp.dot(g_ref[...], wg_ref[...],
                     preferred_element_type=jnp.float32) + bg_ref[...]
        yx = jnp.dot(x_ref[...], wx_ref[...],
                     preferred_element_type=jnp.float32) + bx_ref[...]
        # Mask padded rows (beyond the true M) out of the BN statistics.
        rows = (lax.broadcasted_iota(jnp.int32, (tm, 1), 0)
                + pl.program_id(0) * tm)
        valid = (rows < m_valid).astype(jnp.float32)
        ygv = yg * valid
        yxv = yx * valid
        sg_ref[...] = jnp.sum(ygv, axis=0, keepdims=True)[None]
        ssg_ref[...] = jnp.sum(ygv * yg, axis=0, keepdims=True)[None]
        sx_ref[...] = jnp.sum(yxv, axis=0, keepdims=True)[None]
        ssx_ref[...] = jnp.sum(yxv * yx, axis=0, keepdims=True)[None]

    return kernel


# ----------------------------------------------------------------------------
# Pass 2: recompute the 1x1 convs, BN-normalize (bias folded into shift),
# relu(g1+x1), psi 1x1 conv (F_int -> 1) + bias, plus psi-BN stat partials.
# ----------------------------------------------------------------------------
def _make_psi_kernel(tm, m_valid):
    def kernel(g_ref, x_ref, wg_ref, wx_ref,
               scg_ref, shg_ref, scx_ref, shx_ref,
               wpsi_ref, bpsi_ref,
               ypsi_ref, ps_ref, pss_ref):
        yg = jnp.dot(g_ref[...], wg_ref[...],
                     preferred_element_type=jnp.float32)
        yx = jnp.dot(x_ref[...], wx_ref[...],
                     preferred_element_type=jnp.float32)
        g1 = yg * scg_ref[...] + shg_ref[...]
        x1 = yx * scx_ref[...] + shx_ref[...]
        a = jnp.maximum(g1 + x1, 0.0)
        ypsi = (jnp.sum(a * wpsi_ref[...], axis=-1, keepdims=True)
                + bpsi_ref[0, 0])
        ypsi_ref[...] = ypsi

        rows = (lax.broadcasted_iota(jnp.int32, (tm, 1), 0)
                + pl.program_id(0) * tm)
        valid = (rows < m_valid).astype(jnp.float32)
        yv = ypsi * valid
        ps_ref[...] = jnp.sum(yv, axis=0, keepdims=True)[None]
        pss_ref[...] = jnp.sum(yv * ypsi, axis=0, keepdims=True)[None]

    return kernel


# ----------------------------------------------------------------------------
# Pass 3: psi = sigmoid(BN(y_psi)); out = x * psi  (broadcast inside kernel,
# x read as unpadded bf16 and upcast in-register).
# ----------------------------------------------------------------------------
def _psi_gate_kernel(x_ref, ypsi_ref, ps_ref, pt_ref, o_ref):
    psi = jax.nn.sigmoid(ypsi_ref[...] * ps_ref[0, 0] + pt_ref[0, 0])
    o_ref[...] = x_ref[...].astype(jnp.float32) * psi


# ----------------------------------------------------------------------------
# Forward wrapper (NCHW in / NCHW out)
# ----------------------------------------------------------------------------
def attention_block_forward(params, g_nchw, x_nchw, tm_max=1024):
    wg, bg = params["wg"], params["bg"]          # (F_l, F_int), (F_int,)
    wx, bx = params["wx"], params["bx"]          # (F_g, F_int), (F_int,)
    gam_g, bet_g = params["bn_g_gamma"], params["bn_g_beta"]
    gam_x, bet_x = params["bn_x_gamma"], params["bn_x_beta"]
    wpsi, bpsi = params["wpsi"], params["bpsi"]  # (F_int, 1), (1,)
    gam_p, bet_p = params["bn_psi_gamma"], params["bn_psi_beta"]

    N, Cg, H, W = g_nchw.shape
    Nx, Cx, Hx, Wx_ = x_nchw.shape
    assert (N, H, W) == (Nx, Hx, Wx_)
    F_int = wg.shape[1]
    assert wg.shape[0] == Cg and wx.shape[0] == Cx

    M = N * H * W
    tm = _pick_tm(M, tm_max)
    Mp = _round_up(M, tm)
    Gm = Mp // tm
    # TODO(synk): for tiny true channel counts the 128-lane pad still inflates
    # Pass-1/2 HBM reads; a VPU broadcast-FMA path at true width would fix it.
    Kg = _round_up(Cg, 128)
    Kx = _round_up(Cx, 128)
    Ci = _round_up(F_int, 128)

    # Cast to bf16 BEFORE the NCHW->NHWC transpose (halves relayout bytes),
    # then pad rows/lanes for the MXU tiles.
    g_nhwc = jnp.transpose(g_nchw.astype(jnp.bfloat16),
                           (0, 2, 3, 1)).reshape(M, Cg)
    x_nhwc = jnp.transpose(x_nchw.astype(jnp.bfloat16),
                           (0, 2, 3, 1)).reshape(M, Cx)
    x_rows = jnp.pad(x_nhwc, ((0, Mp - M), (0, 0)))        # Pass-3 input (unpadded lanes)
    g_bf = jnp.pad(g_nhwc, ((0, Mp - M), (0, Kg - Cg)))
    x_bf = jnp.pad(x_rows, ((0, 0), (0, Kx - Cx)))

    wg_p = jnp.pad(wg.astype(jnp.bfloat16), ((0, Kg - Cg), (0, Ci - F_int)))
    wx_p = jnp.pad(wx.astype(jnp.bfloat16), ((0, Kx - Cx), (0, Ci - F_int)))
    bg_row = jnp.pad(bg.astype(jnp.float32).reshape(1, -1),
                     ((0, 0), (0, Ci - F_int)))
    bx_row = jnp.pad(bx.astype(jnp.float32).reshape(1, -1),
                     ((0, 0), (0, Ci - F_int)))

    # ---- Pass 1: BN statistics only (no yg/yx spill to HBM) ----------------
    stats_cost = pl.CostEstimate(
        flops=2 * Mp * Ci * (Kg + Kx) + 8 * Mp * Ci,
        transcendentals=0,
        bytes_accessed=(Mp * (Kg + Kx) * 2 + (Kg + Kx) * Ci * 2
                        + 2 * Ci * 4 + 4 * Gm * Ci * 4))

    sg, ssg, sx, ssx = pl.pallas_call(
        _make_stats_kernel(tm, M),
        out_shape=(
            jax.ShapeDtypeStruct((Gm, 1, Ci), jnp.float32),
            jax.ShapeDtypeStruct((Gm, 1, Ci), jnp.float32),
            jax.ShapeDtypeStruct((Gm, 1, Ci), jnp.float32),
            jax.ShapeDtypeStruct((Gm, 1, Ci), jnp.float32),
        ),
        grid=(Gm,),
        in_specs=[
            pl.BlockSpec((tm, Kg), lambda i: (i, 0)),
            pl.BlockSpec((tm, Kx), lambda i: (i, 0)),
            pl.BlockSpec((Kg, Ci), lambda i: (0, 0)),
            pl.BlockSpec((Kx, Ci), lambda i: (0, 0)),
            pl.BlockSpec((1, Ci), lambda i: (0, 0)),
            pl.BlockSpec((1, Ci), lambda i: (0, 0)),
        ],
        out_specs=(
            pl.BlockSpec((1, 1, Ci), lambda i: (i, 0, 0)),
            pl.BlockSpec((1, 1, Ci), lambda i: (i, 0, 0)),
            pl.BlockSpec((1, 1, Ci), lambda i: (i, 0, 0)),
            pl.BlockSpec((1, 1, Ci), lambda i: (i, 0, 0)),
        ),
        compiler_params=_mosaic_params(),
        cost_estimate=stats_cost,
    )(g_bf, x_bf, wg_p, wx_p, bg_row, bx_row)

    # Tiny per-channel reduction + BN scale/shift prep (a few hundred floats).
    inv_m = 1.0 / float(M)

    def bn_scale_shift(s, ss, gamma, beta, bias_row):
        total = jnp.sum(s, axis=(0, 1))
        total2 = jnp.sum(ss, axis=(0, 1))
        mean = total * inv_m
        # Clamp: E[y^2] - mean^2 can cancel slightly negative in f32.
        var = jnp.maximum(total2 * inv_m - mean * mean, 0.0)
        gamma_p = jnp.pad(gamma.astype(jnp.float32), (0, Ci - F_int))
        beta_p = jnp.pad(beta.astype(jnp.float32), (0, Ci - F_int))
        scale = gamma_p * lax.rsqrt(var + _EPS)
        # Fold the conv bias into the shift (Pass 2 recomputes y WITHOUT bias).
        shift = beta_p - mean * scale + bias_row[0] * scale
        return scale.reshape(1, Ci), shift.reshape(1, Ci)

    sc_g, sh_g = bn_scale_shift(sg, ssg, gam_g, bet_g, bg_row)
    sc_x, sh_x = bn_scale_shift(sx, ssx, gam_x, bet_x, bx_row)

    wpsi_row = jnp.pad(wpsi.astype(jnp.float32).reshape(1, -1),
                       ((0, 0), (0, Ci - F_int)))
    bpsi_s = bpsi.astype(jnp.float32).reshape(1, 1)

    # ---- Pass 2: recompute convs, BN, relu, psi conv + psi BN partials ------
    psi_cost = pl.CostEstimate(
        flops=2 * Mp * Ci * (Kg + Kx) + 10 * Mp * Ci,
        transcendentals=0,
        bytes_accessed=(Mp * (Kg + Kx) * 2 + (Kg + Kx) * Ci * 2
                        + 5 * Ci * 4 + Mp * 4 + 2 * Gm * 4))

    ypsi, psum, pssum = pl.pallas_call(
        _make_psi_kernel(tm, M),
        out_shape=(
            jax.ShapeDtypeStruct((Mp, 1), jnp.float32),
            jax.ShapeDtypeStruct((Gm, 1, 1), jnp.float32),
            jax.ShapeDtypeStruct((Gm, 1, 1), jnp.float32),
        ),
        grid=(Gm,),
        in_specs=[
            pl.BlockSpec((tm, Kg), lambda i: (i, 0)),
            pl.BlockSpec((tm, Kx), lambda i: (i, 0)),
            pl.BlockSpec((Kg, Ci), lambda i: (0, 0)),
            pl.BlockSpec((Kx, Ci), lambda i: (0, 0)),
            pl.BlockSpec((1, Ci), lambda i: (0, 0)),
            pl.BlockSpec((1, Ci), lambda i: (0, 0)),
            pl.BlockSpec((1, Ci), lambda i: (0, 0)),
            pl.BlockSpec((1, Ci), lambda i: (0, 0)),
            pl.BlockSpec((1, Ci), lambda i: (0, 0)),
            pl.BlockSpec(memory_space=pltpu.MemorySpace.SMEM),
        ],
        out_specs=(
            pl.BlockSpec((tm, 1), lambda i: (i, 0)),
            pl.BlockSpec((1, 1, 1), lambda i: (i, 0, 0)),
            pl.BlockSpec((1, 1, 1), lambda i: (i, 0, 0)),
        ),
        compiler_params=_mosaic_params(),
        cost_estimate=psi_cost,
    )(g_bf, x_bf, wg_p, wx_p, sc_g, sh_g, sc_x, sh_x, wpsi_row, bpsi_s)

    # psi BN scale/shift from the per-tile partials (Gm scalars, not M floats).
    mean_p = jnp.sum(psum) * inv_m
    var_p = jnp.maximum(jnp.sum(pssum) * inv_m - mean_p * mean_p, 0.0)
    scale_p = gam_p.astype(jnp.float32).reshape(()) * lax.rsqrt(var_p + _EPS)
    shift_p = bet_p.astype(jnp.float32).reshape(()) - mean_p * scale_p
    ps = scale_p.reshape(1, 1)
    pt = shift_p.reshape(1, 1)

    # ---- Pass 3: out = x * sigmoid(scale*ypsi + shift) ---------------------
    gate_cost = pl.CostEstimate(
        flops=4 * Mp * Cx,
        transcendentals=Mp,
        bytes_accessed=Mp * Cx * 2 + Mp * 4 + Mp * Cx * 4)

    out2 = pl.pallas_call(
        _psi_gate_kernel,
        out_shape=jax.ShapeDtypeStruct((Mp, Cx), jnp.float32),
        grid=(Gm,),
        in_specs=[
            pl.BlockSpec((tm, Cx), lambda i: (i, 0)),
            pl.BlockSpec((tm, 1), lambda i: (i, 0)),
            pl.BlockSpec(memory_space=pltpu.MemorySpace.SMEM),
            pl.BlockSpec(memory_space=pltpu.MemorySpace.SMEM),
        ],
        out_specs=pl.BlockSpec((tm, Cx), lambda i: (i, 0)),
        compiler_params=_mosaic_params(),
        cost_estimate=gate_cost,
    )(x_rows, ypsi, ps, pt)

    out = out2[:M].reshape(N, H, W, Cx)
    return jnp.transpose(out, (0, 3, 1, 2))  # -> NCHW


# ----------------------------------------------------------------------------
# Pure-JAX reference (same bf16 MXU precision for the 1x1 convs) for checking.
# The final gating multiply uses f32 x, while the kernel uses bf16 x (per perf
# review) -> ~2^-9 relative difference on the output; tolerance set to 2e-2.
# ----------------------------------------------------------------------------
def attention_block_reference(params, g_nchw, x_nchw):
    N, Cg, H, W = g_nchw.shape
    Cx = x_nchw.shape[1]
    g2 = jnp.transpose(g_nchw, (0, 2, 3, 1)).reshape(-1, Cg).astype(jnp.float32)
    x2 = jnp.transpose(x_nchw, (0, 2, 3, 1)).reshape(-1, Cx).astype(jnp.float32)

    def bn(y, gamma, beta):
        mean = jnp.mean(y, axis=0, keepdims=True)
        var = jnp.mean(y * y, axis=0, keepdims=True) - mean * mean
        return (y - mean) * lax.rsqrt(var + _EPS) * gamma + beta

    yg = jnp.dot(g2.astype(jnp.bfloat16), params["wg"].astype(jnp.bfloat16),
                 preferred_element_type=jnp.float32) + params["bg"]
    yx = jnp.dot(x2.astype(jnp.bfloat16), params["wx"].astype(jnp.bfloat16),
                 preferred_element_type=jnp.float32) + params["bx"]
    g1 = bn(yg, params["bn_g_gamma"], params["bn_g_beta"])
    x1 = bn(yx, params["bn_x_gamma"], params["bn_x_beta"])
    a = jnp.maximum(g1 + x1, 0.0)
    yp = jnp.dot(a, params["wpsi"].astype(jnp.float32)) + params["bpsi"]
    psi = jax.nn.sigmoid(bn(yp, params["bn_psi_gamma"], params["bn_psi_beta"]))
    out = x2 * psi
    return jnp.transpose(out.reshape(N, H, W, Cx), (0, 3, 1, 2))


# ----------------------------------------------------------------------------
# Deterministic parameter init (mirrors the PyTorch module's shapes; W_g has
# F_l in-channels applied to g, W_x has F_g applied to x — quirk preserved;
# the demo uses F_g == F_l).
# ----------------------------------------------------------------------------
def init_attention_block_params(key, F_g, F_l, F_int):
    ks = jax.random.split(key, 6)

    def conv(k, cin, cout):
        kw, kb = jax.random.split(k)
        w = jax.random.normal(kw, (cin, cout), jnp.float32) / math.sqrt(cin)
        b = 0.05 * jax.random.normal(kb, (cout,), jnp.float32)
        return w, b

    def bn(k, c):
        kg_, kb_ = jax.random.split(k)
        gamma = 1.0 + 0.1 * jax.random.normal(kg_, (c,), jnp.float32)
        beta = 0.1 * jax.random.normal(kb_, (c,), jnp.float32)
        return gamma, beta

    wg, bg = conv(ks[0], F_l, F_int)       # W_g : Conv2d(F_l, F_int, 1)
    wx, bx = conv(ks[1], F_g, F_int)       # W_x : Conv2d(F_g, F_int, 1)
    wpsi, bpsi = conv(ks[2], F_int, 1)     # psi : Conv2d(F_int, 1, 1)
    gg, bgm = bn(ks[3], F_int)
    gx, bxm = bn(ks[4], F_int)
    gp, bp = bn(ks[5], 1)
    return {"wg": wg, "bg": bg, "bn_g_gamma": gg, "bn_g_beta": bgm,
            "wx": wx, "bx": bx, "bn_x_gamma": gx, "bn_x_beta": bxm,
            "wpsi": wpsi, "bpsi": bpsi, "bn_psi_gamma": gp, "bn_psi_beta": bp}


# ----------------------------------------------------------------------------
# Main
# ----------------------------------------------------------------------------
if __name__ == "__main__":
    key = jax.random.PRNGKey(0)
    kp, kg_, kx_ = jax.random.split(key, 3)

    F_g = F_l = 4
    F_int = 8
    N, H, W = 2, 16, 16

    params = init_attention_block_params(kp, F_g=F_g, F_l=F_l, F_int=F_int)
    g = jax.random.normal(kg_, (N, F_l, H, W), jnp.float32)
    x = jax.random.normal(kx_, (N, F_g, H, W), jnp.float32)

    fwd = jax.jit(attention_block_forward)
    out = jax.block_until_ready(fwd(params, g, x))

    assert out.shape == (N, F_g, H, W), out.shape
    assert bool(jnp.all(jnp.isfinite(out)))

    ref = jax.block_until_ready(attention_block_reference(params, g, x))
    max_err = float(jnp.max(jnp.abs(out - ref)))
    assert max_err < 2e-2, f"max abs err vs reference: {max_err}"

    print("KERNEL_OK")
</pallas_src>

<mosaic_0001>
module attributes {stable_mosaic.version = 11 : i64} {
  func.func @kernel(%arg0: i32, %arg1: memref<256x128xbf16, #tpu.memory_space<vmem>>, %arg2: memref<256x128xbf16, #tpu.memory_space<vmem>>, %arg3: memref<128x128xbf16, #tpu.memory_space<vmem>>, %arg4: memref<128x128xbf16, #tpu.memory_space<vmem>>, %arg5: memref<1x128xf32, #tpu.memory_space<vmem>>, %arg6: memref<1x128xf32, #tpu.memory_space<vmem>>, %arg7: memref<1x128xf32, #tpu.memory_space<vmem>>, %arg8: memref<1x128xf32, #tpu.memory_space<vmem>>, %arg9: memref<1x128xf32, #tpu.memory_space<vmem>>, %arg10: memref<1x1xf32, #tpu.memory_space<smem>>, %arg11: memref<256x1xf32, #tpu.memory_space<vmem>>, %arg12: memref<1x1x1xf32, #tpu.memory_space<vmem>>, %arg13: memref<1x1x1xf32, #tpu.memory_space<vmem>>) attributes {dimension_semantics = [#tpu.dimension_semantics<parallel>], iteration_bounds = array<i64: 2>, scalar_prefetch = 0 : i64, scratch_operands = 0 : i64, tpu.core_type = #tpu.core_type<tc>, window_params = [{transform_indices = @transform_0, window_bounds = array<i64: 256, 128>}, {transform_indices = @transform_1, window_bounds = array<i64: 256, 128>}, {pipeline_mode = #tpu.pipeline_mode<synchronous>, transform_indices = @transform_2, window_bounds = array<i64: 128, 128>}, {pipeline_mode = #tpu.pipeline_mode<synchronous>, transform_indices = @transform_3, window_bounds = array<i64: 128, 128>}, {pipeline_mode = #tpu.pipeline_mode<synchronous>, transform_indices = @transform_4, window_bounds = array<i64: 1, 128>}, {pipeline_mode = #tpu.pipeline_mode<synchronous>, transform_indices = @transform_5, window_bounds = array<i64: 1, 128>}, {pipeline_mode = #tpu.pipeline_mode<synchronous>, transform_indices = @transform_6, window_bounds = array<i64: 1, 128>}, {pipeline_mode = #tpu.pipeline_mode<synchronous>, transform_indices = @transform_7, window_bounds = array<i64: 1, 128>}, {pipeline_mode = #tpu.pipeline_mode<synchronous>, transform_indices = @transform_8, window_bounds = array<i64: 1, 128>}, {transform_indices = @transform_9, window_bounds = array<i64: 1, 1>}, {transform_indices = @transform_10, window_bounds = array<i64: 256, 1>}, {transform_indices = @transform_11, window_bounds = array<i64: 1, 1, 1>}, {transform_indices = @transform_12, window_bounds = array<i64: 1, 1, 1>}]} {
    %c0 = arith.constant 0 : index
    %c0_0 = arith.constant 0 : index
    %0 = vector.load %arg1[%c0, %c0_0] : memref<256x128xbf16, #tpu.memory_space<vmem>>, vector<256x128xbf16>
    %c0_1 = arith.constant 0 : index
    %c0_2 = arith.constant 0 : index
    %1 = vector.load %arg3[%c0_1, %c0_2] : memref<128x128xbf16, #tpu.memory_space<vmem>>, vector<128x128xbf16>
    %cst = arith.constant dense<0.000000e+00> : vector<256x128xf32>
    %2 = tpu.matmul %0, %1, %cst {dimension_numbers = #tpu.dot_dimension_numbers<[1], [0], [0], [1], [0, 0, 1, 1], [], []>} : vector<256x128xbf16>, vector<128x128xbf16>, vector<256x128xf32> -> vector<256x128xf32>
    %c0_3 = arith.constant 0 : index
    %c0_4 = arith.constant 0 : index
    %3 = vector.load %arg2[%c0_3, %c0_4] : memref<256x128xbf16, #tpu.memory_space<vmem>>, vector<256x128xbf16>
    %c0_5 = arith.constant 0 : index
    %c0_6 = arith.constant 0 : index
    %4 = vector.load %arg4[%c0_5, %c0_6] : memref<128x128xbf16, #tpu.memory_space<vmem>>, vector<128x128xbf16>
    %cst_7 = arith.constant dense<0.000000e+00> : vector<256x128xf32>
    %5 = tpu.matmul %3, %4, %cst_7 {dimension_numbers = #tpu.dot_dimension_numbers<[1], [0], [0], [1], [0, 0, 1, 1], [], []>} : vector<256x128xbf16>, vector<128x128xbf16>, vector<256x128xf32> -> vector<256x128xf32>
    %c0_8 = arith.constant 0 : index
    %c0_9 = arith.constant 0 : index
    %6 = vector.load %arg5[%c0_8, %c0_9] : memref<1x128xf32, #tpu.memory_space<vmem>>, vector<1x128xf32>
    %7 = vector.broadcast %6 : vector<1x128xf32> to vector<256x128xf32>
    %8 = arith.mulf %2, %7 : vector<256x128xf32>
    %c0_10 = arith.constant 0 : index
    %c0_11 = arith.constant 0 : index
    %9 = vector.load %arg6[%c0_10, %c0_11] : memref<1x128xf32, #tpu.memory_space<vmem>>, vector<1x128xf32>
    %10 = vector.broadcast %9 : vector<1x128xf32> to vector<256x128xf32>
    %11 = arith.addf %8, %10 : vector<256x128xf32>
    %c0_12 = arith.constant 0 : index
    %c0_13 = arith.constant 0 : index
    %12 = vector.load %arg7[%c0_12, %c0_13] : memref<1x128xf32, #tpu.memory_space<vmem>>, vector<1x128xf32>
    %13 = vector.broadcast %12 : vector<1x128xf32> to vector<256x128xf32>
    %14 = arith.mulf %5, %13 : vector<256x128xf32>
    %c0_14 = arith.constant 0 : index
    %c0_15 = arith.constant 0 : index
    %15 = vector.load %arg8[%c0_14, %c0_15] : memref<1x128xf32, #tpu.memory_space<vmem>>, vector<1x128xf32>
    %16 = vector.broadcast %15 : vector<1x128xf32> to vector<256x128xf32>
    %17 = arith.addf %14, %16 : vector<256x128xf32>
    %18 = arith.addf %11, %17 : vector<256x128xf32>
    %cst_16 = arith.constant 0.000000e+00 : f32
    %19 = vector.broadcast %cst_16 : f32 to vector<256x128xf32>
    %20 = arith.maximumf %18, %19 : vector<256x128xf32>
    %c0_17 = arith.constant 0 : index
    %c0_18 = arith.constant 0 : index
    %21 = vector.load %arg9[%c0_17, %c0_18] : memref<1x128xf32, #tpu.memory_space<vmem>>, vector<1x128xf32>
    %22 = vector.broadcast %21 : vector<1x128xf32> to vector<256x128xf32>
    %23 = arith.mulf %20, %22 : vector<256x128xf32>
    %cst_19 = arith.constant dense<0.000000e+00> : vector<256xf32>
    %24 = vector.multi_reduction <add>, %23, %cst_19 [1] : vector<256x128xf32> to vector<256xf32>
    %25 = vector.shape_cast %24 : vector<256xf32> to vector<256x1xf32>
    %c0_20 = arith.constant 0 : index
    %c0_21 = arith.constant 0 : index
    %26 = memref.load %arg10[%c0_20, %c0_21] : memref<1x1xf32, #tpu.memory_space<smem>>
    %27 = vector.broadcast %26 : f32 to vector<256x1xf32>
    %28 = arith.addf %25, %27 : vector<256x1xf32>
    %c0_22 = arith.constant 0 : index
    %c0_23 = arith.constant 0 : index
    %29 = vector.load %arg11[%c0_22, %c0_23] : memref<256x1xf32, #tpu.memory_space<vmem>>, vector<256x1xf32>
    tpu.vector_store %arg11[%c0_22, %c0_23], %28 {strides = array<i32>} : memref<256x1xf32, #tpu.memory_space<vmem>>, vector<256x1xf32>,
    %30 = tpu.iota {dimensions = array<i32: 0>} : vector<256x1xi32>
    %c256_i32 = arith.constant 256 : i32
    %31 = arith.muli %arg0, %c256_i32 : i32
    %32 = vector.broadcast %31 : i32 to vector<256x1xi32>
    %33 = arith.addi %30, %32 : vector<256x1xi32>
    %c512_i32 = arith.constant 512 : i32
    %34 = vector.broadcast %c512_i32 : i32 to vector<256x1xi32>
    %35 = arith.cmpi slt, %33, %34 : vector<256x1xi32>
    %36 = arith.extui %35 : vector<256x1xi1> to vector<256x1xi32>
    %37 = arith.sitofp %36 : vector<256x1xi32> to vector<256x1xf32>
    %38 = arith.mulf %28, %37 : vector<256x1xf32>
    %cst_24 = arith.constant dense<0.000000e+00> : vector<1xf32>
    %39 = vector.multi_reduction <add>, %38, %cst_24 [0] : vector<256x1xf32> to vector<1xf32>
    %40 = vector.shape_cast %39 : vector<1xf32> to vector<1x1xf32>
    %41 = vector.shape_cast %40 : vector<1x1xf32> to vector<1x1x1xf32>
    %c0_25 = arith.constant 0 : index
    %c0_26 = arith.constant 0 : index
    %c0_27 = arith.constant 0 : index
    %42 = vector.load %arg12[%c0_25, %c0_26, %c0_27] : memref<1x1x1xf32, #tpu.memory_space<vmem>>, vector<1x1x1xf32>
    tpu.vector_store %arg12[%c0_25, %c0_26, %c0_27], %41 {strides = array<i32>} : memref<1x1x1xf32, #tpu.memory_space<vmem>>, vector<1x1x1xf32>,
    %43 = arith.mulf %38, %28 : vector<256x1xf32>
    %cst_28 = arith.constant dense<0.000000e+00> : vector<1xf32>
    %44 = vector.multi_reduction <add>, %43, %cst_28 [0] : vector<256x1xf32> to vector<1xf32>
    %45 = vector.shape_cast %44 : vector<1xf32> to vector<1x1xf32>
    %46 = vector.shape_cast %45 : vector<1x1xf32> to vector<1x1x1xf32>
    %c0_29 = arith.constant 0 : index
    %c0_30 = arith.constant 0 : index
    %c0_31 = arith.constant 0 : index
    %47 = vector.load %arg13[%c0_29, %c0_30, %c0_31] : memref<1x1x1xf32, #tpu.memory_space<vmem>>, vector<1x1x1xf32>
    tpu.vector_store %arg13[%c0_29, %c0_30, %c0_31], %46 {strides = array<i32>} : memref<1x1x1xf32, #tpu.memory_space<vmem>>, vector<1x1x1xf32>,
    return
  }
  func.func @transform_0(%arg0: i32) -> (i32, i32) {
    %c0_i32 = arith.constant 0 : i32
    %c0_i32_0 = arith.constant 0 : i32
    return %arg0, %c0_i32 : i32, i32
  }
  func.func @transform_1(%arg0: i32) -> (i32, i32) {
    %c0_i32 = arith.constant 0 : i32
    %c0_i32_0 = arith.constant 0 : i32
    return %arg0, %c0_i32 : i32, i32
  }
  func.func @transform_2(%arg0: i32) -> (i32, i32) {
    %c0_i32 = arith.constant 0 : i32
    %c0_i32_0 = arith.constant 0 : i32
    %c0_i32_1 = arith.constant 0 : i32
    return %c0_i32, %c0_i32_0 : i32, i32
  }
  func.func @transform_3(%arg0: i32) -> (i32, i32) {
    %c0_i32 = arith.constant 0 : i32
    %c0_i32_0 = arith.constant 0 : i32
    %c0_i32_1 = arith.constant 0 : i32
    return %c0_i32, %c0_i32_0 : i32, i32
  }
  func.func @transform_4(%arg0: i32) -> (i32, i32) {
    %c0_i32 = arith.constant 0 : i32
    %c0_i32_0 = arith.constant 0 : i32
    %c0_i32_1 = arith.constant 0 : i32
    return %c0_i32, %c0_i32_0 : i32, i32
  }
  func.func @transform_5(%arg0: i32) -> (i32, i32) {
    %c0_i32 = arith.constant 0 : i32
    %c0_i32_0 = arith.constant 0 : i32
    %c0_i32_1 = arith.constant 0 : i32
    return %c0_i32, %c0_i32_0 : i32, i32
  }
  func.func @transform_6(%arg0: i32) -> (i32, i32) {
    %c0_i32 = arith.constant 0 : i32
    %c0_i32_0 = arith.constant 0 : i32
    %c0_i32_1 = arith.constant 0 : i32
    return %c0_i32, %c0_i32_0 : i32, i32
  }
  func.func @transform_7(%arg0: i32) -> (i32, i32) {
    %c0_i32 = arith.constant 0 : i32
    %c0_i32_0 = arith.constant 0 : i32
    %c0_i32_1 = arith.constant 0 : i32
    return %c0_i32, %c0_i32_0 : i32, i32
  }
  func.func @transform_8(%arg0: i32) -> (i32, i32) {
    %c0_i32 = arith.constant 0 : i32
    %c0_i32_0 = arith.constant 0 : i32
    %c0_i32_1 = arith.constant 0 : i32
    return %c0_i32, %c0_i32_0 : i32, i32
  }
  func.func @transform_9(%arg0: i32) -> (i32, i32) {
    %c0_i32 = arith.constant 0 : i32
    %c0_i32_0 = arith.constant 0 : i32
    %c0_i32_1 = arith.constant 0 : i32
    return %c0_i32, %c0_i32_0 : i32, i32
  }
  func.func @transform_10(%arg0: i32) -> (i32, i32) {
    %c0_i32 = arith.constant 0 : i32
    %c0_i32_0 = arith.constant 0 : i32
    return %arg0, %c0_i32 : i32, i32
  }
  func.func @transform_11(%arg0: i32) -> (i32, i32, i32) {
    %c0_i32 = arith.constant 0 : i32
    %c0_i32_0 = arith.constant 0 : i32
    %c0_i32_1 = arith.constant 0 : i32
    return %arg0, %c0_i32, %c0_i32_0 : i32, i32, i32
  }
  func.func @transform_12(%arg0: i32) -> (i32, i32, i32) {
    %c0_i32 = arith.constant 0 : i32
    %c0_i32_0 = arith.constant 0 : i32
    %c0_i32_1 = arith.constant 0 : i32
    return %arg0, %c0_i32, %c0_i32_0 : i32, i32, i32
  }
}

module attributes {stable_mosaic.version = 11 : i64} {
  func.func @_psi_gate_kernel(%arg0: i32, %arg1: memref<256x4xbf16, #tpu.memory_space<vmem>>, %arg2: memref<256x1xf32, #tpu.memory_space<vmem>>, %arg3: memref<1x1xf32, #tpu.memory_space<smem>>, %arg4: memref<1x1xf32, #tpu.memory_space<smem>>, %arg5: memref<256x4xf32, #tpu.memory_space<vmem>>) attributes {dimension_semantics = [#tpu.dimension_semantics<parallel>], iteration_bounds = array<i64: 2>, scalar_prefetch = 0 : i64, scratch_operands = 0 : i64, tpu.core_type = #tpu.core_type<tc>, window_params = [{transform_indices = @transform_0, window_bounds = array<i64: 256, 4>}, {transform_indices = @transform_1, window_bounds = array<i64: 256, 1>}, {transform_indices = @transform_2, window_bounds = array<i64: 1, 1>}, {transform_indices = @transform_3, window_bounds = array<i64: 1, 1>}, {transform_indices = @transform_4, window_bounds = array<i64: 256, 4>}]} {
    %c0 = arith.constant 0 : index
    %c0_0 = arith.constant 0 : index
    %0 = vector.load %arg2[%c0, %c0_0] : memref<256x1xf32, #tpu.memory_space<vmem>>, vector<256x1xf32>
    %c0_1 = arith.constant 0 : index
    %c0_2 = arith.constant 0 : index
    %1 = memref.load %arg3[%c0_1, %c0_2] : memref<1x1xf32, #tpu.memory_space<smem>>
    %2 = vector.broadcast %1 : f32 to vector<256x1xf32>
    %3 = arith.mulf %0, %2 : vector<256x1xf32>
    %c0_3 = arith.constant 0 : index
    %c0_4 = arith.constant 0 : index
    %4 = memref.load %arg4[%c0_3, %c0_4] : memref<1x1xf32, #tpu.memory_space<smem>>
    %5 = vector.broadcast %4 : f32 to vector<256x1xf32>
    %6 = arith.addf %3, %5 : vector<256x1xf32>
    %7 = arith.negf %6 : vector<256x1xf32>
    %8 = math.exp %7 : vector<256x1xf32>
    %cst = arith.constant 1.000000e+00 : f32
    %9 = vector.broadcast %cst : f32 to vector<256x1xf32>
    %10 = arith.addf %9, %8 : vector<256x1xf32>
    %11 = arith.divf %9, %10 : vector<256x1xf32>
    %c0_5 = arith.constant 0 : index
    %c0_6 = arith.constant 0 : index
    %12 = vector.load %arg1[%c0_5, %c0_6] : memref<256x4xbf16, #tpu.memory_space<vmem>>, vector<256x4xbf16>
    %13 = arith.extf %12 : vector<256x4xbf16> to vector<256x4xf32>
    %14 = vector.broadcast %11 : vector<256x1xf32> to vector<256x4xf32>
    %15 = arith.mulf %13, %14 : vector<256x4xf32>
    %c0_7 = arith.constant 0 : index
    %c0_8 = arith.constant 0 : index
    %16 = vector.load %arg5[%c0_7, %c0_8] : memref<256x4xf32, #tpu.memory_space<vmem>>, vector<256x4xf32>
    tpu.vector_store %arg5[%c0_7, %c0_8], %15 {strides = array<i32>} : memref<256x4xf32, #tpu.memory_space<vmem>>, vector<256x4xf32>,
    return
  }
  func.func @transform_0(%arg0: i32) -> (i32, i32) {
    %c0_i32 = arith.constant 0 : i32
    %c0_i32_0 = arith.constant 0 : i32
    return %arg0, %c0_i32 : i32, i32
  }
  func.func @transform_1(%arg0: i32) -> (i32, i32) {
    %c0_i32 = arith.constant 0 : i32
    %c0_i32_0 = arith.constant 0 : i32
    return %arg0, %c0_i32 : i32, i32
  }
  func.func @transform_2(%arg0: i32) -> (i32, i32) {
    %c0_i32 = arith.constant 0 : i32
    %c0_i32_0 = arith.constant 0 : i32
    %c0_i32_1 = arith.constant 0 : i32
    return %c0_i32, %c0_i32_0 : i32, i32
  }
  func.func @transform_3(%arg0: i32) -> (i32, i32) {
    %c0_i32 = arith.constant 0 : i32
    %c0_i32_0 = arith.constant 0 : i32
    %c0_i32_1 = arith.constant 0 : i32
    return %c0_i32, %c0_i32_0 : i32, i32
  }
  func.func @transform_4(%arg0: i32) -> (i32, i32) {
    %c0_i32 = arith.constant 0 : i32
    %c0_i32_0 = arith.constant 0 : i32
    return %arg0, %c0_i32 : i32, i32
  }
}

module attributes {stable_mosaic.version = 11 : i64} {
  func.func @kernel(%arg0: i32, %arg1: memref<256x128xbf16, #tpu.memory_space<vmem>>, %arg2: memref<256x128xbf16, #tpu.memory_space<vmem>>, %arg3: memref<128x128xbf16, #tpu.memory_space<vmem>>, %arg4: memref<128x128xbf16, #tpu.memory_space<vmem>>, %arg5: memref<1x128xf32, #tpu.memory_space<vmem>>, %arg6: memref<1x128xf32, #tpu.memory_space<vmem>>, %arg7: memref<1x1x128xf32, #tpu.memory_space<vmem>>, %arg8: memref<1x1x128xf32, #tpu.memory_space<vmem>>, %arg9: memref<1x1x128xf32, #tpu.memory_space<vmem>>, %arg10: memref<1x1x128xf32, #tpu.memory_space<vmem>>) attributes {dimension_semantics = [#tpu.dimension_semantics<parallel>], iteration_bounds = array<i64: 2>, scalar_prefetch = 0 : i64, scratch_operands = 0 : i64, tpu.core_type = #tpu.core_type<tc>, window_params = [{transform_indices = @transform_0, window_bounds = array<i64: 256, 128>}, {transform_indices = @transform_1, window_bounds = array<i64: 256, 128>}, {pipeline_mode = #tpu.pipeline_mode<synchronous>, transform_indices = @transform_2, window_bounds = array<i64: 128, 128>}, {pipeline_mode = #tpu.pipeline_mode<synchronous>, transform_indices = @transform_3, window_bounds = array<i64: 128, 128>}, {pipeline_mode = #tpu.pipeline_mode<synchronous>, transform_indices = @transform_4, window_bounds = array<i64: 1, 128>}, {pipeline_mode = #tpu.pipeline_mode<synchronous>, transform_indices = @transform_5, window_bounds = array<i64: 1, 128>}, {transform_indices = @transform_6, window_bounds = array<i64: 1, 1, 128>}, {transform_indices = @transform_7, window_bounds = array<i64: 1, 1, 128>}, {transform_indices = @transform_8, window_bounds = array<i64: 1, 1, 128>}, {transform_indices = @transform_9, window_bounds = array<i64: 1, 1, 128>}]} {
    %c0 = arith.constant 0 : index
    %c0_0 = arith.constant 0 : index
    %0 = vector.load %arg1[%c0, %c0_0] : memref<256x128xbf16, #tpu.memory_space<vmem>>, vector<256x128xbf16>
    %c0_1 = arith.constant 0 : index
    %c0_2 = arith.constant 0 : index
    %1 = vector.load %arg3[%c0_1, %c0_2] : memref<128x128xbf16, #tpu.memory_space<vmem>>, vector<128x128xbf16>
    %cst = arith.constant dense<0.000000e+00> : vector<256x128xf32>
    %2 = tpu.matmul %0, %1, %cst {dimension_numbers = #tpu.dot_dimension_numbers<[1], [0], [0], [1], [0, 0, 1, 1], [], []>} : vector<256x128xbf16>, vector<128x128xbf16>, vector<256x128xf32> -> vector<256x128xf32>
    %c0_3 = arith.constant 0 : index
    %c0_4 = arith.constant 0 : index
    %3 = vector.load %arg5[%c0_3, %c0_4] : memref<1x128xf32, #tpu.memory_space<vmem>>, vector<1x128xf32>
    %4 = vector.broadcast %3 : vector<1x128xf32> to vector<256x128xf32>
    %5 = arith.addf %2, %4 : vector<256x128xf32>
    %c0_5 = arith.constant 0 : index
    %c0_6 = arith.constant 0 : index
    %6 = vector.load %arg2[%c0_5, %c0_6] : memref<256x128xbf16, #tpu.memory_space<vmem>>, vector<256x128xbf16>
    %c0_7 = arith.constant 0 : index
    %c0_8 = arith.constant 0 : index
    %7 = vector.load %arg4[%c0_7, %c0_8] : memref<128x128xbf16, #tpu.memory_space<vmem>>, vector<128x128xbf16>
    %cst_9 = arith.constant dense<0.000000e+00> : vector<256x128xf32>
    %8 = tpu.matmul %6, %7, %cst_9 {dimension_numbers = #tpu.dot_dimension_numbers<[1], [0], [0], [1], [0, 0, 1, 1], [], []>} : vector<256x128xbf16>, vector<128x128xbf16>, vector<256x128xf32> -> vector<256x128xf32>
    %c0_10 = arith.constant 0 : index
    %c0_11 = arith.constant 0 : index
    %9 = vector.load %arg6[%c0_10, %c0_11] : memref<1x128xf32, #tpu.memory_space<vmem>>, vector<1x128xf32>
    %10 = vector.broadcast %9 : vector<1x128xf32> to vector<256x128xf32>
    %11 = arith.addf %8, %10 : vector<256x128xf32>
    %12 = tpu.iota {dimensions = array<i32: 0>} : vector<256x1xi32>
    %c256_i32 = arith.constant 256 : i32
    %13 = arith.muli %arg0, %c256_i32 : i32
    %14 = vector.broadcast %13 : i32 to vector<256x1xi32>
    %15 = arith.addi %12, %14 : vector<256x1xi32>
    %c512_i32 = arith.constant 512 : i32
    %16 = vector.broadcast %c512_i32 : i32 to vector<256x1xi32>
    %17 = arith.cmpi slt, %15, %16 : vector<256x1xi32>
    %18 = arith.extui %17 : vector<256x1xi1> to vector<256x1xi32>
    %19 = arith.sitofp %18 : vector<256x1xi32> to vector<256x1xf32>
    %20 = vector.broadcast %19 : vector<256x1xf32> to vector<256x128xf32>
    %21 = arith.mulf %5, %20 : vector<256x128xf32>
    %22 = vector.broadcast %19 : vector<256x1xf32> to vector<256x128xf32>
    %23 = arith.mulf %11, %22 : vector<256x128xf32>
    %cst_12 = arith.constant dense<0.000000e+00> : vector<128xf32>
    %24 = vector.multi_reduction <add>, %21, %cst_12 [0] : vector<256x128xf32> to vector<128xf32>
    %25 = vector.shape_cast %24 : vector<128xf32> to vector<1x128xf32>
    %26 = vector.shape_cast %25 : vector<1x128xf32> to vector<1x1x128xf32>
    %c0_13 = arith.constant 0 : index
    %c0_14 = arith.constant 0 : index
    %c0_15 = arith.constant 0 : index
    %27 = vector.load %arg7[%c0_13, %c0_14, %c0_15] : memref<1x1x128xf32, #tpu.memory_space<vmem>>, vector<1x1x128xf32>
    tpu.vector_store %arg7[%c0_13, %c0_14, %c0_15], %26 {strides = array<i32>} : memref<1x1x128xf32, #tpu.memory_space<vmem>>, vector<1x1x128xf32>,
    %28 = arith.mulf %21, %5 : vector<256x128xf32>
    %cst_16 = arith.constant dense<0.000000e+00> : vector<128xf32>
    %29 = vector.multi_reduction <add>, %28, %cst_16 [0] : vector<256x128xf32> to vector<128xf32>
    %30 = vector.shape_cast %29 : vector<128xf32> to vector<1x128xf32>
    %31 = vector.shape_cast %30 : vector<1x128xf32> to vector<1x1x128xf32>
    %c0_17 = arith.constant 0 : index
    %c0_18 = arith.constant 0 : index
    %c0_19 = arith.constant 0 : index
    %32 = vector.load %arg8[%c0_17, %c0_18, %c0_19] : memref<1x1x128xf32, #tpu.memory_space<vmem>>, vector<1x1x128xf32>
    tpu.vector_store %arg8[%c0_17, %c0_18, %c0_19], %31 {strides = array<i32>} : memref<1x1x128xf32, #tpu.memory_space<vmem>>, vector<1x1x128xf32>,
    %cst_20 = arith.constant dense<0.000000e+00> : vector<128xf32>
    %33 = vector.multi_reduction <add>, %23, %cst_20 [0] : vector<256x128xf32> to vector<128xf32>
    %34 = vector.shape_cast %33 : vector<128xf32> to vector<1x128xf32>
    %35 = vector.shape_cast %34 : vector<1x128xf32> to vector<1x1x128xf32>
    %c0_21 = arith.constant 0 : index
    %c0_22 = arith.constant 0 : index
    %c0_23 = arith.constant 0 : index
    %36 = vector.load %arg9[%c0_21, %c0_22, %c0_23] : memref<1x1x128xf32, #tpu.memory_space<vmem>>, vector<1x1x128xf32>
    tpu.vector_store %arg9[%c0_21, %c0_22, %c0_23], %35 {strides = array<i32>} : memref<1x1x128xf32, #tpu.memory_space<vmem>>, vector<1x1x128xf32>,
    %37 = arith.mulf %23, %11 : vector<256x128xf32>
    %cst_24 = arith.constant dense<0.000000e+00> : vector<128xf32>
    %38 = vector.multi_reduction <add>, %37, %cst_24 [0] : vector<256x128xf32> to vector<128xf32>
    %39 = vector.shape_cast %38 : vector<128xf32> to vector<1x128xf32>
    %40 = vector.shape_cast %39 : vector<1x128xf32> to vector<1x1x128xf32>
    %c0_25 = arith.constant 0 : index
    %c0_26 = arith.constant 0 : index
    %c0_27 = arith.constant 0 : index
    %41 = vector.load %arg10[%c0_25, %c0_26, %c0_27] : memref<1x1x128xf32, #tpu.memory_space<vmem>>, vector<1x1x128xf32>
    tpu.vector_store %arg10[%c0_25, %c0_26, %c0_27], %40 {strides = array<i32>} : memref<1x1x128xf32, #tpu.memory_space<vmem>>, vector<1x1x128xf32>,
    return
  }
  func.func @transform_0(%arg0: i32) -> (i32, i32) {
    %c0_i32 = arith.constant 0 : i32
    %c0_i32_0 = arith.constant 0 : i32
    return %arg0, %c0_i32 : i32, i32
  }
  func.func @transform_1(%arg0: i32) -> (i32, i32) {
    %c0_i32 = arith.constant 0 : i32
    %c0_i32_0 = arith.constant 0 : i32
    return %arg0, %c0_i32 : i32, i32
  }
  func.func @transform_2(%arg0: i32) -> (i32, i32) {
    %c0_i32 = arith.constant 0 : i32
    %c0_i32_0 = arith.constant 0 : i32
    %c0_i32_1 = arith.constant 0 : i32
    return %c0_i32, %c0_i32_0 : i32, i32
  }
  func.func @transform_3(%arg0: i32) -> (i32, i32) {
    %c0_i32 = arith.constant 0 : i32
    %c0_i32_0 = arith.constant 0 : i32
    %c0_i32_1 = arith.constant 0 : i32
    return %c0_i32, %c0_i32_0 : i32, i32
  }
  func.func @transform_4(%arg0: i32) -> (i32, i32) {
    %c0_i32 = arith.constant 0 : i32
    %c0_i32_0 = arith.constant 0 : i32
    %c0_i32_1 = arith.constant 0 : i32
    return %c0_i32, %c0_i32_0 : i32, i32
  }
  func.func @transform_5(%arg0: i32) -> (i32, i32) {
    %c0_i32 = arith.constant 0 : i32
    %c0_i32_0 = arith.constant 0 : i32
    %c0_i32_1 = arith.constant 0 : i32
    return %c0_i32, %c0_i32_0 : i32, i32
  }
  func.func @transform_6(%arg0: i32) -> (i32, i32, i32) {
    %c0_i32 = arith.constant 0 : i32
    %c0_i32_0 = arith.constant 0 : i32
    %c0_i32_1 = arith.constant 0 : i32
    return %arg0, %c0_i32, %c0_i32_0 : i32, i32, i32
  }
  func.func @transform_7(%arg0: i32) -> (i32, i32, i32) {
    %c0_i32 = arith.constant 0 : i32
    %c0_i32_0 = arith.constant 0 : i32
    %c0_i32_1 = arith.constant 0 : i32
    return %arg0, %c0_i32, %c0_i32_0 : i32, i32, i32
  }
  func.func @transform_8(%arg0: i32) -> (i32, i32, i32) {
    %c0_i32 = arith.constant 0 : i32
    %c0_i32_0 = arith.constant 0 : i32
    %c0_i32_1 = arith.constant 0 : i32
    return %arg0, %c0_i32, %c0_i32_0 : i32, i32, i32
  }
  func.func @transform_9(%arg0: i32) -> (i32, i32, i32) {
    %c0_i32 = arith.constant 0 : i32
    %c0_i32_0 = arith.constant 0 : i32
    %c0_i32_1 = arith.constant 0 : i32
    return %arg0, %c0_i32, %c0_i32_0 : i32, i32, i32
  }
}

</mosaic_0001>

<llo_original>
// kernel: attention_block_forward.5
$region0: #{attention_block_forward.5}
  #allocation0 [shape = 'u32[]', space=smem, size = 0x4, offset = 0x4, fixed_abs, tag = 'smem constant byte address 0x4 - core index']
  #allocation1 [shape = 'u32[144,128]{1,0:T(1,128)}', space=vmem, size = 0x12000, scoped, tag = 'internal scratch']
  #allocation2 [shape = 'f32[1,1]{1,0:T(1,128)S(6)}', space=smem, size = 0x200, scoped, tag = 'scoped memory for attention_block_forward.5']
  #allocation3 [shape = 'f32[1,1]{1,0:T(1,128)S(6)}', space=smem, size = 0x200, scoped, tag = 'scoped memory for attention_block_forward.5']
  %s0 = inlined_call_operand.hbm [shape: bf16[512,4], index: 0, kind: input, shape index: {}]
  %s1 = inlined_call_operand.hbm [shape: f32[512,1], index: 1, kind: input, shape index: {}]
  %s2 = inlined_call_operand.<no memory space> [shape: f32[1,1], index: 2, kind: input, shape index: {}]
  %s3 = inlined_call_operand.<no memory space> [shape: f32[1,1], index: 3, kind: input, shape index: {}]
  %s4 = inlined_call_operand.hbm [shape: f32[512,4], index: 4, kind: output, shape index: {}]
  %s5 = sld [smem:[#allocation0]]
  $region57: #{attention_block_forward.5} parent=0
    _
  %s7 = ssub.s32 1, %s5
  %s8 = scalar_select 0, %s7, %s5
  %9 = sst [smem:[#allocation2]] %s2
  %10 = sst [smem:[#allocation3]] %s3
  $region1: #{attention_block_forward.5} parent=0
    #allocation4 [shape = 'u8[131072]{0}', space=vmem, size = 0x20000, scoped, tag = 'input window, operand 0']
    #allocation5 [shape = 's32[2]{0}', space=sflag, size = 0x8, scoped, tag = 'scoped memory for attention_block_forward.5']
    #allocation6 [shape = 's32[2]{0}', space=sflag, size = 0x8, scoped, tag = 'scoped memory for attention_block_forward.5']
    #allocation7 [shape = 'u8[262144]{0}', space=vmem, size = 0x40000, scoped, tag = 'input window, operand 1']
    #allocation8 [shape = 's32[2]{0}', space=sflag, size = 0x8, scoped, tag = 'scoped memory for attention_block_forward.5']
    #allocation9 [shape = 'u8[262144]{0}', space=vmem, size = 0x40000, scoped, tag = 'output window, operand 0']
    %11 = vsyncpa [#allocation5], 0
    %s12 = scalar_lea.sflag [#allocation5], 1
    %13 = vsyncpa %s12, 0
    %14 = vsyncpa [#allocation8], 0
    %s15 = scalar_lea.sflag [#allocation8], 1
    %16 = vsyncpa %s15, 0
    %17 = vsyncpa [#allocation6], 0
    %s18 = scalar_lea.sflag [#allocation6], 1
    %19 = vsyncpa %s18, 0
    loop: start=0, step=1, limit=4
    $region2: #{attention_block_forward.5} parent=1 // loop_pre_header
      _
    $region3: #{attention_block_forward.5} parent=1 // loop_header
      %s21 = sphi 0, %s25
      %p22 = scmp.ge.s32.totalorder %s21, 4
      %s31 = sphi 0, %s33
      %s34 = sphi 0, %s31
      %s35 = sphi 0, %s34
      %s51 = sphi 0, %s35
      %s57 = sphi 0, %s59
      %s60 = sphi 0, %s57
      %s61 = sphi 0, %s60
      %s77 = sphi 0, %s61
      %s81 = sphi 0, %s81
      %s83 = sphi 0, %s81
      %s84 = sphi 0, %s83
      %s98 = sphi 0, %s84
      %s102 = sphi 0, %s102
      %s104 = sphi 0, %s102
      %s105 = sphi 0, %s104
      %s119 = sphi 0, %s105
      %s125 = sphi 0, %s127
      %s128 = sphi 0, %s125
      %s129 = sphi 0, %s128
      %s145 = sphi 0, %s129
    $region4: #{attention_block_forward.5} parent=1 // loop_header_branch
      %24 = sbr.rel (%p22) target = $region8
    $region5: #{attention_block_forward.5} parent=1 // loop_body
      %s26 = ssub.s32 %s21, 1
      %s27 = ssub.s32 %s21, 2
      %s28 = sadd.s32 %s21, 1
      %s29 = ssub.s32 %s21, %s28
      %p30 = scmp.eq.s32.totalorder %s29, 0
      %s32 = sadd.s32 %s31, 1
      %s33 = scalar_select %p30, %s31, %s32
      %p36 = pneg %p30
      %p37 = scmp.eq.s32.totalorder %s21, 1
      %p38 = por %p36, %p37
      %p39 = scmp.ne.s32.totalorder %s31, %s34
      %p40 = scmp.eq.s32.totalorder %s21, 0
      %p41 = por %p39, %p40
      %p42 = scmp.ne.s32.totalorder %s31, %s34
      %p43 = scmp.eq.s32.totalorder %s26, 1
      %p44 = por %p42, %p43
      %p45 = scmp.ne.s32.totalorder %s34, %s35
      %p46 = scmp.eq.s32.totalorder %s26, 0
      %p47 = por %p45, %p46
      %p48 = scmp.ne.s32.totalorder %s34, %s35
      %p49 = scmp.eq.s32.totalorder %s27, 1
      %p50 = por %p48, %p49
      %p52 = scmp.ne.s32.totalorder %s35, %s51
      %p53 = scmp.eq.s32.totalorder %s27, 0
      %p54 = por %p52, %p53
      %s55 = ssub.s32 %s21, %s28
      %p56 = scmp.eq.s32.totalorder %s55, 0
      %s58 = sadd.s32 %s57, 1
      %s59 = scalar_select %p56, %s57, %s58
      %p62 = pneg %p56
      %p63 = scmp.eq.s32.totalorder %s21, 1
      %p64 = por %p62, %p63
      %p65 = scmp.ne.s32.totalorder %s57, %s60
      %p66 = scmp.eq.s32.totalorder %s21, 0
      %p67 = por %p65, %p66
      %p68 = scmp.ne.s32.totalorder %s57, %s60
      %p69 = scmp.eq.s32.totalorder %s26, 1
      %p70 = por %p68, %p69
      %p71 = scmp.ne.s32.totalorder %s60, %s61
      %p72 = scmp.eq.s32.totalorder %s26, 0
      %p73 = por %p71, %p72
      %p74 = scmp.ne.s32.totalorder %s60, %s61
      %p75 = scmp.eq.s32.totalorder %s27, 1
      %p76 = por %p74, %p75
      %p78 = scmp.ne.s32.totalorder %s61, %s77
      %p79 = scmp.eq.s32.totalorder %s27, 0
      %p80 = por %p78, %p79
      %s82 = sadd.s32 %s81, 1
      %p85 = scmp.eq.s32.totalorder %s21, 1
      %p86 = scmp.ne.s32.totalorder %s81, %s83
      %p87 = scmp.eq.s32.totalorder %s21, 0
      %p88 = por %p86, %p87
      %p89 = scmp.ne.s32.totalorder %s81, %s83
      %p90 = scmp.eq.s32.totalorder %s26, 1
      %p91 = por %p89, %p90
      %p92 = scmp.ne.s32.totalorder %s83, %s84
      %p93 = scmp.eq.s32.totalorder %s26, 0
      %p94 = por %p92, %p93
      %p95 = scmp.ne.s32.totalorder %s83, %s84
      %p96 = scmp.eq.s32.totalorder %s27, 1
      %p97 = por %p95, %p96
      %p99 = scmp.ne.s32.totalorder %s84, %s98
      %p100 = scmp.eq.s32.totalorder %s27, 0
      %p101 = por %p99, %p100
      %s103 = sadd.s32 %s102, 1
      %p106 = scmp.eq.s32.totalorder %s21, 1
      %p107 = scmp.ne.s32.totalorder %s102, %s104
      %p108 = scmp.eq.s32.totalorder %s21, 0
      %p109 = por %p107, %p108
      %p110 = scmp.ne.s32.totalorder %s102, %s104
      %p111 = scmp.eq.s32.totalorder %s26, 1
      %p112 = por %p110, %p111
      %p113 = scmp.ne.s32.totalorder %s104, %s105
      %p114 = scmp.eq.s32.totalorder %s26, 0
      %p115 = por %p113, %p114
      %p116 = scmp.ne.s32.totalorder %s104, %s105
      %p117 = scmp.eq.s32.totalorder %s27, 1
      %p118 = por %p116, %p117
      %p120 = scmp.ne.s32.totalorder %s105, %s119
      %p121 = scmp.eq.s32.totalorder %s27, 0
      %p122 = por %p120, %p121
      %s123 = ssub.s32 %s21, %s28
      %p124 = scmp.eq.s32.totalorder %s123, 0
      %s126 = sadd.s32 %s125, 1
      %s127 = scalar_select %p124, %s125, %s126
      %p130 = pneg %p124
      %p131 = scmp.eq.s32.totalorder %s21, 1
      %p132 = por %p130, %p131
      %p133 = scmp.ne.s32.totalorder %s125, %s128
      %p134 = scmp.eq.s32.totalorder %s21, 0
      %p135 = por %p133, %p134
      %p136 = scmp.ne.s32.totalorder %s125, %s128
      %p137 = scmp.eq.s32.totalorder %s26, 1
      %p138 = por %p136, %p137
      %p139 = scmp.ne.s32.totalorder %s128, %s129
      %p140 = scmp.eq.s32.totalorder %s26, 0
      %p141 = por %p139, %p140
      %p142 = scmp.ne.s32.totalorder %s128, %s129
      %p143 = scmp.eq.s32.totalorder %s27, 1
      %p144 = por %p142, %p143
      %p146 = scmp.ne.s32.totalorder %s129, %s145
      %p147 = scmp.eq.s32.totalorder %s27, 0
      %p148 = por %p146, %p147
      %p149 = scmp.le.s32.totalorder 1, %s21
      %p150 = scmp.lt.s32.totalorder %s21, 3
      %p151 = pnand %p149, %p150
      %p152 = pneg %p151
      // Predicated region
      $region9: #{attention_block_forward.5} parent=5 // pred_check
        _
      $region10: #{attention_block_forward.5} parent=5 // pred_check_branch
        %154 = sbr.rel (%p151) target = $region12
      $region11: #{attention_block_forward.5} parent=5 // pred_region
        %s155 = ssub.s32 %s21, 1
        // Predicated region
        $region13: #{attention_block_forward.5} parent=11 // pred_check
          %p156 = pneg %p94
        $region14: #{attention_block_forward.5} parent=11 // pred_check_branch
          %158 = sbr.rel (%p156) target = $region16
        $region15: #{attention_block_forward.5} parent=11 // pred_region
          _
        $region16: #{attention_block_forward.5} parent=11 // pred_fallthru
          _
        // Predicated region
        $region17: #{attention_block_forward.5} parent=11 // pred_check
          %p159 = pneg %p115
        $region18: #{attention_block_forward.5} parent=11 // pred_check_branch
          %161 = sbr.rel (%p159) target = $region20
        $region19: #{attention_block_forward.5} parent=11 // pred_region
          _
        $region20: #{attention_block_forward.5} parent=11 // pred_fallthru
          _
      $region12: #{attention_block_forward.5} parent=5 // pred_fallthru
        _
      %p162 = scmp.lt.s32.totalorder %s21, 2
      // Predicated region
      $region21: #{attention_block_forward.5} parent=5 // pred_check
        %p163 = pneg %p162
      $region22: #{attention_block_forward.5} parent=5 // pred_check_branch
        %165 = sbr.rel (%p163) target = $region24
      $region23: #{attention_block_forward.5} parent=5 // pred_region
        // Predicated region
        $region25: #{attention_block_forward.5} parent=23 // pred_check
          %p166 = pneg %p41
        $region26: #{attention_block_forward.5} parent=23 // pred_check_branch
          %168 = sbr.rel (%p166) target = $region28
        $region27: #{attention_block_forward.5} parent=23 // pred_region
          %s169 = sand.u32 %s31, 1
          %s170 = scalar_lea.sflag [#allocation5], %s169
          %s171 = sand.u32 %s31, 1
          %s172 = smul.addr %s171, 128
          %s173 = scalar_lea.vmem [#allocation4], %s172
          %s174 = smul.u32 32, %s21
          %s176 = ssub.s32 2048, 2048
          %177 = vsyncadd %s170, %s176
          %s178 = smul.addr %s174, 64
          %s179 = scalar_lea.hbm %s0, %s178
          %s180 = sshll.u32 %s173, 4
          %s181 = int_to_ptr.vmem [resolvable:$true] %s180
          %186 = dma.hbm_to_vmem [thread:$0]  %s179, 2048, %s181, %s170, 64, 64, 4
        $region28: #{attention_block_forward.5} parent=23 // pred_fallthru
          _
        // Predicated region
        $region29: #{attention_block_forward.5} parent=23 // pred_check
          %p187 = pneg %p67
        $region30: #{attention_block_forward.5} parent=23 // pred_check_branch
          %189 = sbr.rel (%p187) target = $region32
        $region31: #{attention_block_forward.5} parent=23 // pred_region
          %s190 = sand.u32 %s57, 1
          %s191 = scalar_lea.sflag [#allocation8], %s190
          %s192 = sand.u32 %s57, 1
          %s193 = smul.addr %s192, 256
          %s194 = scalar_lea.vmem [#allocation7], %s193
          %s195 = smul.u32 32, %s21
          %s197 = ssub.s32 4096, 4096
          %198 = vsyncadd %s191, %s197
          %s199 = smul.addr %s195, 128
          %s200 = scalar_lea.hbm %s1, %s199
          %s201 = sshll.u32 %s194, 4
          %s202 = int_to_ptr.vmem [resolvable:$true] %s201
          %207 = dma.hbm_to_vmem [thread:$0]  %s200, 4096, %s202, %s191, 128, 128, 8
        $region32: #{attention_block_forward.5} parent=23 // pred_fallthru
          _
      $region24: #{attention_block_forward.5} parent=5 // pred_fallthru
        _
      %p208 = scmp.le.s32.totalorder 1, %s21
      %p209 = scmp.lt.s32.totalorder %s21, 3
      %p210 = pnand %p208, %p209
      %p211 = pneg %p210
      // Predicated region
      $region33: #{attention_block_forward.5} parent=5 // pred_check
        _
      $region34: #{attention_block_forward.5} parent=5 // pred_check_branch
        %213 = sbr.rel (%p210) target = $region36
      $region35: #{attention_block_forward.5} parent=5 // pred_region
        %s214 = ssub.s32 %s21, 1
        %s215 = sand.u32 %s34, 1
        %s216 = scalar_lea.sflag [#allocation5], %s215
        %s217 = sand.u32 %s34, 1
        %s218 = smul.addr %s217, 128
        %s219 = scalar_lea.vmem [#allocation4], %s218
        // Predicated region
        $region37: #{attention_block_forward.5} parent=35 // pred_check
          %p220 = pneg %p47
        $region38: #{attention_block_forward.5} parent=35 // pred_check_branch
          %222 = sbr.rel (%p220) target = $region40
        $region39: #{attention_block_forward.5} parent=35 // pred_region
          %223 = dma.done %s216, 2048
        $region40: #{attention_block_forward.5} parent=35 // pred_fallthru
          _
        %s224 = sand.u32 %s60, 1
        %s225 = scalar_lea.sflag [#allocation8], %s224
        %s226 = sand.u32 %s60, 1
        %s227 = smul.addr %s226, 256
        %s228 = scalar_lea.vmem [#allocation7], %s227
        // Predicated region
        $region41: #{attention_block_forward.5} parent=35 // pred_check
          %p229 = pneg %p73
        $region42: #{attention_block_forward.5} parent=35 // pred_check_branch
          %231 = sbr.rel (%p229) target = $region44
        $region43: #{attention_block_forward.5} parent=35 // pred_region
          %232 = dma.done %s225, 4096
        $region44: #{attention_block_forward.5} parent=35 // pred_fallthru
          _
        %s233 = sand.u32 %s34, 1
        %s234 = scalar_lea.sflag [#allocation5], %s233
        %s235 = sand.u32 %s34, 1
        %s236 = smul.addr %s235, 128
        %s237 = scalar_lea.vmem [#allocation4], %s236
        %p238 = pneg %p47
        %p239 = pneg %p44
        %s240 = sand.u32 %s60, 1
        %s241 = scalar_lea.sflag [#allocation8], %s240
        %s242 = sand.u32 %s60, 1
        %s243 = smul.addr %s242, 256
        %s244 = scalar_lea.vmem [#allocation7], %s243
        %p245 = pneg %p73
        %p246 = pneg %p70
        %p247 = pneg %p94
        %p248 = pneg %p91
        %p249 = pneg %p115
        %p250 = pneg %p112
        %p251 = pneg %p141
        %p252 = pneg %p138
        %s253 = sand.u32 %s128, 1
        %s254 = scalar_lea.sflag [#allocation6], %s253
        %s255 = sand.u32 %s128, 1
        %s256 = smul.addr %s255, 256
        %s257 = scalar_lea.vmem [#allocation9], %s256
        %s258 = smul.u32 32, %s26
        %s259 = smul.u32 32, %s26
        %s260 = smul.u32 32, %s26
        %v261 = vld [vmem:[%s228] sm:$0xff]
        %v262 = vld [vmem:[%s228 + $0x8] sm:$0xff]
        %v263 = vld [vmem:[%s228 + $0x10] sm:$0xff]
        %v264 = vld [vmem:[%s228 + $0x18] sm:$0xff]
        %v265 = vld [vmem:[%s228 + $0x20] sm:$0xff]
        %v266 = vld [vmem:[%s228 + $0x28] sm:$0xff]
        %v267 = vld [vmem:[%s228 + $0x30] sm:$0xff]
        %v268 = vld [vmem:[%s228 + $0x38] sm:$0xff]
        %v269 = vld [vmem:[%s228 + $0x40] sm:$0xff]
        %v270 = vld [vmem:[%s228 + $0x48] sm:$0xff]
        %v271 = vld [vmem:[%s228 + $0x50] sm:$0xff]
        %v272 = vld [vmem:[%s228 + $0x58] sm:$0xff]
        %v273 = vld [vmem:[%s228 + $0x60] sm:$0xff]
        %v274 = vld [vmem:[%s228 + $0x68] sm:$0xff]
        %v275 = vld [vmem:[%s228 + $0x70] sm:$0xff]
        %v276 = vld [vmem:[%s228 + $0x78] sm:$0xff]
        %v277 = vld [vmem:[%s228 + $0x80] sm:$0xff]
        %v278 = vld [vmem:[%s228 + $0x88] sm:$0xff]
        %v279 = vld [vmem:[%s228 + $0x90] sm:$0xff]
        %v280 = vld [vmem:[%s228 + $0x98] sm:$0xff]
        %v281 = vld [vmem:[%s228 + $0xa0] sm:$0xff]
        %v282 = vld [vmem:[%s228 + $0xa8] sm:$0xff]
        %v283 = vld [vmem:[%s228 + $0xb0] sm:$0xff]
        %v284 = vld [vmem:[%s228 + $0xb8] sm:$0xff]
        %v285 = vld [vmem:[%s228 + $0xc0] sm:$0xff]
        %v286 = vld [vmem:[%s228 + $0xc8] sm:$0xff]
        %v287 = vld [vmem:[%s228 + $0xd0] sm:$0xff]
        %v288 = vld [vmem:[%s228 + $0xd8] sm:$0xff]
        %v289 = vld [vmem:[%s228 + $0xe0] sm:$0xff]
        %v290 = vld [vmem:[%s228 + $0xe8] sm:$0xff]
        %v291 = vld [vmem:[%s228 + $0xf0] sm:$0xff]
        %v292 = vld [vmem:[%s228 + $0xf8] sm:$0xff]
        %s293 = sld [smem:[#allocation2]]
        %v294 = vstv %s293
        %v295 = vmul.f32 %v261, %v294
        %v296 = vmul.f32 %v262, %v294
        %v297 = vmul.f32 %v263, %v294
        %v298 = vmul.f32 %v264, %v294
        %v299 = vmul.f32 %v265, %v294
        %v300 = vmul.f32 %v266, %v294
        %v301 = vmul.f32 %v267, %v294
        %v302 = vmul.f32 %v268, %v294
        %v303 = vmul.f32 %v269, %v294
        %v304 = vmul.f32 %v270, %v294
        %v305 = vmul.f32 %v271, %v294
        %v306 = vmul.f32 %v272, %v294
        %v307 = vmul.f32 %v273, %v294
        %v308 = vmul.f32 %v274, %v294
        %v309 = vmul.f32 %v275, %v294
        %v310 = vmul.f32 %v276, %v294
        %v311 = vmul.f32 %v277, %v294
        %v312 = vmul.f32 %v278, %v294
        %v313 = vmul.f32 %v279, %v294
        %v314 = vmul.f32 %v280, %v294
        %v315 = vmul.f32 %v281, %v294
        %v316 = vmul.f32 %v282, %v294
        %v317 = vmul.f32 %v283, %v294
        %v318 = vmul.f32 %v284, %v294
        %v319 = vmul.f32 %v285, %v294
        %v320 = vmul.f32 %v286, %v294
        %v321 = vmul.f32 %v287, %v294
        %v322 = vmul.f32 %v288, %v294
        %v323 = vmul.f32 %v289, %v294
        %v324 = vmul.f32 %v290, %v294
        %v325 = vmul.f32 %v291, %v294
        %v326 = vmul.f32 %v292, %v294
        %s327 = sld [smem:[#allocation3]]
        %v328 = vstv %s327
        %v329 = vadd.f32 %v295, %v328
        %v330 = vadd.f32 %v296, %v328
        %v331 = vadd.f32 %v297, %v328
        %v332 = vadd.f32 %v298, %v328
        %v333 = vadd.f32 %v299, %v328
        %v334 = vadd.f32 %v300, %v328
        %v335 = vadd.f32 %v301, %v328
        %v336 = vadd.f32 %v302, %v328
        %v337 = vadd.f32 %v303, %v328
        %v338 = vadd.f32 %v304, %v328
        %v339 = vadd.f32 %v305, %v328
        %v340 = vadd.f32 %v306, %v328
        %v341 = vadd.f32 %v307, %v328
        %v342 = vadd.f32 %v308, %v328
        %v343 = vadd.f32 %v309, %v328
        %v344 = vadd.f32 %v310, %v328
        %v345 = vadd.f32 %v311, %v328
        %v346 = vadd.f32 %v312, %v328
        %v347 = vadd.f32 %v313, %v328
        %v348 = vadd.f32 %v314, %v328
        %v349 = vadd.f32 %v315, %v328
        %v350 = vadd.f32 %v316, %v328
        %v351 = vadd.f32 %v317, %v328
        %v352 = vadd.f32 %v318, %v328
        %v353 = vadd.f32 %v319, %v328
        %v354 = vadd.f32 %v320, %v328
        %v355 = vadd.f32 %v321, %v328
        %v356 = vadd.f32 %v322, %v328
        %v357 = vadd.f32 %v323, %v328
        %v358 = vadd.f32 %v324, %v328
        %v359 = vadd.f32 %v325, %v328
        %v360 = vadd.f32 %v326, %v328
        %v361 = vxor.u32 %v329, 2147483648
        %v362 = vxor.u32 %v330, 2147483648
        %v363 = vxor.u32 %v331, 2147483648
        %v364 = vxor.u32 %v332, 2147483648
        %v365 = vxor.u32 %v333, 2147483648
        %v366 = vxor.u32 %v334, 2147483648
        %v367 = vxor.u32 %v335, 2147483648
        %v368 = vxor.u32 %v336, 2147483648
        %v369 = vxor.u32 %v337, 2147483648
        %v370 = vxor.u32 %v338, 2147483648
        %v371 = vxor.u32 %v339, 2147483648
        %v372 = vxor.u32 %v340, 2147483648
        %v373 = vxor.u32 %v341, 2147483648
        %v374 = vxor.u32 %v342, 2147483648
        %v375 = vxor.u32 %v343, 2147483648
        %v376 = vxor.u32 %v344, 2147483648
        %v377 = vxor.u32 %v345, 2147483648
        %v378 = vxor.u32 %v346, 2147483648
        %v379 = vxor.u32 %v347, 2147483648
        %v380 = vxor.u32 %v348, 2147483648
        %v381 = vxor.u32 %v349, 2147483648
        %v382 = vxor.u32 %v350, 2147483648
        %v383 = vxor.u32 %v351, 2147483648
        %v384 = vxor.u32 %v352, 2147483648
        %v385 = vxor.u32 %v353, 2147483648
        %v386 = vxor.u32 %v354, 2147483648
        %v387 = vxor.u32 %v355, 2147483648
        %v388 = vxor.u32 %v356, 2147483648
        %v389 = vxor.u32 %v357, 2147483648
        %v390 = vxor.u32 %v358, 2147483648
        %v391 = vxor.u32 %v359, 2147483648
        %v392 = vxor.u32 %v360, 2147483648
        %v393 = vmul.f32 %v361, 1.442695
        %v394 = vpow.pop %v393
        %v395 = vmul.f32 %v362, 1.442695
        %v396 = vpow.pop %v395
        %v397 = vmul.f32 %v363, 1.442695
        %v398 = vpow.pop %v397
        %v399 = vmul.f32 %v364, 1.442695
        %v400 = vpow.pop %v399
        %v401 = vmul.f32 %v365, 1.442695
        %v402 = vpow.pop %v401
        %v403 = vmul.f32 %v366, 1.442695
        %v404 = vpow.pop %v403
        %v405 = vmul.f32 %v367, 1.442695
        %v406 = vpow.pop %v405
        %v407 = vmul.f32 %v368, 1.442695
        %v408 = vpow.pop %v407
        %v409 = vmul.f32 %v369, 1.442695
        %v410 = vpow.pop %v409
        %v411 = vmul.f32 %v370, 1.442695
        %v412 = vpow.pop %v411
        %v413 = vmul.f32 %v371, 1.442695
        %v414 = vpow.pop %v413
        %v415 = vmul.f32 %v372, 1.442695
        %v416 = vpow.pop %v415
        %v417 = vmul.f32 %v373, 1.442695
        %v418 = vpow.pop %v417
        %v419 = vmul.f32 %v374, 1.442695
        %v420 = vpow.pop %v419
        %v421 = vmul.f32 %v375, 1.442695
        %v422 = vpow.pop %v421
        %v423 = vmul.f32 %v376, 1.442695
        %v424 = vpow.pop %v423
        %v425 = vmul.f32 %v377, 1.442695
        %v426 = vpow.pop %v425
        %v427 = vmul.f32 %v378, 1.442695
        %v428 = vpow.pop %v427
        %v429 = vmul.f32 %v379, 1.442695
        %v430 = vpow.pop %v429
        %v431 = vmul.f32 %v380, 1.442695
        %v432 = vpow.pop %v431
        %v433 = vmul.f32 %v381, 1.442695
        %v434 = vpow.pop %v433
        %v435 = vmul.f32 %v382, 1.442695
        %v436 = vpow.pop %v435
        %v437 = vmul.f32 %v383, 1.442695
        %v438 = vpow.pop %v437
        %v439 = vmul.f32 %v384, 1.442695
        %v440 = vpow.pop %v439
        %v441 = vmul.f32 %v385, 1.442695
        %v442 = vpow.pop %v441
        %v443 = vmul.f32 %v386, 1.442695
        %v444 = vpow.pop %v443
        %v445 = vmul.f32 %v387, 1.442695
        %v446 = vpow.pop %v445
        %v447 = vmul.f32 %v388, 1.442695
        %v448 = vpow.pop %v447
        %v449 = vmul.f32 %v389, 1.442695
        %v450 = vpow.pop %v449
        %v451 = vmul.f32 %v390, 1.442695
        %v452 = vpow.pop %v451
        %v453 = vmul.f32 %v391, 1.442695
        %v454 = vpow.pop %v453
        %v455 = vmul.f32 %v392, 1.442695
        %v456 = vpow.pop %v455
        %v457 = vadd.f32 %v394, 1.0
        %v458 = vadd.f32 %v396, 1.0
        %v459 = vadd.f32 %v398, 1.0
        %v460 = vadd.f32 %v400, 1.0
        %v461 = vadd.f32 %v402, 1.0
        %v462 = vadd.f32 %v404, 1.0
        %v463 = vadd.f32 %v406, 1.0
        %v464 = vadd.f32 %v408, 1.0
        %v465 = vadd.f32 %v410, 1.0
        %v466 = vadd.f32 %v412, 1.0
        %v467 = vadd.f32 %v414, 1.0
        %v468 = vadd.f32 %v416, 1.0
        %v469 = vadd.f32 %v418, 1.0
        %v470 = vadd.f32 %v420, 1.0
        %v471 = vadd.f32 %v422, 1.0
        %v472 = vadd.f32 %v424, 1.0
        %v473 = vadd.f32 %v426, 1.0
        %v474 = vadd.f32 %v428, 1.0
        %v475 = vadd.f32 %v430, 1.0
        %v476 = vadd.f32 %v432, 1.0
        %v477 = vadd.f32 %v434, 1.0
        %v478 = vadd.f32 %v436, 1.0
        %v479 = vadd.f32 %v438, 1.0
        %v480 = vadd.f32 %v440, 1.0
        %v481 = vadd.f32 %v442, 1.0
        %v482 = vadd.f32 %v444, 1.0
        %v483 = vadd.f32 %v446, 1.0
        %v484 = vadd.f32 %v448, 1.0
        %v485 = vadd.f32 %v450, 1.0
        %v486 = vadd.f32 %v452, 1.0
        %v487 = vadd.f32 %v454, 1.0
        %v488 = vadd.f32 %v456, 1.0
        %v489 = vrcp.pop %v457
        %v490 = vmul.f32 1.0, %v489
        %v491 = vrcp.pop %v458
        %v492 = vmul.f32 1.0, %v491
        %v493 = vrcp.pop %v459
        %v494 = vmul.f32 1.0, %v493
        %v495 = vrcp.pop %v460
        %v496 = vmul.f32 1.0, %v495
        %v497 = vrcp.pop %v461
        %v498 = vmul.f32 1.0, %v497
        %v499 = vrcp.pop %v462
        %v500 = vmul.f32 1.0, %v499
        %v501 = vrcp.pop %v463
        %v502 = vmul.f32 1.0, %v501
        %v503 = vrcp.pop %v464
        %v504 = vmul.f32 1.0, %v503
        %v505 = vrcp.pop %v465
        %v506 = vmul.f32 1.0, %v505
        %v507 = vrcp.pop %v466
        %v508 = vmul.f32 1.0, %v507
        %v509 = vrcp.pop %v467
        %v510 = vmul.f32 1.0, %v509
        %v511 = vrcp.pop %v468
        %v512 = vmul.f32 1.0, %v511
        %v513 = vrcp.pop %v469
        %v514 = vmul.f32 1.0, %v513
        %v515 = vrcp.pop %v470
        %v516 = vmul.f32 1.0, %v515
        %v517 = vrcp.pop %v471
        %v518 = vmul.f32 1.0, %v517
        %v519 = vrcp.pop %v472
        %v520 = vmul.f32 1.0, %v519
        %v521 = vrcp.pop %v473
        %v522 = vmul.f32 1.0, %v521
        %v523 = vrcp.pop %v474
        %v524 = vmul.f32 1.0, %v523
        %v525 = vrcp.pop %v475
        %v526 = vmul.f32 1.0, %v525
        %v527 = vrcp.pop %v476
        %v528 = vmul.f32 1.0, %v527
        %v529 = vrcp.pop %v477
        %v530 = vmul.f32 1.0, %v529
        %v531 = vrcp.pop %v478
        %v532 = vmul.f32 1.0, %v531
        %v533 = vrcp.pop %v479
        %v534 = vmul.f32 1.0, %v533
        %v535 = vrcp.pop %v480
        %v536 = vmul.f32 1.0, %v535
        %v537 = vrcp.pop %v481
        %v538 = vmul.f32 1.0, %v537
        %v539 = vrcp.pop %v482
        %v540 = vmul.f32 1.0, %v539
        %v541 = vrcp.pop %v483
        %v542 = vmul.f32 1.0, %v541
        %v543 = vrcp.pop %v484
        %v544 = vmul.f32 1.0, %v543
        %v545 = vrcp.pop %v485
        %v546 = vmul.f32 1.0, %v545
        %v547 = vrcp.pop %v486
        %v548 = vmul.f32 1.0, %v547
        %v549 = vrcp.pop %v487
        %v550 = vmul.f32 1.0, %v549
        %v551 = vrcp.pop %v488
        %v552 = vmul.f32 1.0, %v551
        %v553 = vld [vmem:[%s219] sm:$0xf]
        %v554 = vld [vmem:[%s219 + $0x4] sm:$0xf]
        %v555 = vld [vmem:[%s219 + $0x8] sm:$0xf]
        %v556 = vld [vmem:[%s219 + $0xc] sm:$0xf]
        %v557 = vld [vmem:[%s219 + $0x10] sm:$0xf]
        %v558 = vld [vmem:[%s219 + $0x14] sm:$0xf]
        %v559 = vld [vmem:[%s219 + $0x18] sm:$0xf]
        %v560 = vld [vmem:[%s219 + $0x1c] sm:$0xf]
        %v561 = vld [vmem:[%s219 + $0x20] sm:$0xf]
        %v562 = vld [vmem:[%s219 + $0x24] sm:$0xf]
        %v563 = vld [vmem:[%s219 + $0x28] sm:$0xf]
        %v564 = vld [vmem:[%s219 + $0x2c] sm:$0xf]
        %v565 = vld [vmem:[%s219 + $0x30] sm:$0xf]
        %v566 = vld [vmem:[%s219 + $0x34] sm:$0xf]
        %v567 = vld [vmem:[%s219 + $0x38] sm:$0xf]
        %v568 = vld [vmem:[%s219 + $0x3c] sm:$0xf]
        %v569 = vld [vmem:[%s219 + $0x40] sm:$0xf]
        %v570 = vld [vmem:[%s219 + $0x44] sm:$0xf]
        %v571 = vld [vmem:[%s219 + $0x48] sm:$0xf]
        %v572 = vld [vmem:[%s219 + $0x4c] sm:$0xf]
        %v573 = vld [vmem:[%s219 + $0x50] sm:$0xf]
        %v574 = vld [vmem:[%s219 + $0x54] sm:$0xf]
        %v575 = vld [vmem:[%s219 + $0x58] sm:$0xf]
        %v576 = vld [vmem:[%s219 + $0x5c] sm:$0xf]
        %v577 = vld [vmem:[%s219 + $0x60] sm:$0xf]
        %v578 = vld [vmem:[%s219 + $0x64] sm:$0xf]
        %v579 = vld [vmem:[%s219 + $0x68] sm:$0xf]
        %v580 = vld [vmem:[%s219 + $0x6c] sm:$0xf]
        %v581 = vld [vmem:[%s219 + $0x70] sm:$0xf]
        %v582 = vld [vmem:[%s219 + $0x74] sm:$0xf]
        %v583 = vld [vmem:[%s219 + $0x78] sm:$0xf]
        %v584 = vld [vmem:[%s219 + $0x7c] sm:$0xf]
        %v585 = vunpack.c.l.bf16 %v553
        %v586 = vunpack.c.l.bf16 %v554
        %v587 = vunpack.c.l.bf16 %v555
        %v588 = vunpack.c.l.bf16 %v556
        %v589 = vunpack.c.l.bf16 %v557
        %v590 = vunpack.c.l.bf16 %v558
        %v591 = vunpack.c.l.bf16 %v559
        %v592 = vunpack.c.l.bf16 %v560
        %v593 = vunpack.c.l.bf16 %v561
        %v594 = vunpack.c.l.bf16 %v562
        %v595 = vunpack.c.l.bf16 %v563
        %v596 = vunpack.c.l.bf16 %v564
        %v597 = vunpack.c.l.bf16 %v565
        %v598 = vunpack.c.l.bf16 %v566
        %v599 = vunpack.c.l.bf16 %v567
        %v600 = vunpack.c.l.bf16 %v568
        %v601 = vunpack.c.l.bf16 %v569
        %v602 = vunpack.c.l.bf16 %v570
        %v603 = vunpack.c.l.bf16 %v571
        %v604 = vunpack.c.l.bf16 %v572
        %v605 = vunpack.c.l.bf16 %v573
        %v606 = vunpack.c.l.bf16 %v574
        %v607 = vunpack.c.l.bf16 %v575
        %v608 = vunpack.c.l.bf16 %v576
        %v609 = vunpack.c.l.bf16 %v577
        %v610 = vunpack.c.l.bf16 %v578
        %v611 = vunpack.c.l.bf16 %v579
        %v612 = vunpack.c.l.bf16 %v580
        %v613 = vunpack.c.l.bf16 %v581
        %v614 = vunpack.c.l.bf16 %v582
        %v615 = vunpack.c.l.bf16 %v583
        %v616 = vunpack.c.l.bf16 %v584
        %618 = vset.pattern.permute.xlu0 0
        %619 = vperm.xlu0 %618, %v490
        %v620 = vpop.permute.xlu0 %619
        %623 = vset.pattern.permute.xlu0 0
        %624 = vperm.xlu0 %623, %v492
        %v625 = vpop.permute.xlu0 %624
        %628 = vset.pattern.permute.xlu0 0
        %629 = vperm.xlu0 %628, %v494
        %v630 = vpop.permute.xlu0 %629
        %633 = vset.pattern.permute.xlu0 0
        %634 = vperm.xlu0 %633, %v496
        %v635 = vpop.permute.xlu0 %634
        %638 = vset.pattern.permute.xlu0 0
        %639 = vperm.xlu0 %638, %v498
        %v640 = vpop.permute.xlu0 %639
        %643 = vset.pattern.permute.xlu0 0
        %644 = vperm.xlu0 %643, %v500
        %v645 = vpop.permute.xlu0 %644
        %648 = vset.pattern.permute.xlu0 0
        %649 = vperm.xlu0 %648, %v502
        %v650 = vpop.permute.xlu0 %649
        %653 = vset.pattern.permute.xlu0 0
        %654 = vperm.xlu0 %653, %v504
        %v655 = vpop.permute.xlu0 %654
        %658 = vset.pattern.permute.xlu0 0
        %659 = vperm.xlu0 %658, %v506
        %v660 = vpop.permute.xlu0 %659
        %663 = vset.pattern.permute.xlu0 0
        %664 = vperm.xlu0 %663, %v508
        %v665 = vpop.permute.xlu0 %664
        %668 = vset.pattern.permute.xlu0 0
        %669 = vperm.xlu0 %668, %v510
        %v670 = vpop.permute.xlu0 %669
        %673 = vset.pattern.permute.xlu0 0
        %674 = vperm.xlu0 %673, %v512
        %v675 = vpop.permute.xlu0 %674
        %678 = vset.pattern.permute.xlu0 0
        %679 = vperm.xlu0 %678, %v514
        %v680 = vpop.permute.xlu0 %679
        %683 = vset.pattern.permute.xlu0 0
        %684 = vperm.xlu0 %683, %v516
        %v685 = vpop.permute.xlu0 %684
        %688 = vset.pattern.permute.xlu0 0
        %689 = vperm.xlu0 %688, %v518
        %v690 = vpop.permute.xlu0 %689
        %693 = vset.pattern.permute.xlu0 0
        %694 = vperm.xlu0 %693, %v520
        %v695 = vpop.permute.xlu0 %694
        %698 = vset.pattern.permute.xlu0 0
        %699 = vperm.xlu0 %698, %v522
        %v700 = vpop.permute.xlu0 %699
        %703 = vset.pattern.permute.xlu0 0
        %704 = vperm.xlu0 %703, %v524
        %v705 = vpop.permute.xlu0 %704
        %708 = vset.pattern.permute.xlu0 0
        %709 = vperm.xlu0 %708, %v526
        %v710 = vpop.permute.xlu0 %709
        %713 = vset.pattern.permute.xlu0 0
        %714 = vperm.xlu0 %713, %v528
        %v715 = vpop.permute.xlu0 %714
        %718 = vset.pattern.permute.xlu0 0
        %719 = vperm.xlu0 %718, %v530
        %v720 = vpop.permute.xlu0 %719
        %723 = vset.pattern.permute.xlu0 0
        %724 = vperm.xlu0 %723, %v532
        %v725 = vpop.permute.xlu0 %724
        %728 = vset.pattern.permute.xlu0 0
        %729 = vperm.xlu0 %728, %v534
        %v730 = vpop.permute.xlu0 %729
        %733 = vset.pattern.permute.xlu0 0
        %734 = vperm.xlu0 %733, %v536
        %v735 = vpop.permute.xlu0 %734
        %738 = vset.pattern.permute.xlu0 0
        %739 = vperm.xlu0 %738, %v538
        %v740 = vpop.permute.xlu0 %739
        %743 = vset.pattern.permute.xlu0 0
        %744 = vperm.xlu0 %743, %v540
        %v745 = vpop.permute.xlu0 %744
        %748 = vset.pattern.permute.xlu0 0
        %749 = vperm.xlu0 %748, %v542
        %v750 = vpop.permute.xlu0 %749
        %753 = vset.pattern.permute.xlu0 0
        %754 = vperm.xlu0 %753, %v544
        %v755 = vpop.permute.xlu0 %754
        %758 = vset.pattern.permute.xlu0 0
        %759 = vperm.xlu0 %758, %v546
        %v760 = vpop.permute.xlu0 %759
        %763 = vset.pattern.permute.xlu0 0
        %764 = vperm.xlu0 %763, %v548
        %v765 = vpop.permute.xlu0 %764
        %768 = vset.pattern.permute.xlu0 0
        %769 = vperm.xlu0 %768, %v550
        %v770 = vpop.permute.xlu0 %769
        %773 = vset.pattern.permute.xlu0 0
        %774 = vperm.xlu0 %773, %v552
        %v775 = vpop.permute.xlu0 %774
        %v777 = vmul.f32 %v585, %v620
        %v778 = vmul.f32 %v586, %v625
        %v779 = vmul.f32 %v587, %v630
        %v780 = vmul.f32 %v588, %v635
        %v781 = vmul.f32 %v589, %v640
        %v782 = vmul.f32 %v590, %v645
        %v783 = vmul.f32 %v591, %v650
        %v784 = vmul.f32 %v592, %v655
        %v785 = vmul.f32 %v593, %v660
        %v786 = vmul.f32 %v594, %v665
        %v787 = vmul.f32 %v595, %v670
        %v788 = vmul.f32 %v596, %v675
        %v789 = vmul.f32 %v597, %v680
        %v790 = vmul.f32 %v598, %v685
        %v791 = vmul.f32 %v599, %v690
        %v792 = vmul.f32 %v600, %v695
        %v793 = vmul.f32 %v601, %v700
        %v794 = vmul.f32 %v602, %v705
        %v795 = vmul.f32 %v603, %v710
        %v796 = vmul.f32 %v604, %v715
        %v797 = vmul.f32 %v605, %v720
        %v798 = vmul.f32 %v606, %v725
        %v799 = vmul.f32 %v607, %v730
        %v800 = vmul.f32 %v608, %v735
        %v801 = vmul.f32 %v609, %v740
        %v802 = vmul.f32 %v610, %v745
        %v803 = vmul.f32 %v611, %v750
        %v804 = vmul.f32 %v612, %v755
        %v805 = vmul.f32 %v613, %v760
        %v806 = vmul.f32 %v614, %v765
        %v807 = vmul.f32 %v615, %v770
        %v808 = vmul.f32 %v616, %v775
        %vm809 = vcmask 31744
        %810 = vst.msk [vmem:[%s257] sm:$0xff] %vm809, %v777
        %811 = vst.msk [vmem:[%s257 + $0x8] sm:$0xff] %vm809, %v778
        %812 = vst.msk [vmem:[%s257 + $0x10] sm:$0xff] %vm809, %v779
        %813 = vst.msk [vmem:[%s257 + $0x18] sm:$0xff] %vm809, %v780
        %814 = vst.msk [vmem:[%s257 + $0x20] sm:$0xff] %vm809, %v781
        %815 = vst.msk [vmem:[%s257 + $0x28] sm:$0xff] %vm809, %v782
        %816 = vst.msk [vmem:[%s257 + $0x30] sm:$0xff] %vm809, %v783
        %817 = vst.msk [vmem:[%s257 + $0x38] sm:$0xff] %vm809, %v784
        %818 = vst.msk [vmem:[%s257 + $0x40] sm:$0xff] %vm809, %v785
        %819 = vst.msk [vmem:[%s257 + $0x48] sm:$0xff] %vm809, %v786
        %820 = vst.msk [vmem:[%s257 + $0x50] sm:$0xff] %vm809, %v787
        %821 = vst.msk [vmem:[%s257 + $0x58] sm:$0xff] %vm809, %v788
        %822 = vst.msk [vmem:[%s257 + $0x60] sm:$0xff] %vm809, %v789
        %823 = vst.msk [vmem:[%s257 + $0x68] sm:$0xff] %vm809, %v790
        %824 = vst.msk [vmem:[%s257 + $0x70] sm:$0xff] %vm809, %v791
        %825 = vst.msk [vmem:[%s257 + $0x78] sm:$0xff] %vm809, %v792
        %826 = vst.msk [vmem:[%s257 + $0x80] sm:$0xff] %vm809, %v793
        %827 = vst.msk [vmem:[%s257 + $0x88] sm:$0xff] %vm809, %v794
        %828 = vst.msk [vmem:[%s257 + $0x90] sm:$0xff] %vm809, %v795
        %829 = vst.msk [vmem:[%s257 + $0x98] sm:$0xff] %vm809, %v796
        %830 = vst.msk [vmem:[%s257 + $0xa0] sm:$0xff] %vm809, %v797
        %831 = vst.msk [vmem:[%s257 + $0xa8] sm:$0xff] %vm809, %v798
        %832 = vst.msk [vmem:[%s257 + $0xb0] sm:$0xff] %vm809, %v799
        %833 = vst.msk [vmem:[%s257 + $0xb8] sm:$0xff] %vm809, %v800
        %834 = vst.msk [vmem:[%s257 + $0xc0] sm:$0xff] %vm809, %v801
        %835 = vst.msk [vmem:[%s257 + $0xc8] sm:$0xff] %vm809, %v802
        %836 = vst.msk [vmem:[%s257 + $0xd0] sm:$0xff] %vm809, %v803
        %837 = vst.msk [vmem:[%s257 + $0xd8] sm:$0xff] %vm809, %v804
        %838 = vst.msk [vmem:[%s257 + $0xe0] sm:$0xff] %vm809, %v805
        %839 = vst.msk [vmem:[%s257 + $0xe8] sm:$0xff] %vm809, %v806
        %840 = vst.msk [vmem:[%s257 + $0xf0] sm:$0xff] %vm809, %v807
        %841 = vst.msk [vmem:[%s257 + $0xf8] sm:$0xff] %vm809, %v808
        %s842 = sand.u32 %s128, 1
        %s843 = scalar_lea.sflag [#allocation6], %s842
        %s844 = sand.u32 %s128, 1
        %s845 = smul.addr %s844, 256
        %s846 = scalar_lea.vmem [#allocation9], %s845
        // Predicated region
        $region45: #{attention_block_forward.5} parent=35 // pred_check
          %p847 = pneg %p138
        $region46: #{attention_block_forward.5} parent=35 // pred_check_branch
          %849 = sbr.rel (%p847) target = $region48
        $region47: #{attention_block_forward.5} parent=35 // pred_region
          %s850 = smul.u32 32, %s26
          %s852 = ssub.s32 4096, 4096
          %853 = vsyncadd %s843, %s852
          %s854 = smul.addr %s850, 128
          %s855 = scalar_lea.hbm %s4, %s854
          %s856 = sshll.u32 %s846, 4
          %s857 = int_to_ptr.vmem [resolvable:$true] %s856
          %862 = dma.vmem_to_hbm [thread:$0]  %s857, 4096, %s855, %s843, 128, 128, 8
        $region48: #{attention_block_forward.5} parent=35 // pred_fallthru
          _
      $region36: #{attention_block_forward.5} parent=5 // pred_fallthru
        _
      %p863 = scmp.le.s32.totalorder 2, %s21
      // Predicated region
      $region49: #{attention_block_forward.5} parent=5 // pred_check
        %p864 = pneg %p863
      $region50: #{attention_block_forward.5} parent=5 // pred_check_branch
        %866 = sbr.rel (%p864) target = $region52
      $region51: #{attention_block_forward.5} parent=5 // pred_region
        %s867 = ssub.s32 %s21, 2
        // Predicated region
        $region53: #{attention_block_forward.5} parent=51 // pred_check
          %p868 = pneg %p144
        $region54: #{attention_block_forward.5} parent=51 // pred_check_branch
          %870 = sbr.rel (%p868) target = $region56
        $region55: #{attention_block_forward.5} parent=51 // pred_region
          %s871 = sand.u32 %s129, 1
          %s872 = scalar_lea.sflag [#allocation6], %s871
          %s873 = sand.u32 %s129, 1
          %s874 = smul.addr %s873, 256
          %s875 = scalar_lea.vmem [#allocation9], %s874
          %876 = dma.done %s872, 4096
        $region56: #{attention_block_forward.5} parent=51 // pred_fallthru
          _
      $region52: #{attention_block_forward.5} parent=5 // pred_fallthru
        _
    $region6: #{attention_block_forward.5} parent=1 // loop_footer
      %s25 = sadd.s32 1, %s21
    $region7: #{attention_block_forward.5} parent=1 // loop_footer_branch
      %20 = sbr.rel target = $region3
    $region8: #{attention_block_forward.5} parent=1 // loop_exit
      _
    %877 = vsyncpa [#allocation5], 1
    %s878 = scalar_lea.sflag [#allocation5], 1
    %879 = vsyncpa %s878, 1
    %880 = vsyncpa [#allocation8], 1
    %s881 = scalar_lea.sflag [#allocation8], 1
    %882 = vsyncpa %s881, 1
    %883 = vsyncpa [#allocation6], 1
    %s884 = scalar_lea.sflag [#allocation6], 1
    %885 = vsyncpa %s884, 1

// kernel: attention_block_forward.3
$region0: #{attention_block_forward.3}
  #allocation0 [shape = 'u32[]', space=smem, size = 0x4, offset = 0x4, fixed_abs, tag = 'smem constant byte address 0x4 - core index']
  #allocation1 [shape = 'u32[144,128]{1,0:T(1,128)}', space=vmem, size = 0x12000, scoped, tag = 'internal scratch']
  %s0 = inlined_call_operand.hbm [shape: bf16[512,128], index: 0, kind: input, shape index: {}]
  %s1 = inlined_call_operand.hbm [shape: bf16[512,128], index: 1, kind: input, shape index: {}]
  %s2 = inlined_call_operand.hbm [shape: bf16[128,128], index: 2, kind: input, shape index: {}]
  %s3 = inlined_call_operand.hbm [shape: bf16[128,128], index: 3, kind: input, shape index: {}]
  %s4 = inlined_call_operand.hbm [shape: f32[1,128], index: 4, kind: input, shape index: {}]
  %s5 = inlined_call_operand.hbm [shape: f32[1,128], index: 5, kind: input, shape index: {}]
  %s6 = inlined_call_operand.hbm [shape: f32[2,1,128], index: 6, kind: output, shape index: {0}]
  %s7 = inlined_call_operand.hbm [shape: f32[2,1,128], index: 7, kind: output, shape index: {1}]
  %s8 = inlined_call_operand.hbm [shape: f32[2,1,128], index: 8, kind: output, shape index: {2}]
  %s9 = inlined_call_operand.hbm [shape: f32[2,1,128], index: 9, kind: output, shape index: {3}]
  %10 = xla_tuple %s6, %s7, %s8, %s9
  %s11 = sld [smem:[#allocation0]]
  $region105: #{attention_block_forward.3} parent=0
    _
  %s13 = ssub.s32 1, %s11
  %s14 = scalar_select 0, %s13, %s11
  $region1: #{attention_block_forward.3} parent=0
    #allocation2 [shape = 'u8[131072]{0}', space=vmem, size = 0x20000, scoped, tag = 'input window, operand 0']
    #allocation3 [shape = 's32[2]{0}', space=sflag, size = 0x8, scoped, tag = 'scoped memory for attention_block_forward.3']
    #allocation4 [shape = 's32[2]{0}', space=sflag, size = 0x8, scoped, tag = 'scoped memory for attention_block_forward.3']
    #allocation5 [shape = 'u8[131072]{0}', space=vmem, size = 0x20000, scoped, tag = 'input window, operand 1']
    #allocation6 [shape = 's32[2]{0}', space=sflag, size = 0x8, scoped, tag = 'scoped memory for attention_block_forward.3']
    #allocation7 [shape = 'u8[32768]{0}', space=vmem, size = 0x8000, scoped, tag = 'input window, operand 2, single buffered']
    #allocation8 [shape = 'u8[32768]{0}', space=vmem, size = 0x8000, scoped, tag = 'input window, operand 3, single buffered']
    #allocation9 [shape = 's32[1]{0}', space=sflag, size = 0x4, scoped, tag = 'scoped memory for attention_block_forward.3']
    #allocation10 [shape = 'u8[512]{0}', space=vmem, size = 0x400, scoped, tag = 'input window, operand 4, single buffered']
    #allocation11 [shape = 'u8[512]{0}', space=vmem, size = 0x400, scoped, tag = 'input window, operand 5, single buffered']
    #allocation12 [shape = 's32[1]{0}', space=sflag, size = 0x4, scoped, tag = 'scoped memory for attention_block_forward.3']
    #allocation13 [shape = 'u8[1024]{0}', space=vmem, size = 0x400, scoped, tag = 'output window, operand 0']
    #allocation14 [shape = 'u8[1024]{0}', space=vmem, size = 0x400, scoped, tag = 'output window, operand 1']
    #allocation15 [shape = 's32[2]{0}', space=sflag, size = 0x8, scoped, tag = 'scoped memory for attention_block_forward.3']
    #allocation16 [shape = 'u8[1024]{0}', space=vmem, size = 0x400, scoped, tag = 'output window, operand 2']
    #allocation17 [shape = 'u8[1024]{0}', space=vmem, size = 0x400, scoped, tag = 'output window, operand 3']
    #allocation18 [shape = 's32[2]{0}', space=sflag, size = 0x8, scoped, tag = 'scoped memory for attention_block_forward.3']
    %15 = vsyncpa [#allocation3], 0
    %s16 = scalar_lea.sflag [#allocation3], 1
    %17 = vsyncpa %s16, 0
    %18 = vsyncpa [#allocation6], 0
    %s19 = scalar_lea.sflag [#allocation6], 1
    %20 = vsyncpa %s19, 0
    %21 = vsyncpa [#allocation9], 0
    %22 = vsyncpa [#allocation12], 0
    %23 = vsyncpa [#allocation4], 0
    %s24 = scalar_lea.sflag [#allocation4], 1
    %25 = vsyncpa %s24, 0
    %26 = vsyncpa [#allocation15], 0
    %s27 = scalar_lea.sflag [#allocation15], 1
    %28 = vsyncpa %s27, 0
    %29 = vsyncpa [#allocation18], 0
    %s30 = scalar_lea.sflag [#allocation18], 1
    %31 = vsyncpa %s30, 0
    loop: start=0, step=1, limit=4
    $region2: #{attention_block_forward.3} parent=1 // loop_pre_header
      _
    $region3: #{attention_block_forward.3} parent=1 // loop_header
      %s33 = sphi 0, %s37
      %p34 = scmp.ge.s32.totalorder %s33, 4
      %s43 = sphi 0, %s45
      %s46 = sphi 0, %s43
      %s47 = sphi 0, %s46
      %s63 = sphi 0, %s47
      %s69 = sphi 0, %s71
      %s72 = sphi 0, %s69
      %s73 = sphi 0, %s72
      %s89 = sphi 0, %s73
      %s93 = sphi 0, %s93
      %s95 = sphi 0, %s93
      %s96 = sphi 0, %s95
      %s110 = sphi 0, %s96
      %s114 = sphi 0, %s114
      %s116 = sphi 0, %s114
      %s117 = sphi 0, %s116
      %s131 = sphi 0, %s117
      %s135 = sphi 0, %s135
      %s137 = sphi 0, %s135
      %s138 = sphi 0, %s137
      %s152 = sphi 0, %s138
      %s156 = sphi 0, %s156
      %s158 = sphi 0, %s156
      %s159 = sphi 0, %s158
      %s173 = sphi 0, %s159
      %s179 = sphi 0, %s181
      %s182 = sphi 0, %s179
      %s183 = sphi 0, %s182
      %s199 = sphi 0, %s183
      %s205 = sphi 0, %s207
      %s208 = sphi 0, %s205
      %s209 = sphi 0, %s208
      %s225 = sphi 0, %s209
      %s231 = sphi 0, %s233
      %s234 = sphi 0, %s231
      %s235 = sphi 0, %s234
      %s251 = sphi 0, %s235
      %s257 = sphi 0, %s259
      %s260 = sphi 0, %s257
      %s261 = sphi 0, %s260
      %s277 = sphi 0, %s261
    $region4: #{attention_block_forward.3} parent=1 // loop_header_branch
      %36 = sbr.rel (%p34) target = $region8
    $region5: #{attention_block_forward.3} parent=1 // loop_body
      %s38 = ssub.s32 %s33, 1
      %s39 = ssub.s32 %s33, 2
      %s40 = sadd.s32 %s33, 1
      %s41 = ssub.s32 %s33, %s40
      %p42 = scmp.eq.s32.totalorder %s41, 0
      %s44 = sadd.s32 %s43, 1
      %s45 = scalar_select %p42, %s43, %s44
      %p48 = pneg %p42
      %p49 = scmp.eq.s32.totalorder %s33, 1
      %p50 = por %p48, %p49
      %p51 = scmp.ne.s32.totalorder %s43, %s46
      %p52 = scmp.eq.s32.totalorder %s33, 0
      %p53 = por %p51, %p52
      %p54 = scmp.ne.s32.totalorder %s43, %s46
      %p55 = scmp.eq.s32.totalorder %s38, 1
      %p56 = por %p54, %p55
      %p57 = scmp.ne.s32.totalorder %s46, %s47
      %p58 = scmp.eq.s32.totalorder %s38, 0
      %p59 = por %p57, %p58
      %p60 = scmp.ne.s32.totalorder %s46, %s47
      %p61 = scmp.eq.s32.totalorder %s39, 1
      %p62 = por %p60, %p61
      %p64 = scmp.ne.s32.totalorder %s47, %s63
      %p65 = scmp.eq.s32.totalorder %s39, 0
      %p66 = por %p64, %p65
      %s67 = ssub.s32 %s33, %s40
      %p68 = scmp.eq.s32.totalorder %s67, 0
      %s70 = sadd.s32 %s69, 1
      %s71 = scalar_select %p68, %s69, %s70
      %p74 = pneg %p68
      %p75 = scmp.eq.s32.totalorder %s33, 1
      %p76 = por %p74, %p75
      %p77 = scmp.ne.s32.totalorder %s69, %s72
      %p78 = scmp.eq.s32.totalorder %s33, 0
      %p79 = por %p77, %p78
      %p80 = scmp.ne.s32.totalorder %s69, %s72
      %p81 = scmp.eq.s32.totalorder %s38, 1
      %p82 = por %p80, %p81
      %p83 = scmp.ne.s32.totalorder %s72, %s73
      %p84 = scmp.eq.s32.totalorder %s38, 0
      %p85 = por %p83, %p84
      %p86 = scmp.ne.s32.totalorder %s72, %s73
      %p87 = scmp.eq.s32.totalorder %s39, 1
      %p88 = por %p86, %p87
      %p90 = scmp.ne.s32.totalorder %s73, %s89
      %p91 = scmp.eq.s32.totalorder %s39, 0
      %p92 = por %p90, %p91
      %s94 = sadd.s32 %s93, 1
      %p97 = scmp.eq.s32.totalorder %s33, 1
      %p98 = scmp.ne.s32.totalorder %s93, %s95
      %p99 = scmp.eq.s32.totalorder %s33, 0
      %p100 = por %p98, %p99
      %p101 = scmp.ne.s32.totalorder %s93, %s95
      %p102 = scmp.eq.s32.totalorder %s38, 1
      %p103 = por %p101, %p102
      %p104 = scmp.ne.s32.totalorder %s95, %s96
      %p105 = scmp.eq.s32.totalorder %s38, 0
      %p106 = por %p104, %p105
      %p107 = scmp.ne.s32.totalorder %s95, %s96
      %p108 = scmp.eq.s32.totalorder %s39, 1
      %p109 = por %p107, %p108
      %p111 = scmp.ne.s32.totalorder %s96, %s110
      %p112 = scmp.eq.s32.totalorder %s39, 0
      %p113 = por %p111, %p112
      %s115 = sadd.s32 %s114, 1
      %p118 = scmp.eq.s32.totalorder %s33, 1
      %p119 = scmp.ne.s32.totalorder %s114, %s116
      %p120 = scmp.eq.s32.totalorder %s33, 0
      %p121 = por %p119, %p120
      %p122 = scmp.ne.s32.totalorder %s114, %s116
      %p123 = scmp.eq.s32.totalorder %s38, 1
      %p124 = por %p122, %p123
      %p125 = scmp.ne.s32.totalorder %s116, %s117
      %p126 = scmp.eq.s32.totalorder %s38, 0
      %p127 = por %p125, %p126
      %p128 = scmp.ne.s32.totalorder %s116, %s117
      %p129 = scmp.eq.s32.totalorder %s39, 1
      %p130 = por %p128, %p129
      %p132 = scmp.ne.s32.totalorder %s117, %s131
      %p133 = scmp.eq.s32.totalorder %s39, 0
      %p134 = por %p132, %p133
      %s136 = sadd.s32 %s135, 1
      %p139 = scmp.eq.s32.totalorder %s33, 1
      %p140 = scmp.ne.s32.totalorder %s135, %s137
      %p141 = scmp.eq.s32.totalorder %s33, 0
      %p142 = por %p140, %p141
      %p143 = scmp.ne.s32.totalorder %s135, %s137
      %p144 = scmp.eq.s32.totalorder %s38, 1
      %p145 = por %p143, %p144
      %p146 = scmp.ne.s32.totalorder %s137, %s138
      %p147 = scmp.eq.s32.totalorder %s38, 0
      %p148 = por %p146, %p147
      %p149 = scmp.ne.s32.totalorder %s137, %s138
      %p150 = scmp.eq.s32.totalorder %s39, 1
      %p151 = por %p149, %p150
      %p153 = scmp.ne.s32.totalorder %s138, %s152
      %p154 = scmp.eq.s32.totalorder %s39, 0
      %p155 = por %p153, %p154
      %s157 = sadd.s32 %s156, 1
      %p160 = scmp.eq.s32.totalorder %s33, 1
      %p161 = scmp.ne.s32.totalorder %s156, %s158
      %p162 = scmp.eq.s32.totalorder %s33, 0
      %p163 = por %p161, %p162
      %p164 = scmp.ne.s32.totalorder %s156, %s158
      %p165 = scmp.eq.s32.totalorder %s38, 1
      %p166 = por %p164, %p165
      %p167 = scmp.ne.s32.totalorder %s158, %s159
      %p168 = scmp.eq.s32.totalorder %s38, 0
      %p169 = por %p167, %p168
      %p170 = scmp.ne.s32.totalorder %s158, %s159
      %p171 = scmp.eq.s32.totalorder %s39, 1
      %p172 = por %p170, %p171
      %p174 = scmp.ne.s32.totalorder %s159, %s173
      %p175 = scmp.eq.s32.totalorder %s39, 0
      %p176 = por %p174, %p175
      %s177 = ssub.s32 %s33, %s40
      %p178 = scmp.eq.s32.totalorder %s177, 0
      %s180 = sadd.s32 %s179, 1
      %s181 = scalar_select %p178, %s179, %s180
      %p184 = pneg %p178
      %p185 = scmp.eq.s32.totalorder %s33, 1
      %p186 = por %p184, %p185
      %p187 = scmp.ne.s32.totalorder %s179, %s182
      %p188 = scmp.eq.s32.totalorder %s33, 0
      %p189 = por %p187, %p188
      %p190 = scmp.ne.s32.totalorder %s179, %s182
      %p191 = scmp.eq.s32.totalorder %s38, 1
      %p192 = por %p190, %p191
      %p193 = scmp.ne.s32.totalorder %s182, %s183
      %p194 = scmp.eq.s32.totalorder %s38, 0
      %p195 = por %p193, %p194
      %p196 = scmp.ne.s32.totalorder %s182, %s183
      %p197 = scmp.eq.s32.totalorder %s39, 1
      %p198 = por %p196, %p197
      %p200 = scmp.ne.s32.totalorder %s183, %s199
      %p201 = scmp.eq.s32.totalorder %s39, 0
      %p202 = por %p200, %p201
      %s203 = ssub.s32 %s33, %s40
      %p204 = scmp.eq.s32.totalorder %s203, 0
      %s206 = sadd.s32 %s205, 1
      %s207 = scalar_select %p204, %s205, %s206
      %p210 = pneg %p204
      %p211 = scmp.eq.s32.totalorder %s33, 1
      %p212 = por %p210, %p211
      %p213 = scmp.ne.s32.totalorder %s205, %s208
      %p214 = scmp.eq.s32.totalorder %s33, 0
      %p215 = por %p213, %p214
      %p216 = scmp.ne.s32.totalorder %s205, %s208
      %p217 = scmp.eq.s32.totalorder %s38, 1
      %p218 = por %p216, %p217
      %p219 = scmp.ne.s32.totalorder %s208, %s209
      %p220 = scmp.eq.s32.totalorder %s38, 0
      %p221 = por %p219, %p220
      %p222 = scmp.ne.s32.totalorder %s208, %s209
      %p223 = scmp.eq.s32.totalorder %s39, 1
      %p224 = por %p222, %p223
      %p226 = scmp.ne.s32.totalorder %s209, %s225
      %p227 = scmp.eq.s32.totalorder %s39, 0
      %p228 = por %p226, %p227
      %s229 = ssub.s32 %s33, %s40
      %p230 = scmp.eq.s32.totalorder %s229, 0
      %s232 = sadd.s32 %s231, 1
      %s233 = scalar_select %p230, %s231, %s232
      %p236 = pneg %p230
      %p237 = scmp.eq.s32.totalorder %s33, 1
      %p238 = por %p236, %p237
      %p239 = scmp.ne.s32.totalorder %s231, %s234
      %p240 = scmp.eq.s32.totalorder %s33, 0
      %p241 = por %p239, %p240
      %p242 = scmp.ne.s32.totalorder %s231, %s234
      %p243 = scmp.eq.s32.totalorder %s38, 1
      %p244 = por %p242, %p243
      %p245 = scmp.ne.s32.totalorder %s234, %s235
      %p246 = scmp.eq.s32.totalorder %s38, 0
      %p247 = por %p245, %p246
      %p248 = scmp.ne.s32.totalorder %s234, %s235
      %p249 = scmp.eq.s32.totalorder %s39, 1
      %p250 = por %p248, %p249
      %p252 = scmp.ne.s32.totalorder %s235, %s251
      %p253 = scmp.eq.s32.totalorder %s39, 0
      %p254 = por %p252, %p253
      %s255 = ssub.s32 %s33, %s40
      %p256 = scmp.eq.s32.totalorder %s255, 0
      %s258 = sadd.s32 %s257, 1
      %s259 = scalar_select %p256, %s257, %s258
      %p262 = pneg %p256
      %p263 = scmp.eq.s32.totalorder %s33, 1
      %p264 = por %p262, %p263
      %p265 = scmp.ne.s32.totalorder %s257, %s260
      %p266 = scmp.eq.s32.totalorder %s33, 0
      %p267 = por %p265, %p266
      %p268 = scmp.ne.s32.totalorder %s257, %s260
      %p269 = scmp.eq.s32.totalorder %s38, 1
      %p270 = por %p268, %p269
      %p271 = scmp.ne.s32.totalorder %s260, %s261
      %p272 = scmp.eq.s32.totalorder %s38, 0
      %p273 = por %p271, %p272
      %p274 = scmp.ne.s32.totalorder %s260, %s261
      %p275 = scmp.eq.s32.totalorder %s39, 1
      %p276 = por %p274, %p275
      %p278 = scmp.ne.s32.totalorder %s261, %s277
      %p279 = scmp.eq.s32.totalorder %s39, 0
      %p280 = por %p278, %p279
      %p281 = scmp.le.s32.totalorder 1, %s33
      %p282 = scmp.lt.s32.totalorder %s33, 3
      %p283 = pnand %p281, %p282
      %p284 = pneg %p283
      // Predicated region
      $region9: #{attention_block_forward.3} parent=5 // pred_check
        _
      $region10: #{attention_block_forward.3} parent=5 // pred_check_branch
        %286 = sbr.rel (%p283) target = $region12
      $region11: #{attention_block_forward.3} parent=5 // pred_region
        %s287 = ssub.s32 %s33, 1
        // Predicated region
        $region13: #{attention_block_forward.3} parent=11 // pred_check
          %p288 = pneg %p106
        $region14: #{attention_block_forward.3} parent=11 // pred_check_branch
          %290 = sbr.rel (%p288) target = $region16
        $region15: #{attention_block_forward.3} parent=11 // pred_region
          %s292 = ssub.s32 1024, 1024
          %293 = vsyncadd [#allocation6], %s292
          %s294 = sshll.u32 [#allocation7], 4
          %s295 = int_to_ptr.vmem [resolvable:$true] %s294
          %300 = dma.hbm_to_vmem [thread:$0]  %s2, 1024, %s295, [#allocation6], 64, 64, 4
        $region16: #{attention_block_forward.3} parent=11 // pred_fallthru
          _
        // Predicated region
        $region17: #{attention_block_forward.3} parent=11 // pred_check
          %p301 = pneg %p127
        $region18: #{attention_block_forward.3} parent=11 // pred_check_branch
          %303 = sbr.rel (%p301) target = $region20
        $region19: #{attention_block_forward.3} parent=11 // pred_region
          %s305 = ssub.s32 1024, 1024
          %306 = vsyncadd [#allocation9], %s305
          %s307 = sshll.u32 [#allocation8], 4
          %s308 = int_to_ptr.vmem [resolvable:$true] %s307
          %313 = dma.hbm_to_vmem [thread:$0]  %s3, 1024, %s308, [#allocation9], 64, 64, 4
        $region20: #{attention_block_forward.3} parent=11 // pred_fallthru
          _
        // Predicated region
        $region21: #{attention_block_forward.3} parent=11 // pred_check
          %p314 = pneg %p148
        $region22: #{attention_block_forward.3} parent=11 // pred_check_branch
          %316 = sbr.rel (%p314) target = $region24
        $region23: #{attention_block_forward.3} parent=11 // pred_region
          %s318 = ssub.s32 16, 16
          %319 = vsyncadd [#allocation9], %s318
          %s321 = sshll.u32 [#allocation10], 4
          %s322 = int_to_ptr.vmem [resolvable:$true] %s321
          %324 = dma.hbm_to_vmem [thread:$0]  %s4, 16, %s322, [#allocation9]
        $region24: #{attention_block_forward.3} parent=11 // pred_fallthru
          _
        // Predicated region
        $region25: #{attention_block_forward.3} parent=11 // pred_check
          %p325 = pneg %p169
        $region26: #{attention_block_forward.3} parent=11 // pred_check_branch
          %327 = sbr.rel (%p325) target = $region28
        $region27: #{attention_block_forward.3} parent=11 // pred_region
          %s329 = ssub.s32 16, 16
          %330 = vsyncadd [#allocation12], %s329
          %s332 = sshll.u32 [#allocation11], 4
          %s333 = int_to_ptr.vmem [resolvable:$true] %s332
          %335 = dma.hbm_to_vmem [thread:$0]  %s5, 16, %s333, [#allocation12]
        $region28: #{attention_block_forward.3} parent=11 // pred_fallthru
          _
      $region12: #{attention_block_forward.3} parent=5 // pred_fallthru
        _
      %p336 = scmp.lt.s32.totalorder %s33, 2
      // Predicated region
      $region29: #{attention_block_forward.3} parent=5 // pred_check
        %p337 = pneg %p336
      $region30: #{attention_block_forward.3} parent=5 // pred_check_branch
        %339 = sbr.rel (%p337) target = $region32
      $region31: #{attention_block_forward.3} parent=5 // pred_region
        // Predicated region
        $region33: #{attention_block_forward.3} parent=31 // pred_check
          %p340 = pneg %p53
        $region34: #{attention_block_forward.3} parent=31 // pred_check_branch
          %342 = sbr.rel (%p340) target = $region36
        $region35: #{attention_block_forward.3} parent=31 // pred_region
          %s343 = sand.u32 %s43, 1
          %s344 = scalar_lea.sflag [#allocation3], %s343
          %s345 = sand.u32 %s43, 1
          %s346 = smul.addr %s345, 128
          %s347 = scalar_lea.vmem [#allocation2], %s346
          %s348 = smul.u32 32, %s33
          %s350 = ssub.s32 2048, 2048
          %351 = vsyncadd %s344, %s350
          %s352 = smul.addr %s348, 64
          %s353 = scalar_lea.hbm %s0, %s352
          %s354 = sshll.u32 %s347, 4
          %s355 = int_to_ptr.vmem [resolvable:$true] %s354
          %360 = dma.hbm_to_vmem [thread:$0]  %s353, 2048, %s355, %s344, 64, 64, 4
        $region36: #{attention_block_forward.3} parent=31 // pred_fallthru
          _
        // Predicated region
        $region37: #{attention_block_forward.3} parent=31 // pred_check
          %p361 = pneg %p79
        $region38: #{attention_block_forward.3} parent=31 // pred_check_branch
          %363 = sbr.rel (%p361) target = $region40
        $region39: #{attention_block_forward.3} parent=31 // pred_region
          %s364 = sand.u32 %s33, 1
          %s365 = scalar_lea.sflag [#allocation6], %s364
          %s366 = sand.u32 %s69, 1
          %s367 = smul.addr %s366, 128
          %s368 = scalar_lea.vmem [#allocation5], %s367
          %s369 = smul.u32 32, %s33
          %s371 = ssub.s32 2048, 2048
          %372 = vsyncadd %s365, %s371
          %s373 = smul.addr %s369, 64
          %s374 = scalar_lea.hbm %s1, %s373
          %s375 = sshll.u32 %s368, 4
          %s376 = int_to_ptr.vmem [resolvable:$true] %s375
          %381 = dma.hbm_to_vmem [thread:$0]  %s374, 2048, %s376, %s365, 64, 64, 4
        $region40: #{attention_block_forward.3} parent=31 // pred_fallthru
          _
      $region32: #{attention_block_forward.3} parent=5 // pred_fallthru
        _
      %p382 = scmp.le.s32.totalorder 1, %s33
      %p383 = scmp.lt.s32.totalorder %s33, 3
      %p384 = pnand %p382, %p383
      %p385 = pneg %p384
      // Predicated region
      $region41: #{attention_block_forward.3} parent=5 // pred_check
        _
      $region42: #{attention_block_forward.3} parent=5 // pred_check_branch
        %387 = sbr.rel (%p384) target = $region44
      $region43: #{attention_block_forward.3} parent=5 // pred_region
        %s388 = ssub.s32 %s33, 1
        %s389 = sand.u32 %s46, 1
        %s390 = scalar_lea.sflag [#allocation3], %s389
        %s391 = sand.u32 %s46, 1
        %s392 = smul.addr %s391, 128
        %s393 = scalar_lea.vmem [#allocation2], %s392
        // Predicated region
        $region45: #{attention_block_forward.3} parent=43 // pred_check
          %p394 = pneg %p59
        $region46: #{attention_block_forward.3} parent=43 // pred_check_branch
          %396 = sbr.rel (%p394) target = $region48
        $region47: #{attention_block_forward.3} parent=43 // pred_region
          %397 = dma.done %s390, 2048
        $region48: #{attention_block_forward.3} parent=43 // pred_fallthru
          _
        %s398 = sand.u32 %s38, 1
        %s399 = scalar_lea.sflag [#allocation6], %s398
        %s400 = sand.u32 %s72, 1
        %s401 = smul.addr %s400, 128
        %s402 = scalar_lea.vmem [#allocation5], %s401
        // Predicated region
        $region49: #{attention_block_forward.3} parent=43 // pred_check
          %p403 = pneg %p85
        $region50: #{attention_block_forward.3} parent=43 // pred_check_branch
          %405 = sbr.rel (%p403) target = $region52
        $region51: #{attention_block_forward.3} parent=43 // pred_region
          %406 = dma.done %s399, 2048
        $region52: #{attention_block_forward.3} parent=43 // pred_fallthru
          _
        // Predicated region
        $region53: #{attention_block_forward.3} parent=43 // pred_check
          %p407 = pneg %p106
        $region54: #{attention_block_forward.3} parent=43 // pred_check_branch
          %409 = sbr.rel (%p407) target = $region56
        $region55: #{attention_block_forward.3} parent=43 // pred_region
          %410 = dma.done [#allocation6], 1024
        $region56: #{attention_block_forward.3} parent=43 // pred_fallthru
          _
        // Predicated region
        $region57: #{attention_block_forward.3} parent=43 // pred_check
          %p411 = pneg %p127
        $region58: #{attention_block_forward.3} parent=43 // pred_check_branch
          %413 = sbr.rel (%p411) target = $region60
        $region59: #{attention_block_forward.3} parent=43 // pred_region
          %414 = dma.done [#allocation9], 1024
        $region60: #{attention_block_forward.3} parent=43 // pred_fallthru
          _
        // Predicated region
        $region61: #{attention_block_forward.3} parent=43 // pred_check
          %p415 = pneg %p148
        $region62: #{attention_block_forward.3} parent=43 // pred_check_branch
          %417 = sbr.rel (%p415) target = $region64
        $region63: #{attention_block_forward.3} parent=43 // pred_region
          %418 = dma.done [#allocation9], 16
        $region64: #{attention_block_forward.3} parent=43 // pred_fallthru
          _
        // Predicated region
        $region65: #{attention_block_forward.3} parent=43 // pred_check
          %p419 = pneg %p169
        $region66: #{attention_block_forward.3} parent=43 // pred_check_branch
          %421 = sbr.rel (%p419) target = $region68
        $region67: #{attention_block_forward.3} parent=43 // pred_region
          %422 = dma.done [#allocation12], 16
        $region68: #{attention_block_forward.3} parent=43 // pred_fallthru
          _
        %s423 = sand.u32 %s46, 1
        %s424 = scalar_lea.sflag [#allocation3], %s423
        %s425 = sand.u32 %s46, 1
        %s426 = smul.addr %s425, 128
        %s427 = scalar_lea.vmem [#allocation2], %s426
        %p428 = pneg %p59
        %p429 = pneg %p56
        %s430 = sand.u32 %s38, 1
        %s431 = scalar_lea.sflag [#allocation6], %s430
        %s432 = sand.u32 %s72, 1
        %s433 = smul.addr %s432, 128
        %s434 = scalar_lea.vmem [#allocation5], %s433
        %p435 = pneg %p85
        %p436 = pneg %p82
        %p437 = pneg %p106
        %p438 = pneg %p103
        %p439 = pneg %p127
        %p440 = pneg %p124
        %p441 = pneg %p148
        %p442 = pneg %p145
        %p443 = pneg %p169
        %p444 = pneg %p166
        %p445 = pneg %p195
        %p446 = pneg %p192
        %s447 = sand.u32 %s182, 1
        %s448 = scalar_lea.sflag [#allocation4], %s447
        %s449 = sand.u32 %s182, 1
        %s450 = scalar_lea.vmem [#allocation13], %s449
        %p451 = pneg %p221
        %p452 = pneg %p218
        %s453 = sand.u32 %s38, 1
        %s454 = scalar_lea.sflag [#allocation15], %s453
        %s455 = sand.u32 %s208, 1
        %s456 = scalar_lea.vmem [#allocation14], %s455
        %p457 = pneg %p247
        %p458 = pneg %p244
        %s459 = sand.u32 %s38, 1
        %s460 = scalar_lea.sflag [#allocation15], %s459
        %s461 = sand.u32 %s234, 1
        %s462 = scalar_lea.vmem [#allocation16], %s461
        %p463 = pneg %p273
        %p464 = pneg %p270
        %s465 = sand.u32 %s260, 1
        %s466 = scalar_lea.sflag [#allocation18], %s465
        %s467 = sand.u32 %s260, 1
        %s468 = scalar_lea.vmem [#allocation17], %s467
        %s469 = smul.u32 32, %s38
        %s470 = smul.u32 32, %s38
        %v472 = vld [vmem:[%s393] sm:$0xf]
        %v473 = vld [vmem:[%s393 + $0x4] sm:$0xf]
        %v474 = vld [vmem:[%s393 + $0x8] sm:$0xf]
        %v475 = vld [vmem:[%s393 + $0xc] sm:$0xf]
        %v476 = vld [vmem:[%s393 + $0x10] sm:$0xf]
        %v477 = vld [vmem:[%s393 + $0x14] sm:$0xf]
        %v478 = vld [vmem:[%s393 + $0x18] sm:$0xf]
        %v479 = vld [vmem:[%s393 + $0x1c] sm:$0xf]
        %v480 = vld [vmem:[%s393 + $0x20] sm:$0xf]
        %v481 = vld [vmem:[%s393 + $0x24] sm:$0xf]
        %v482 = vld [vmem:[%s393 + $0x28] sm:$0xf]
        %v483 = vld [vmem:[%s393 + $0x2c] sm:$0xf]
        %v484 = vld [vmem:[%s393 + $0x30] sm:$0xf]
        %v485 = vld [vmem:[%s393 + $0x34] sm:$0xf]
        %v486 = vld [vmem:[%s393 + $0x38] sm:$0xf]
        %v487 = vld [vmem:[%s393 + $0x3c] sm:$0xf]
        %v488 = vld [vmem:[%s393 + $0x40] sm:$0xf]
        %v489 = vld [vmem:[%s393 + $0x44] sm:$0xf]
        %v490 = vld [vmem:[%s393 + $0x48] sm:$0xf]
        %v491 = vld [vmem:[%s393 + $0x4c] sm:$0xf]
        %v492 = vld [vmem:[%s393 + $0x50] sm:$0xf]
        %v493 = vld [vmem:[%s393 + $0x54] sm:$0xf]
        %v494 = vld [vmem:[%s393 + $0x58] sm:$0xf]
        %v495 = vld [vmem:[%s393 + $0x5c] sm:$0xf]
        %v496 = vld [vmem:[%s393 + $0x60] sm:$0xf]
        %v497 = vld [vmem:[%s393 + $0x64] sm:$0xf]
        %v498 = vld [vmem:[%s393 + $0x68] sm:$0xf]
        %v499 = vld [vmem:[%s393 + $0x6c] sm:$0xf]
        %v500 = vld [vmem:[%s393 + $0x70] sm:$0xf]
        %v501 = vld [vmem:[%s393 + $0x74] sm:$0xf]
        %v502 = vld [vmem:[%s393 + $0x78] sm:$0xf]
        %v503 = vld [vmem:[%s393 + $0x7c] sm:$0xf]
        %v504 = vld [vmem:[#allocation7] sm:$0xf]
        %v505 = vld [vmem:[#allocation7 + $0x4] sm:$0xf]
        %v506 = vld [vmem:[#allocation7 + $0x8] sm:$0xf]
        %v507 = vld [vmem:[#allocation7 + $0xc] sm:$0xf]
        %v508 = vld [vmem:[#allocation7 + $0x10] sm:$0xf]
        %v509 = vld [vmem:[#allocation7 + $0x14] sm:$0xf]
        %v510 = vld [vmem:[#allocation7 + $0x18] sm:$0xf]
        %v511 = vld [vmem:[#allocation7 + $0x1c] sm:$0xf]
        %v512 = vld [vmem:[#allocation7 + $0x20] sm:$0xf]
        %v513 = vld [vmem:[#allocation7 + $0x24] sm:$0xf]
        %v514 = vld [vmem:[#allocation7 + $0x28] sm:$0xf]
        %v515 = vld [vmem:[#allocation7 + $0x2c] sm:$0xf]
        %v516 = vld [vmem:[#allocation7 + $0x30] sm:$0xf]
        %v517 = vld [vmem:[#allocation7 + $0x34] sm:$0xf]
        %v518 = vld [vmem:[#allocation7 + $0x38] sm:$0xf]
        %v519 = vld [vmem:[#allocation7 + $0x3c] sm:$0xf]
        %v520 = vld [vmem:[#allocation10] sm:$0x1]
        %v522 = vlaneseq
        %v523 = vshrl.u32 %v522, 7
        %v524 = vsub.s32 0, %v523
        %v525 = vrot.slane %v520, %v524
        %v559 = vunpack.c.l.b16 %v472
        %v560 = vunpack.c.l.b16 %v473
        %v561 = vunpack.c.l.b16 %v474
        %v562 = vunpack.c.l.b16 %v475
        %v563 = vunpack.c.l.b16 %v476
        %v564 = vunpack.c.l.b16 %v477
        %v565 = vunpack.c.l.b16 %v478
        %v566 = vunpack.c.l.b16 %v479
        %v567 = vunpack.c.l.b16 %v480
        %v568 = vunpack.c.l.b16 %v481
        %v569 = vunpack.c.l.b16 %v482
        %v570 = vunpack.c.l.b16 %v483
        %v571 = vunpack.c.l.b16 %v484
        %v572 = vunpack.c.l.b16 %v485
        %v573 = vunpack.c.l.b16 %v486
        %v574 = vunpack.c.l.b16 %v487
        %v575 = vunpack.c.l.b16 %v488
        %v576 = vunpack.c.l.b16 %v489
        %v577 = vunpack.c.l.b16 %v490
        %v578 = vunpack.c.l.b16 %v491
        %v579 = vunpack.c.l.b16 %v492
        %v580 = vunpack.c.l.b16 %v493
        %v581 = vunpack.c.l.b16 %v494
        %v582 = vunpack.c.l.b16 %v495
        %v583 = vunpack.c.l.b16 %v496
        %v584 = vunpack.c.l.b16 %v497
        %v585 = vunpack.c.l.b16 %v498
        %v586 = vunpack.c.l.b16 %v499
        %v587 = vunpack.c.l.b16 %v500
        %v588 = vunpack.c.l.b16 %v501
        %v589 = vunpack.c.l.b16 %v502
        %v590 = vunpack.c.l.b16 %v503
        %v591 = vpack.c.b16 %v560, %v559
        %v592 = vpack.c.b16 %v562, %v561
        %v593 = vpack.c.b16 %v564, %v563
        %v594 = vpack.c.b16 %v566, %v565
        %v595 = vpack.c.b16 %v568, %v567
        %v596 = vpack.c.b16 %v570, %v569
        %v597 = vpack.c.b16 %v572, %v571
        %v598 = vpack.c.b16 %v574, %v573
        %v599 = vpack.c.b16 %v576, %v575
        %v600 = vpack.c.b16 %v578, %v577
        %v601 = vpack.c.b16 %v580, %v579
        %v602 = vpack.c.b16 %v582, %v581
        %v603 = vpack.c.b16 %v584, %v583
        %v604 = vpack.c.b16 %v586, %v585
        %v605 = vpack.c.b16 %v588, %v587
        %v606 = vpack.c.b16 %v590, %v589
        %v639 = vunpack.c.l.b16 %v504
        %v640 = vunpack.c.l.b16 %v505
        %v641 = vunpack.c.l.b16 %v506
        %v642 = vunpack.c.l.b16 %v507
        %v643 = vunpack.c.l.b16 %v508
        %v644 = vunpack.c.l.b16 %v509
        %v645 = vunpack.c.l.b16 %v510
        %v646 = vunpack.c.l.b16 %v511
        %v647 = vunpack.c.l.b16 %v512
        %v648 = vunpack.c.l.b16 %v513
        %v649 = vunpack.c.l.b16 %v514
        %v650 = vunpack.c.l.b16 %v515
        %v651 = vunpack.c.l.b16 %v516
        %v652 = vunpack.c.l.b16 %v517
        %v653 = vunpack.c.l.b16 %v518
        %v654 = vunpack.c.l.b16 %v519
        %v655 = vpack.c.b16 %v640, %v639
        %v656 = vpack.c.b16 %v642, %v641
        %v657 = vpack.c.b16 %v644, %v643
        %v658 = vpack.c.b16 %v646, %v645
        %v659 = vpack.c.b16 %v648, %v647
        %v660 = vpack.c.b16 %v650, %v649
        %v661 = vpack.c.b16 %v652, %v651
        %v662 = vpack.c.b16 %v654, %v653
        %671 = vmatprep.subr.bf16.mxu0 0
        %672 = vmatpush1.bf16.msra.mxu0 %v655
        %673 = vmatprep.subr.bf16.mxu0 0
        %674 = vmatpush1.bf16.msra.mxu0 %v656
        %675 = vmatprep.subr.bf16.mxu0 0
        %676 = vmatpush1.bf16.msra.mxu0 %v657
        %677 = vmatprep.subr.bf16.mxu0 0
        %678 = vmatpush1.bf16.msra.mxu0 %v658
        %679 = vmatprep.subr.bf16.mxu0 0
        %680 = vmatpush1.bf16.msra.mxu0 %v659
        %681 = vmatprep.subr.bf16.mxu0 0
        %682 = vmatpush1.bf16.msra.mxu0 %v660
        %683 = vmatprep.subr.bf16.mxu0 0
        %684 = vmatpush1.bf16.msra.mxu0 %v661
        %685 = vmatprep.subr.bf16.mxu0 0
        %686 = vmatpush1.bf16.msra.mxu0 %v662
        %687 = vmatprep.subr.bf16.mxu0 0
        %688 = vmatpush1.bf16.msra.mxu0 0
        %689 = vmatprep.subr.bf16.mxu0 0
        %690 = vmatpush1.bf16.msra.mxu0 0
        %691 = vmatprep.subr.bf16.mxu0 0
        %692 = vmatpush1.bf16.msra.mxu0 0
        %693 = vmatprep.subr.bf16.mxu0 0
        %694 = vmatpush1.bf16.msra.mxu0 0
        %695 = vmatprep.subr.bf16.mxu0 0
        %696 = vmatpush1.bf16.msra.mxu0 0
        %697 = vmatprep.subr.bf16.mxu0 0
        %698 = vmatpush1.bf16.msra.mxu0 0
        %699 = vmatprep.subr.bf16.mxu0 0
        %700 = vmatpush1.bf16.msra.mxu0 0
        %701 = vmatprep.subr.bf16.mxu0 0
        %702 = vmatpush1.bf16.msra.mxu0 0
        %703 = vmatprep.mubr.bf16.mxu0 0
        %704 = vmatmul.mubr.bf16.gmra.mrb[0].mxu0 %v591
        %v705 = vpop.f32.mrb[0].mxu0
        %v706 = vadd.f32 %v525, %v705
        %v707 = vpop.f32.mrb[0].mxu0
        %v708 = vpop.f32.mrb[0].mxu0
        %v709 = vadd.f32 %v525, %v708
        %v710 = vpop.f32.mrb[0].mxu0
        %711 = vmatprep.mubr.bf16.mxu0 0
        %712 = vmatmul.mubr.bf16.gmra.mrb[0].mxu0 %v592
        %v713 = vpop.f32.mrb[0].mxu0
        %v714 = vadd.f32 %v525, %v713
        %v715 = vpop.f32.mrb[0].mxu0
        %v716 = vpop.f32.mrb[0].mxu0
        %v717 = vadd.f32 %v525, %v716
        %v718 = vpop.f32.mrb[0].mxu0
        %719 = vmatprep.mubr.bf16.mxu0 0
        %720 = vmatmul.mubr.bf16.gmra.mrb[0].mxu0 %v593
        %v721 = vpop.f32.mrb[0].mxu0
        %v722 = vadd.f32 %v525, %v721
        %v723 = vpop.f32.mrb[0].mxu0
        %v724 = vpop.f32.mrb[0].mxu0
        %v725 = vadd.f32 %v525, %v724
        %v726 = vpop.f32.mrb[0].mxu0
        %727 = vmatprep.mubr.bf16.mxu0 0
        %728 = vmatmul.mubr.bf16.gmra.mrb[0].mxu0 %v594
        %v729 = vpop.f32.mrb[0].mxu0
        %v730 = vadd.f32 %v525, %v729
        %v731 = vpop.f32.mrb[0].mxu0
        %v732 = vpop.f32.mrb[0].mxu0
        %v733 = vadd.f32 %v525, %v732
        %v734 = vpop.f32.mrb[0].mxu0
        %735 = vmatprep.mubr.bf16.mxu0 0
        %736 = vmatmul.mubr.bf16.gmra.mrb[0].mxu0 %v595
        %v737 = vpop.f32.mrb[0].mxu0
        %v738 = vadd.f32 %v525, %v737
        %v739 = vpop.f32.mrb[0].mxu0
        %v740 = vpop.f32.mrb[0].mxu0
        %v741 = vadd.f32 %v525, %v740
        %v742 = vpop.f32.mrb[0].mxu0
        %743 = vmatprep.mubr.bf16.mxu0 0
        %744 = vmatmul.mubr.bf16.gmra.mrb[0].mxu0 %v596
        %v745 = vpop.f32.mrb[0].mxu0
        %v746 = vadd.f32 %v525, %v745
        %v747 = vpop.f32.mrb[0].mxu0
        %v748 = vpop.f32.mrb[0].mxu0
        %v749 = vadd.f32 %v525, %v748
        %v750 = vpop.f32.mrb[0].mxu0
        %751 = vmatprep.mubr.bf16.mxu0 0
        %752 = vmatmul.mubr.bf16.gmra.mrb[0].mxu0 %v597
        %v753 = vpop.f32.mrb[0].mxu0
        %v754 = vadd.f32 %v525, %v753
        %v755 = vpop.f32.mrb[0].mxu0
        %v756 = vpop.f32.mrb[0].mxu0
        %v757 = vadd.f32 %v525, %v756
        %v758 = vpop.f32.mrb[0].mxu0
        %759 = vmatprep.mubr.bf16.mxu0 0
        %760 = vmatmul.mubr.bf16.gmra.mrb[0].mxu0 %v598
        %v761 = vpop.f32.mrb[0].mxu0
        %v762 = vadd.f32 %v525, %v761
        %v763 = vpop.f32.mrb[0].mxu0
        %v764 = vpop.f32.mrb[0].mxu0
        %v765 = vadd.f32 %v525, %v764
        %v766 = vpop.f32.mrb[0].mxu0
        %767 = vmatprep.mubr.bf16.mxu0 0
        %768 = vmatmul.mubr.bf16.gmra.mrb[0].mxu0 %v599
        %v769 = vpop.f32.mrb[0].mxu0
        %v770 = vadd.f32 %v525, %v769
        %v771 = vpop.f32.mrb[0].mxu0
        %v772 = vpop.f32.mrb[0].mxu0
        %v773 = vadd.f32 %v525, %v772
        %v774 = vpop.f32.mrb[0].mxu0
        %775 = vmatprep.mubr.bf16.mxu0 0
        %776 = vmatmul.mubr.bf16.gmra.mrb[0].mxu0 %v600
        %v777 = vpop.f32.mrb[0].mxu0
        %v778 = vadd.f32 %v525, %v777
        %v779 = vpop.f32.mrb[0].mxu0
        %v780 = vpop.f32.mrb[0].mxu0
        %v781 = vadd.f32 %v525, %v780
        %v782 = vpop.f32.mrb[0].mxu0
        %783 = vmatprep.mubr.bf16.mxu0 0
        %784 = vmatmul.mubr.bf16.gmra.mrb[0].mxu0 %v601
        %v785 = vpop.f32.mrb[0].mxu0
        %v786 = vadd.f32 %v525, %v785
        %v787 = vpop.f32.mrb[0].mxu0
        %v788 = vpop.f32.mrb[0].mxu0
        %v789 = vadd.f32 %v525, %v788
        %v790 = vpop.f32.mrb[0].mxu0
        %791 = vmatprep.mubr.bf16.mxu0 0
        %792 = vmatmul.mubr.bf16.gmra.mrb[0].mxu0 %v602
        %v793 = vpop.f32.mrb[0].mxu0
        %v794 = vadd.f32 %v525, %v793
        %v795 = vpop.f32.mrb[0].mxu0
        %v796 = vpop.f32.mrb[0].mxu0
        %v797 = vadd.f32 %v525, %v796
        %v798 = vpop.f32.mrb[0].mxu0
        %799 = vmatprep.mubr.bf16.mxu0 0
        %800 = vmatmul.mubr.bf16.gmra.mrb[0].mxu0 %v603
        %v801 = vpop.f32.mrb[0].mxu0
        %v802 = vadd.f32 %v525, %v801
        %v803 = vpop.f32.mrb[0].mxu0
        %v804 = vpop.f32.mrb[0].mxu0
        %v805 = vadd.f32 %v525, %v804
        %v806 = vpop.f32.mrb[0].mxu0
        %807 = vmatprep.mubr.bf16.mxu0 0
        %808 = vmatmul.mubr.bf16.gmra.mrb[0].mxu0 %v604
        %v809 = vpop.f32.mrb[0].mxu0
        %v810 = vadd.f32 %v525, %v809
        %v811 = vpop.f32.mrb[0].mxu0
        %v812 = vpop.f32.mrb[0].mxu0
        %v813 = vadd.f32 %v525, %v812
        %v814 = vpop.f32.mrb[0].mxu0
        %815 = vmatprep.mubr.bf16.mxu0 0
        %816 = vmatmul.mubr.bf16.gmra.mrb[0].mxu0 %v605
        %v817 = vpop.f32.mrb[0].mxu0
        %v818 = vadd.f32 %v525, %v817
        %v819 = vpop.f32.mrb[0].mxu0
        %v820 = vpop.f32.mrb[0].mxu0
        %v821 = vadd.f32 %v525, %v820
        %v822 = vpop.f32.mrb[0].mxu0
        %823 = vmatprep.mubr.bf16.mxu0 0
        %824 = vmatmul.mubr.bf16.gmra.mrb[0].mxu0 %v606
        %v825 = vpop.f32.mrb[0].mxu0
        %v826 = vadd.f32 %v525, %v825
        %v827 = vpop.f32.mrb[0].mxu0
        %v828 = vpop.f32.mrb[0].mxu0
        %v829 = vadd.f32 %v525, %v828
        %v830 = vpop.f32.mrb[0].mxu0
        %831 = vdwg.mxu0
        %v832 = vld [vmem:[%s402] sm:$0xf]
        %v833 = vld [vmem:[%s402 + $0x4] sm:$0xf]
        %v834 = vld [vmem:[%s402 + $0x8] sm:$0xf]
        %v835 = vld [vmem:[%s402 + $0xc] sm:$0xf]
        %v836 = vld [vmem:[%s402 + $0x10] sm:$0xf]
        %v837 = vld [vmem:[%s402 + $0x14] sm:$0xf]
        %v838 = vld [vmem:[%s402 + $0x18] sm:$0xf]
        %v839 = vld [vmem:[%s402 + $0x1c] sm:$0xf]
        %v840 = vld [vmem:[%s402 + $0x20] sm:$0xf]
        %v841 = vld [vmem:[%s402 + $0x24] sm:$0xf]
        %v842 = vld [vmem:[%s402 + $0x28] sm:$0xf]
        %v843 = vld [vmem:[%s402 + $0x2c] sm:$0xf]
        %v844 = vld [vmem:[%s402 + $0x30] sm:$0xf]
        %v845 = vld [vmem:[%s402 + $0x34] sm:$0xf]
        %v846 = vld [vmem:[%s402 + $0x38] sm:$0xf]
        %v847 = vld [vmem:[%s402 + $0x3c] sm:$0xf]
        %v848 = vld [vmem:[%s402 + $0x40] sm:$0xf]
        %v849 = vld [vmem:[%s402 + $0x44] sm:$0xf]
        %v850 = vld [vmem:[%s402 + $0x48] sm:$0xf]
        %v851 = vld [vmem:[%s402 + $0x4c] sm:$0xf]
        %v852 = vld [vmem:[%s402 + $0x50] sm:$0xf]
        %v853 = vld [vmem:[%s402 + $0x54] sm:$0xf]
        %v854 = vld [vmem:[%s402 + $0x58] sm:$0xf]
        %v855 = vld [vmem:[%s402 + $0x5c] sm:$0xf]
        %v856 = vld [vmem:[%s402 + $0x60] sm:$0xf]
        %v857 = vld [vmem:[%s402 + $0x64] sm:$0xf]
        %v858 = vld [vmem:[%s402 + $0x68] sm:$0xf]
        %v859 = vld [vmem:[%s402 + $0x6c] sm:$0xf]
        %v860 = vld [vmem:[%s402 + $0x70] sm:$0xf]
        %v861 = vld [vmem:[%s402 + $0x74] sm:$0xf]
        %v862 = vld [vmem:[%s402 + $0x78] sm:$0xf]
        %v863 = vld [vmem:[%s402 + $0x7c] sm:$0xf]
        %v864 = vld [vmem:[#allocation8] sm:$0xf]
        %v865 = vld [vmem:[#allocation8 + $0x4] sm:$0xf]
        %v866 = vld [vmem:[#allocation8 + $0x8] sm:$0xf]
        %v867 = vld [vmem:[#allocation8 + $0xc] sm:$0xf]
        %v868 = vld [vmem:[#allocation8 + $0x10] sm:$0xf]
        %v869 = vld [vmem:[#allocation8 + $0x14] sm:$0xf]
        %v870 = vld [vmem:[#allocation8 + $0x18] sm:$0xf]
        %v871 = vld [vmem:[#allocation8 + $0x1c] sm:$0xf]
        %v872 = vld [vmem:[#allocation8 + $0x20] sm:$0xf]
        %v873 = vld [vmem:[#allocation8 + $0x24] sm:$0xf]
        %v874 = vld [vmem:[#allocation8 + $0x28] sm:$0xf]
        %v875 = vld [vmem:[#allocation8 + $0x2c] sm:$0xf]
        %v876 = vld [vmem:[#allocation8 + $0x30] sm:$0xf]
        %v877 = vld [vmem:[#allocation8 + $0x34] sm:$0xf]
        %v878 = vld [vmem:[#allocation8 + $0x38] sm:$0xf]
        %v879 = vld [vmem:[#allocation8 + $0x3c] sm:$0xf]
        %v880 = vld [vmem:[#allocation11] sm:$0x1]
        %v882 = vlaneseq
        %v883 = vshrl.u32 %v882, 7
        %v884 = vsub.s32 0, %v883
        %v885 = vrot.slane %v880, %v884
        %v919 = vunpack.c.l.b16 %v832
        %v920 = vunpack.c.l.b16 %v833
        %v921 = vunpack.c.l.b16 %v834
        %v922 = vunpack.c.l.b16 %v835
        %v923 = vunpack.c.l.b16 %v836
        %v924 = vunpack.c.l.b16 %v837
        %v925 = vunpack.c.l.b16 %v838
        %v926 = vunpack.c.l.b16 %v839
        %v927 = vunpack.c.l.b16 %v840
        %v928 = vunpack.c.l.b16 %v841
        %v929 = vunpack.c.l.b16 %v842
        %v930 = vunpack.c.l.b16 %v843
        %v931 = vunpack.c.l.b16 %v844
        %v932 = vunpack.c.l.b16 %v845
        %v933 = vunpack.c.l.b16 %v846
        %v934 = vunpack.c.l.b16 %v847
        %v935 = vunpack.c.l.b16 %v848
        %v936 = vunpack.c.l.b16 %v849
        %v937 = vunpack.c.l.b16 %v850
        %v938 = vunpack.c.l.b16 %v851
        %v939 = vunpack.c.l.b16 %v852
        %v940 = vunpack.c.l.b16 %v853
        %v941 = vunpack.c.l.b16 %v854
        %v942 = vunpack.c.l.b16 %v855
        %v943 = vunpack.c.l.b16 %v856
        %v944 = vunpack.c.l.b16 %v857
        %v945 = vunpack.c.l.b16 %v858
        %v946 = vunpack.c.l.b16 %v859
        %v947 = vunpack.c.l.b16 %v860
        %v948 = vunpack.c.l.b16 %v861
        %v949 = vunpack.c.l.b16 %v862
        %v950 = vunpack.c.l.b16 %v863
        %v951 = vpack.c.b16 %v920, %v919
        %v952 = vpack.c.b16 %v922, %v921
        %v953 = vpack.c.b16 %v924, %v923
        %v954 = vpack.c.b16 %v926, %v925
        %v955 = vpack.c.b16 %v928, %v927
        %v956 = vpack.c.b16 %v930, %v929
        %v957 = vpack.c.b16 %v932, %v931
        %v958 = vpack.c.b16 %v934, %v933
        %v959 = vpack.c.b16 %v936, %v935
        %v960 = vpack.c.b16 %v938, %v937
        %v961 = vpack.c.b16 %v940, %v939
        %v962 = vpack.c.b16 %v942, %v941
        %v963 = vpack.c.b16 %v944, %v943
        %v964 = vpack.c.b16 %v946, %v945
        %v965 = vpack.c.b16 %v948, %v947
        %v966 = vpack.c.b16 %v950, %v949
        %v999 = vunpack.c.l.b16 %v864
        %v1000 = vunpack.c.l.b16 %v865
        %v1001 = vunpack.c.l.b16 %v866
        %v1002 = vunpack.c.l.b16 %v867
        %v1003 = vunpack.c.l.b16 %v868
        %v1004 = vunpack.c.l.b16 %v869
        %v1005 = vunpack.c.l.b16 %v870
        %v1006 = vunpack.c.l.b16 %v871
        %v1007 = vunpack.c.l.b16 %v872
        %v1008 = vunpack.c.l.b16 %v873
        %v1009 = vunpack.c.l.b16 %v874
        %v1010 = vunpack.c.l.b16 %v875
        %v1011 = vunpack.c.l.b16 %v876
        %v1012 = vunpack.c.l.b16 %v877
        %v1013 = vunpack.c.l.b16 %v878
        %v1014 = vunpack.c.l.b16 %v879
        %v1015 = vpack.c.b16 %v1000, %v999
        %v1016 = vpack.c.b16 %v1002, %v1001
        %v1017 = vpack.c.b16 %v1004, %v1003
        %v1018 = vpack.c.b16 %v1006, %v1005
        %v1019 = vpack.c.b16 %v1008, %v1007
        %v1020 = vpack.c.b16 %v1010, %v1009
        %v1021 = vpack.c.b16 %v1012, %v1011
        %v1022 = vpack.c.b16 %v1014, %v1013
        %1031 = vmatprep.subr.bf16.mxu0 0
        %1032 = vmatpush1.bf16.msra.mxu0 %v1015
        %1033 = vmatprep.subr.bf16.mxu0 0
        %1034 = vmatpush1.bf16.msra.mxu0 %v1016
        %1035 = vmatprep.subr.bf16.mxu0 0
        %1036 = vmatpush1.bf16.msra.mxu0 %v1017
        %1037 = vmatprep.subr.bf16.mxu0 0
        %1038 = vmatpush1.bf16.msra.mxu0 %v1018
        %1039 = vmatprep.subr.bf16.mxu0 0
        %1040 = vmatpush1.bf16.msra.mxu0 %v1019
        %1041 = vmatprep.subr.bf16.mxu0 0
        %1042 = vmatpush1.bf16.msra.mxu0 %v1020
        %1043 = vmatprep.subr.bf16.mxu0 0
        %1044 = vmatpush1.bf16.msra.mxu0 %v1021
        %1045 = vmatprep.subr.bf16.mxu0 0
        %1046 = vmatpush1.bf16.msra.mxu0 %v1022
        %1047 = vmatprep.subr.bf16.mxu0 0
        %1048 = vmatpush1.bf16.msra.mxu0 0
        %1049 = vmatprep.subr.bf16.mxu0 0
        %1050 = vmatpush1.bf16.msra.mxu0 0
        %1051 = vmatprep.subr.bf16.mxu0 0
        %1052 = vmatpush1.bf16.msra.mxu0 0
        %1053 = vmatprep.subr.bf16.mxu0 0
        %1054 = vmatpush1.bf16.msra.mxu0 0
        %1055 = vmatprep.subr.bf16.mxu0 0
        %1056 = vmatpush1.bf16.msra.mxu0 0
        %1057 = vmatprep.subr.bf16.mxu0 0
        %1058 = vmatpush1.bf16.msra.mxu0 0
        %1059 = vmatprep.subr.bf16.mxu0 0
        %1060 = vmatpush1.bf16.msra.mxu0 0
        %1061 = vmatprep.subr.bf16.mxu0 0
        %1062 = vmatpush1.bf16.msra.mxu0 0
        %1063 = vmatprep.mubr.bf16.mxu0 0
        %1064 = vmatmul.mubr.bf16.gmra.mrb[0].mxu0 %v951
        %v1065 = vpop.f32.mrb[0].mxu0
        %v1066 = vadd.f32 %v885, %v1065
        %v1067 = vpop.f32.mrb[0].mxu0
        %v1068 = vpop.f32.mrb[0].mxu0
        %v1069 = vadd.f32 %v885, %v1068
        %v1070 = vpop.f32.mrb[0].mxu0
        %1071 = vmatprep.mubr.bf16.mxu0 0
        %1072 = vmatmul.mubr.bf16.gmra.mrb[0].mxu0 %v952
        %v1073 = vpop.f32.mrb[0].mxu0
        %v1074 = vadd.f32 %v885, %v1073
        %v1075 = vpop.f32.mrb[0].mxu0
        %v1076 = vpop.f32.mrb[0].mxu0
        %v1077 = vadd.f32 %v885, %v1076
        %v1078 = vpop.f32.mrb[0].mxu0
        %1079 = vmatprep.mubr.bf16.mxu0 0
        %1080 = vmatmul.mubr.bf16.gmra.mrb[0].mxu0 %v953
        %v1081 = vpop.f32.mrb[0].mxu0
        %v1082 = vadd.f32 %v885, %v1081
        %v1083 = vpop.f32.mrb[0].mxu0
        %v1084 = vpop.f32.mrb[0].mxu0
        %v1085 = vadd.f32 %v885, %v1084
        %v1086 = vpop.f32.mrb[0].mxu0
        %1087 = vmatprep.mubr.bf16.mxu0 0
        %1088 = vmatmul.mubr.bf16.gmra.mrb[0].mxu0 %v954
        %v1089 = vpop.f32.mrb[0].mxu0
        %v1090 = vadd.f32 %v885, %v1089
        %v1091 = vpop.f32.mrb[0].mxu0
        %v1092 = vpop.f32.mrb[0].mxu0
        %v1093 = vadd.f32 %v885, %v1092
        %v1094 = vpop.f32.mrb[0].mxu0
        %1095 = vmatprep.mubr.bf16.mxu0 0
        %1096 = vmatmul.mubr.bf16.gmra.mrb[0].mxu0 %v955
        %v1097 = vpop.f32.mrb[0].mxu0
        %v1098 = vadd.f32 %v885, %v1097
        %v1099 = vpop.f32.mrb[0].mxu0
        %v1100 = vpop.f32.mrb[0].mxu0
        %v1101 = vadd.f32 %v885, %v1100
        %v1102 = vpop.f32.mrb[0].mxu0
        %1103 = vmatprep.mubr.bf16.mxu0 0
        %1104 = vmatmul.mubr.bf16.gmra.mrb[0].mxu0 %v956
        %v1105 = vpop.f32.mrb[0].mxu0
        %v1106 = vadd.f32 %v885, %v1105
        %v1107 = vpop.f32.mrb[0].mxu0
        %v1108 = vpop.f32.mrb[0].mxu0
        %v1109 = vadd.f32 %v885, %v1108
        %v1110 = vpop.f32.mrb[0].mxu0
        %1111 = vmatprep.mubr.bf16.mxu0 0
        %1112 = vmatmul.mubr.bf16.gmra.mrb[0].mxu0 %v957
        %v1113 = vpop.f32.mrb[0].mxu0
        %v1114 = vadd.f32 %v885, %v1113
        %v1115 = vpop.f32.mrb[0].mxu0
        %v1116 = vpop.f32.mrb[0].mxu0
        %v1117 = vadd.f32 %v885, %v1116
        %v1118 = vpop.f32.mrb[0].mxu0
        %1119 = vmatprep.mubr.bf16.mxu0 0
        %1120 = vmatmul.mubr.bf16.gmra.mrb[0].mxu0 %v958
        %v1121 = vpop.f32.mrb[0].mxu0
        %v1122 = vadd.f32 %v885, %v1121
        %v1123 = vpop.f32.mrb[0].mxu0
        %v1124 = vpop.f32.mrb[0].mxu0
        %v1125 = vadd.f32 %v885, %v1124
        %v1126 = vpop.f32.mrb[0].mxu0
        %1127 = vmatprep.mubr.bf16.mxu0 0
        %1128 = vmatmul.mubr.bf16.gmra.mrb[0].mxu0 %v959
        %v1129 = vpop.f32.mrb[0].mxu0
        %v1130 = vadd.f32 %v885, %v1129
        %v1131 = vpop.f32.mrb[0].mxu0
        %v1132 = vpop.f32.mrb[0].mxu0
        %v1133 = vadd.f32 %v885, %v1132
        %v1134 = vpop.f32.mrb[0].mxu0
        %1135 = vmatprep.mubr.bf16.mxu0 0
        %1136 = vmatmul.mubr.bf16.gmra.mrb[0].mxu0 %v960
        %v1137 = vpop.f32.mrb[0].mxu0
        %v1138 = vadd.f32 %v885, %v1137
        %v1139 = vpop.f32.mrb[0].mxu0
        %v1140 = vpop.f32.mrb[0].mxu0
        %v1141 = vadd.f32 %v885, %v1140
        %v1142 = vpop.f32.mrb[0].mxu0
        %1143 = vmatprep.mubr.bf16.mxu0 0
        %1144 = vmatmul.mubr.bf16.gmra.mrb[0].mxu0 %v961
        %v1145 = vpop.f32.mrb[0].mxu0
        %v1146 = vadd.f32 %v885, %v1145
        %v1147 = vpop.f32.mrb[0].mxu0
        %v1148 = vpop.f32.mrb[0].mxu0
        %v1149 = vadd.f32 %v885, %v1148
        %v1150 = vpop.f32.mrb[0].mxu0
        %1151 = vmatprep.mubr.bf16.mxu0 0
        %1152 = vmatmul.mubr.bf16.gmra.mrb[0].mxu0 %v962
        %v1153 = vpop.f32.mrb[0].mxu0
        %v1154 = vadd.f32 %v885, %v1153
        %v1155 = vpop.f32.mrb[0].mxu0
        %v1156 = vpop.f32.mrb[0].mxu0
        %v1157 = vadd.f32 %v885, %v1156
        %v1158 = vpop.f32.mrb[0].mxu0
        %1159 = vmatprep.mubr.bf16.mxu0 0
        %1160 = vmatmul.mubr.bf16.gmra.mrb[0].mxu0 %v963
        %v1161 = vpop.f32.mrb[0].mxu0
        %v1162 = vadd.f32 %v885, %v1161
        %v1163 = vpop.f32.mrb[0].mxu0
        %v1164 = vpop.f32.mrb[0].mxu0
        %v1165 = vadd.f32 %v885, %v1164
        %v1166 = vpop.f32.mrb[0].mxu0
        %1167 = vmatprep.mubr.bf16.mxu0 0
        %1168 = vmatmul.mubr.bf16.gmra.mrb[0].mxu0 %v964
        %v1169 = vpop.f32.mrb[0].mxu0
        %v1170 = vadd.f32 %v885, %v1169
        %v1171 = vpop.f32.mrb[0].mxu0
        %v1172 = vpop.f32.mrb[0].mxu0
        %v1173 = vadd.f32 %v885, %v1172
        %v1174 = vpop.f32.mrb[0].mxu0
        %1175 = vmatprep.mubr.bf16.mxu0 0
        %1176 = vmatmul.mubr.bf16.gmra.mrb[0].mxu0 %v965
        %v1177 = vpop.f32.mrb[0].mxu0
        %v1178 = vadd.f32 %v885, %v1177
        %v1179 = vpop.f32.mrb[0].mxu0
        %v1180 = vpop.f32.mrb[0].mxu0
        %v1181 = vadd.f32 %v885, %v1180
        %v1182 = vpop.f32.mrb[0].mxu0
        %1183 = vmatprep.mubr.bf16.mxu0 0
        %1184 = vmatmul.mubr.bf16.gmra.mrb[0].mxu0 %v966
        %v1185 = vpop.f32.mrb[0].mxu0
        %v1186 = vadd.f32 %v885, %v1185
        %v1187 = vpop.f32.mrb[0].mxu0
        %v1188 = vpop.f32.mrb[0].mxu0
        %v1189 = vadd.f32 %v885, %v1188
        %v1190 = vpop.f32.mrb[0].mxu0
        %1191 = vdwg.mxu0
        %v1192 = vlaneseq
        %v1193 = vshrl.u32 %v1192, 7
        %v1194 = vadd.s32 %v1193, 8
        %v1195 = vadd.s32 %v1193, 16
        %v1196 = vadd.s32 %v1193, 24
        %v1197 = vadd.s32 %v1193, 32
        %v1198 = vadd.s32 %v1193, 40
        %v1199 = vadd.s32 %v1193, 48
        %v1200 = vadd.s32 %v1193, 56
        %v1201 = vadd.s32 %v1193, 64
        %v1202 = vadd.s32 %v1193, 72
        %v1203 = vadd.s32 %v1193, 80
        %v1204 = vadd.s32 %v1193, 88
        %v1205 = vadd.s32 %v1193, 96
        %v1206 = vadd.s32 %v1193, 104
        %v1207 = vadd.s32 %v1193, 112
        %v1208 = vadd.s32 %v1193, 120
        %v1209 = vadd.s32 %v1193, 128
        %v1210 = vadd.s32 %v1193, 136
        %v1211 = vadd.s32 %v1193, 144
        %v1212 = vadd.s32 %v1193, 152
        %v1213 = vadd.s32 %v1193, 160
        %v1214 = vadd.s32 %v1193, 168
        %v1215 = vadd.s32 %v1193, 176
        %v1216 = vadd.s32 %v1193, 184
        %v1217 = vadd.s32 %v1193, 192
        %v1218 = vadd.s32 %v1193, 200
        %v1219 = vadd.s32 %v1193, 208
        %v1220 = vadd.s32 %v1193, 216
        %v1221 = vadd.s32 %v1193, 224
        %v1222 = vadd.s32 %v1193, 232
        %v1223 = vadd.s32 %v1193, 240
        %v1224 = vadd.s32 %v1193, 248
        %s1225 = smul.u32 %s38, 256
        %v1226 = vstv %s1225
        %v1227 = vadd.s32 %v1193, %v1226
        %v1228 = vadd.s32 %v1194, %v1226
        %v1229 = vadd.s32 %v1195, %v1226
        %v1230 = vadd.s32 %v1196, %v1226
        %v1231 = vadd.s32 %v1197, %v1226
        %v1232 = vadd.s32 %v1198, %v1226
        %v1233 = vadd.s32 %v1199, %v1226
        %v1234 = vadd.s32 %v1200, %v1226
        %v1235 = vadd.s32 %v1201, %v1226
        %v1236 = vadd.s32 %v1202, %v1226
        %v1237 = vadd.s32 %v1203, %v1226
        %v1238 = vadd.s32 %v1204, %v1226
        %v1239 = vadd.s32 %v1205, %v1226
        %v1240 = vadd.s32 %v1206, %v1226
        %v1241 = vadd.s32 %v1207, %v1226
        %v1242 = vadd.s32 %v1208, %v1226
        %v1243 = vadd.s32 %v1209, %v1226
        %v1244 = vadd.s32 %v1210, %v1226
        %v1245 = vadd.s32 %v1211, %v1226
        %v1246 = vadd.s32 %v1212, %v1226
        %v1247 = vadd.s32 %v1213, %v1226
        %v1248 = vadd.s32 %v1214, %v1226
        %v1249 = vadd.s32 %v1215, %v1226
        %v1250 = vadd.s32 %v1216, %v1226
        %v1251 = vadd.s32 %v1217, %v1226
        %v1252 = vadd.s32 %v1218, %v1226
        %v1253 = vadd.s32 %v1219, %v1226
        %v1254 = vadd.s32 %v1220, %v1226
        %v1255 = vadd.s32 %v1221, %v1226
        %v1256 = vadd.s32 %v1222, %v1226
        %v1257 = vadd.s32 %v1223, %v1226
        %v1258 = vadd.s32 %v1224, %v1226
        %vm1259 = vcmp.lt.s32.totalorder %v1227, 512
        %vm1260 = vcmp.lt.s32.totalorder %v1228, 512
        %vm1261 = vcmp.lt.s32.totalorder %v1229, 512
        %vm1262 = vcmp.lt.s32.totalorder %v1230, 512
        %vm1263 = vcmp.lt.s32.totalorder %v1231, 512
        %vm1264 = vcmp.lt.s32.totalorder %v1232, 512
        %vm1265 = vcmp.lt.s32.totalorder %v1233, 512
        %vm1266 = vcmp.lt.s32.totalorder %v1234, 512
        %vm1267 = vcmp.lt.s32.totalorder %v1235, 512
        %vm1268 = vcmp.lt.s32.totalorder %v1236, 512
        %vm1269 = vcmp.lt.s32.totalorder %v1237, 512
        %vm1270 = vcmp.lt.s32.totalorder %v1238, 512
        %vm1271 = vcmp.lt.s32.totalorder %v1239, 512
        %vm1272 = vcmp.lt.s32.totalorder %v1240, 512
        %vm1273 = vcmp.lt.s32.totalorder %v1241, 512
        %vm1274 = vcmp.lt.s32.totalorder %v1242, 512
        %vm1275 = vcmp.lt.s32.totalorder %v1243, 512
        %vm1276 = vcmp.lt.s32.totalorder %v1244, 512
        %vm1277 = vcmp.lt.s32.totalorder %v1245, 512
        %vm1278 = vcmp.lt.s32.totalorder %v1246, 512
        %vm1279 = vcmp.lt.s32.totalorder %v1247, 512
        %vm1280 = vcmp.lt.s32.totalorder %v1248, 512
        %vm1281 = vcmp.lt.s32.totalorder %v1249, 512
        %vm1282 = vcmp.lt.s32.totalorder %v1250, 512
        %vm1283 = vcmp.lt.s32.totalorder %v1251, 512
        %vm1284 = vcmp.lt.s32.totalorder %v1252, 512
        %vm1285 = vcmp.lt.s32.totalorder %v1253, 512
        %vm1286 = vcmp.lt.s32.totalorder %v1254, 512
        %vm1287 = vcmp.lt.s32.totalorder %v1255, 512
        %vm1288 = vcmp.lt.s32.totalorder %v1256, 512
        %vm1289 = vcmp.lt.s32.totalorder %v1257, 512
        %vm1290 = vcmp.lt.s32.totalorder %v1258, 512
        %v1291 = vsel %vm1259, 1, 0
        %v1292 = vsel %vm1260, 1, 0
        %v1293 = vsel %vm1261, 1, 0
        %v1294 = vsel %vm1262, 1, 0
        %v1295 = vsel %vm1263, 1, 0
        %v1296 = vsel %vm1264, 1, 0
        %v1297 = vsel %vm1265, 1, 0
        %v1298 = vsel %vm1266, 1, 0
        %v1299 = vsel %vm1267, 1, 0
        %v1300 = vsel %vm1268, 1, 0
        %v1301 = vsel %vm1269, 1, 0
        %v1302 = vsel %vm1270, 1, 0
        %v1303 = vsel %vm1271, 1, 0
        %v1304 = vsel %vm1272, 1, 0
        %v1305 = vsel %vm1273, 1, 0
        %v1306 = vsel %vm1274, 1, 0
        %v1307 = vsel %vm1275, 1, 0
        %v1308 = vsel %vm1276, 1, 0
        %v1309 = vsel %vm1277, 1, 0
        %v1310 = vsel %vm1278, 1, 0
        %v1311 = vsel %vm1279, 1, 0
        %v1312 = vsel %vm1280, 1, 0
        %v1313 = vsel %vm1281, 1, 0
        %v1314 = vsel %vm1282, 1, 0
        %v1315 = vsel %vm1283, 1, 0
        %v1316 = vsel %vm1284, 1, 0
        %v1317 = vsel %vm1285, 1, 0
        %v1318 = vsel %vm1286, 1, 0
        %v1319 = vsel %vm1287, 1, 0
        %v1320 = vsel %vm1288, 1, 0
        %v1321 = vsel %vm1289, 1, 0
        %v1322 = vsel %vm1290, 1, 0
        %v1323 = vcvt.s32.f32 %v1291
        %v1324 = vcvt.s32.f32 %v1292
        %v1325 = vcvt.s32.f32 %v1293
        %v1326 = vcvt.s32.f32 %v1294
        %v1327 = vcvt.s32.f32 %v1295
        %v1328 = vcvt.s32.f32 %v1296
        %v1329 = vcvt.s32.f32 %v1297
        %v1330 = vcvt.s32.f32 %v1298
        %v1331 = vcvt.s32.f32 %v1299
        %v1332 = vcvt.s32.f32 %v1300
        %v1333 = vcvt.s32.f32 %v1301
        %v1334 = vcvt.s32.f32 %v1302
        %v1335 = vcvt.s32.f32 %v1303
        %v1336 = vcvt.s32.f32 %v1304
        %v1337 = vcvt.s32.f32 %v1305
        %v1338 = vcvt.s32.f32 %v1306
        %v1339 = vcvt.s32.f32 %v1307
        %v1340 = vcvt.s32.f32 %v1308
        %v1341 = vcvt.s32.f32 %v1309
        %v1342 = vcvt.s32.f32 %v1310
        %v1343 = vcvt.s32.f32 %v1311
        %v1344 = vcvt.s32.f32 %v1312
        %v1345 = vcvt.s32.f32 %v1313
        %v1346 = vcvt.s32.f32 %v1314
        %v1347 = vcvt.s32.f32 %v1315
        %v1348 = vcvt.s32.f32 %v1316
        %v1349 = vcvt.s32.f32 %v1317
        %v1350 = vcvt.s32.f32 %v1318
        %v1351 = vcvt.s32.f32 %v1319
        %v1352 = vcvt.s32.f32 %v1320
        %v1353 = vcvt.s32.f32 %v1321
        %v1354 = vcvt.s32.f32 %v1322
        %v1355 = vmul.f32 %v706, %v1323
        %v1356 = vmul.f32 %v709, %v1324
        %v1357 = vmul.f32 %v714, %v1325
        %v1358 = vmul.f32 %v717, %v1326
        %v1359 = vmul.f32 %v722, %v1327
        %v1360 = vmul.f32 %v725, %v1328
        %v1361 = vmul.f32 %v730, %v1329
        %v1362 = vmul.f32 %v733, %v1330
        %v1363 = vmul.f32 %v738, %v1331
        %v1364 = vmul.f32 %v741, %v1332
        %v1365 = vmul.f32 %v746, %v1333
        %v1366 = vmul.f32 %v749, %v1334
        %v1367 = vmul.f32 %v754, %v1335
        %v1368 = vmul.f32 %v757, %v1336
        %v1369 = vmul.f32 %v762, %v1337
        %v1370 = vmul.f32 %v765, %v1338
        %v1371 = vmul.f32 %v770, %v1339
        %v1372 = vmul.f32 %v773, %v1340
        %v1373 = vmul.f32 %v778, %v1341
        %v1374 = vmul.f32 %v781, %v1342
        %v1375 = vmul.f32 %v786, %v1343
        %v1376 = vmul.f32 %v789, %v1344
        %v1377 = vmul.f32 %v794, %v1345
        %v1378 = vmul.f32 %v797, %v1346
        %v1379 = vmul.f32 %v802, %v1347
        %v1380 = vmul.f32 %v805, %v1348
        %v1381 = vmul.f32 %v810, %v1349
        %v1382 = vmul.f32 %v813, %v1350
        %v1383 = vmul.f32 %v818, %v1351
        %v1384 = vmul.f32 %v821, %v1352
        %v1385 = vmul.f32 %v826, %v1353
        %v1386 = vmul.f32 %v829, %v1354
        %v1387 = vmul.f32 %v1066, %v1323
        %v1388 = vmul.f32 %v1069, %v1324
        %v1389 = vmul.f32 %v1074, %v1325
        %v1390 = vmul.f32 %v1077, %v1326
        %v1391 = vmul.f32 %v1082, %v1327
        %v1392 = vmul.f32 %v1085, %v1328
        %v1393 = vmul.f32 %v1090, %v1329
        %v1394 = vmul.f32 %v1093, %v1330
        %v1395 = vmul.f32 %v1098, %v1331
        %v1396 = vmul.f32 %v1101, %v1332
        %v1397 = vmul.f32 %v1106, %v1333
        %v1398 = vmul.f32 %v1109, %v1334
        %v1399 = vmul.f32 %v1114, %v1335
        %v1400 = vmul.f32 %v1117, %v1336
        %v1401 = vmul.f32 %v1122, %v1337
        %v1402 = vmul.f32 %v1125, %v1338
        %v1403 = vmul.f32 %v1130, %v1339
        %v1404 = vmul.f32 %v1133, %v1340
        %v1405 = vmul.f32 %v1138, %v1341
        %v1406 = vmul.f32 %v1141, %v1342
        %v1407 = vmul.f32 %v1146, %v1343
        %v1408 = vmul.f32 %v1149, %v1344
        %v1409 = vmul.f32 %v1154, %v1345
        %v1410 = vmul.f32 %v1157, %v1346
        %v1411 = vmul.f32 %v1162, %v1347
        %v1412 = vmul.f32 %v1165, %v1348
        %v1413 = vmul.f32 %v1170, %v1349
        %v1414 = vmul.f32 %v1173, %v1350
        %v1415 = vmul.f32 %v1178, %v1351
        %v1416 = vmul.f32 %v1181, %v1352
        %v1417 = vmul.f32 %v1186, %v1353
        %v1418 = vmul.f32 %v1189, %v1354
        %v1419 = vadd.f32 %v1355, %v1356
        %v1420 = vadd.f32 %v1419, %v1357
        %v1421 = vadd.f32 %v1420, %v1358
        %v1422 = vadd.f32 %v1421, %v1359
        %v1423 = vadd.f32 %v1422, %v1360
        %v1424 = vadd.f32 %v1423, %v1361
        %v1425 = vadd.f32 %v1424, %v1362
        %v1426 = vadd.f32 %v1425, %v1363
        %v1427 = vadd.f32 %v1426, %v1364
        %v1428 = vadd.f32 %v1427, %v1365
        %v1429 = vadd.f32 %v1428, %v1366
        %v1430 = vadd.f32 %v1429, %v1367
        %v1431 = vadd.f32 %v1430, %v1368
        %v1432 = vadd.f32 %v1431, %v1369
        %v1433 = vadd.f32 %v1432, %v1370
        %v1434 = vadd.f32 %v1433, %v1371
        %v1435 = vadd.f32 %v1434, %v1372
        %v1436 = vadd.f32 %v1435, %v1373
        %v1437 = vadd.f32 %v1436, %v1374
        %v1438 = vadd.f32 %v1437, %v1375
        %v1439 = vadd.f32 %v1438, %v1376
        %v1440 = vadd.f32 %v1439, %v1377
        %v1441 = vadd.f32 %v1440, %v1378
        %v1442 = vadd.f32 %v1441, %v1379
        %v1443 = vadd.f32 %v1442, %v1380
        %v1444 = vadd.f32 %v1443, %v1381
        %v1445 = vadd.f32 %v1444, %v1382
        %v1446 = vadd.f32 %v1445, %v1383
        %v1447 = vadd.f32 %v1446, %v1384
        %v1448 = vadd.f32 %v1447, %v1385
        %v1449 = vadd.f32 %v1448, %v1386
        %v1450 = vrot.slane %v1449, 4
        %v1451 = vadd.f32 %v1449, %v1450
        %v1452 = vrot.slane %v1451, 2
        %v1453 = vadd.f32 %v1451, %v1452
        %v1454 = vrot.slane %v1453, 1
        %v1455 = vadd.f32 %v1453, %v1454
        %1456 = vst [vmem:[%s450] sm:$0x1] %v1455
        %v1457 = vmul.f32 %v1355, %v706
        %v1458 = vmul.f32 %v1356, %v709
        %v1459 = vmul.f32 %v1357, %v714
        %v1460 = vmul.f32 %v1358, %v717
        %v1461 = vmul.f32 %v1359, %v722
        %v1462 = vmul.f32 %v1360, %v725
        %v1463 = vmul.f32 %v1361, %v730
        %v1464 = vmul.f32 %v1362, %v733
        %v1465 = vmul.f32 %v1363, %v738
        %v1466 = vmul.f32 %v1364, %v741
        %v1467 = vmul.f32 %v1365, %v746
        %v1468 = vmul.f32 %v1366, %v749
        %v1469 = vmul.f32 %v1367, %v754
        %v1470 = vmul.f32 %v1368, %v757
        %v1471 = vmul.f32 %v1369, %v762
        %v1472 = vmul.f32 %v1370, %v765
        %v1473 = vmul.f32 %v1371, %v770
        %v1474 = vmul.f32 %v1372, %v773
        %v1475 = vmul.f32 %v1373, %v778
        %v1476 = vmul.f32 %v1374, %v781
        %v1477 = vmul.f32 %v1375, %v786
        %v1478 = vmul.f32 %v1376, %v789
        %v1479 = vmul.f32 %v1377, %v794
        %v1480 = vmul.f32 %v1378, %v797
        %v1481 = vmul.f32 %v1379, %v802
        %v1482 = vmul.f32 %v1380, %v805
        %v1483 = vmul.f32 %v1381, %v810
        %v1484 = vmul.f32 %v1382, %v813
        %v1485 = vmul.f32 %v1383, %v818
        %v1486 = vmul.f32 %v1384, %v821
        %v1487 = vmul.f32 %v1385, %v826
        %v1488 = vmul.f32 %v1386, %v829
        %v1489 = vadd.f32 %v1457, %v1458
        %v1490 = vadd.f32 %v1489, %v1459
        %v1491 = vadd.f32 %v1490, %v1460
        %v1492 = vadd.f32 %v1491, %v1461
        %v1493 = vadd.f32 %v1492, %v1462
        %v1494 = vadd.f32 %v1493, %v1463
        %v1495 = vadd.f32 %v1494, %v1464
        %v1496 = vadd.f32 %v1495, %v1465
        %v1497 = vadd.f32 %v1496, %v1466
        %v1498 = vadd.f32 %v1497, %v1467
        %v1499 = vadd.f32 %v1498, %v1468
        %v1500 = vadd.f32 %v1499, %v1469
        %v1501 = vadd.f32 %v1500, %v1470
        %v1502 = vadd.f32 %v1501, %v1471
        %v1503 = vadd.f32 %v1502, %v1472
        %v1504 = vadd.f32 %v1503, %v1473
        %v1505 = vadd.f32 %v1504, %v1474
        %v1506 = vadd.f32 %v1505, %v1475
        %v1507 = vadd.f32 %v1506, %v1476
        %v1508 = vadd.f32 %v1507, %v1477
        %v1509 = vadd.f32 %v1508, %v1478
        %v1510 = vadd.f32 %v1509, %v1479
        %v1511 = vadd.f32 %v1510, %v1480
        %v1512 = vadd.f32 %v1511, %v1481
        %v1513 = vadd.f32 %v1512, %v1482
        %v1514 = vadd.f32 %v1513, %v1483
        %v1515 = vadd.f32 %v1514, %v1484
        %v1516 = vadd.f32 %v1515, %v1485
        %v1517 = vadd.f32 %v1516, %v1486
        %v1518 = vadd.f32 %v1517, %v1487
        %v1519 = vadd.f32 %v1518, %v1488
        %v1520 = vrot.slane %v1519, 4
        %v1521 = vadd.f32 %v1519, %v1520
        %v1522 = vrot.slane %v1521, 2
        %v1523 = vadd.f32 %v1521, %v1522
        %v1524 = vrot.slane %v1523, 1
        %v1525 = vadd.f32 %v1523, %v1524
        %1526 = vst [vmem:[%s456] sm:$0x1] %v1525
        %v1527 = vadd.f32 %v1387, %v1388
        %v1528 = vadd.f32 %v1527, %v1389
        %v1529 = vadd.f32 %v1528, %v1390
        %v1530 = vadd.f32 %v1529, %v1391
        %v1531 = vadd.f32 %v1530, %v1392
        %v1532 = vadd.f32 %v1531, %v1393
        %v1533 = vadd.f32 %v1532, %v1394
        %v1534 = vadd.f32 %v1533, %v1395
        %v1535 = vadd.f32 %v1534, %v1396
        %v1536 = vadd.f32 %v1535, %v1397
        %v1537 = vadd.f32 %v1536, %v1398
        %v1538 = vadd.f32 %v1537, %v1399
        %v1539 = vadd.f32 %v1538, %v1400
        %v1540 = vadd.f32 %v1539, %v1401
        %v1541 = vadd.f32 %v1540, %v1402
        %v1542 = vadd.f32 %v1541, %v1403
        %v1543 = vadd.f32 %v1542, %v1404
        %v1544 = vadd.f32 %v1543, %v1405
        %v1545 = vadd.f32 %v1544, %v1406
        %v1546 = vadd.f32 %v1545, %v1407
        %v1547 = vadd.f32 %v1546, %v1408
        %v1548 = vadd.f32 %v1547, %v1409
        %v1549 = vadd.f32 %v1548, %v1410
        %v1550 = vadd.f32 %v1549, %v1411
        %v1551 = vadd.f32 %v1550, %v1412
        %v1552 = vadd.f32 %v1551, %v1413
        %v1553 = vadd.f32 %v1552, %v1414
        %v1554 = vadd.f32 %v1553, %v1415
        %v1555 = vadd.f32 %v1554, %v1416
        %v1556 = vadd.f32 %v1555, %v1417
        %v1557 = vadd.f32 %v1556, %v1418
        %v1558 = vrot.slane %v1557, 4
        %v1559 = vadd.f32 %v1557, %v1558
        %v1560 = vrot.slane %v1559, 2
        %v1561 = vadd.f32 %v1559, %v1560
        %v1562 = vrot.slane %v1561, 1
        %v1563 = vadd.f32 %v1561, %v1562
        %1564 = vst [vmem:[%s462] sm:$0x1] %v1563
        %v1565 = vmul.f32 %v1387, %v1066
        %v1566 = vmul.f32 %v1388, %v1069
        %v1567 = vmul.f32 %v1389, %v1074
        %v1568 = vmul.f32 %v1390, %v1077
        %v1569 = vmul.f32 %v1391, %v1082
        %v1570 = vmul.f32 %v1392, %v1085
        %v1571 = vmul.f32 %v1393, %v1090
        %v1572 = vmul.f32 %v1394, %v1093
        %v1573 = vmul.f32 %v1395, %v1098
        %v1574 = vmul.f32 %v1396, %v1101
        %v1575 = vmul.f32 %v1397, %v1106
        %v1576 = vmul.f32 %v1398, %v1109
        %v1577 = vmul.f32 %v1399, %v1114
        %v1578 = vmul.f32 %v1400, %v1117
        %v1579 = vmul.f32 %v1401, %v1122
        %v1580 = vmul.f32 %v1402, %v1125
        %v1581 = vmul.f32 %v1403, %v1130
        %v1582 = vmul.f32 %v1404, %v1133
        %v1583 = vmul.f32 %v1405, %v1138
        %v1584 = vmul.f32 %v1406, %v1141
        %v1585 = vmul.f32 %v1407, %v1146
        %v1586 = vmul.f32 %v1408, %v1149
        %v1587 = vmul.f32 %v1409, %v1154
        %v1588 = vmul.f32 %v1410, %v1157
        %v1589 = vmul.f32 %v1411, %v1162
        %v1590 = vmul.f32 %v1412, %v1165
        %v1591 = vmul.f32 %v1413, %v1170
        %v1592 = vmul.f32 %v1414, %v1173
        %v1593 = vmul.f32 %v1415, %v1178
        %v1594 = vmul.f32 %v1416, %v1181
        %v1595 = vmul.f32 %v1417, %v1186
        %v1596 = vmul.f32 %v1418, %v1189
        %v1597 = vadd.f32 %v1565, %v1566
        %v1598 = vadd.f32 %v1597, %v1567
        %v1599 = vadd.f32 %v1598, %v1568
        %v1600 = vadd.f32 %v1599, %v1569
        %v1601 = vadd.f32 %v1600, %v1570
        %v1602 = vadd.f32 %v1601, %v1571
        %v1603 = vadd.f32 %v1602, %v1572
        %v1604 = vadd.f32 %v1603, %v1573
        %v1605 = vadd.f32 %v1604, %v1574
        %v1606 = vadd.f32 %v1605, %v1575
        %v1607 = vadd.f32 %v1606, %v1576
        %v1608 = vadd.f32 %v1607, %v1577
        %v1609 = vadd.f32 %v1608, %v1578
        %v1610 = vadd.f32 %v1609, %v1579
        %v1611 = vadd.f32 %v1610, %v1580
        %v1612 = vadd.f32 %v1611, %v1581
        %v1613 = vadd.f32 %v1612, %v1582
        %v1614 = vadd.f32 %v1613, %v1583
        %v1615 = vadd.f32 %v1614, %v1584
        %v1616 = vadd.f32 %v1615, %v1585
        %v1617 = vadd.f32 %v1616, %v1586
        %v1618 = vadd.f32 %v1617, %v1587
        %v1619 = vadd.f32 %v1618, %v1588
        %v1620 = vadd.f32 %v1619, %v1589
        %v1621 = vadd.f32 %v1620, %v1590
        %v1622 = vadd.f32 %v1621, %v1591
        %v1623 = vadd.f32 %v1622, %v1592
        %v1624 = vadd.f32 %v1623, %v1593
        %v1625 = vadd.f32 %v1624, %v1594
        %v1626 = vadd.f32 %v1625, %v1595
        %v1627 = vadd.f32 %v1626, %v1596
        %v1628 = vrot.slane %v1627, 4
        %v1629 = vadd.f32 %v1627, %v1628
        %v1630 = vrot.slane %v1629, 2
        %v1631 = vadd.f32 %v1629, %v1630
        %v1632 = vrot.slane %v1631, 1
        %v1633 = vadd.f32 %v1631, %v1632
        %1634 = vst [vmem:[%s468] sm:$0x1] %v1633
        %s1635 = sand.u32 %s182, 1
        %s1636 = scalar_lea.sflag [#allocation4], %s1635
        %s1637 = sand.u32 %s182, 1
        %s1638 = scalar_lea.vmem [#allocation13], %s1637
        %s1639 = sand.u32 %s38, 1
        %s1640 = scalar_lea.sflag [#allocation15], %s1639
        %s1641 = sand.u32 %s208, 1
        %s1642 = scalar_lea.vmem [#allocation14], %s1641
        %s1643 = sand.u32 %s38, 1
        %s1644 = scalar_lea.sflag [#allocation15], %s1643
        %s1645 = sand.u32 %s234, 1
        %s1646 = scalar_lea.vmem [#allocation16], %s1645
        %s1647 = sand.u32 %s260, 1
        %s1648 = scalar_lea.sflag [#allocation18], %s1647
        %s1649 = sand.u32 %s260, 1
        %s1650 = scalar_lea.vmem [#allocation17], %s1649
        // Predicated region
        $region69: #{attention_block_forward.3} parent=43 // pred_check
          %p1651 = pneg %p192
        $region70: #{attention_block_forward.3} parent=43 // pred_check_branch
          %1653 = sbr.rel (%p1651) target = $region72
        $region71: #{attention_block_forward.3} parent=43 // pred_region
          %s1655 = ssub.s32 16, 16
          %1656 = vsyncadd %s1636, %s1655
          %s1657 = smul.addr %s38, 16
          %s1658 = scalar_lea.hbm %s6, %s1657
          %s1660 = sshll.u32 %s1638, 4
          %s1661 = int_to_ptr.vmem [resolvable:$true] %s1660
          %1663 = dma.vmem_to_hbm [thread:$0]  %s1661, 16, %s1658, %s1636
        $region72: #{attention_block_forward.3} parent=43 // pred_fallthru
          _
        // Predicated region
        $region73: #{attention_block_forward.3} parent=43 // pred_check
          %p1664 = pneg %p218
        $region74: #{attention_block_forward.3} parent=43 // pred_check_branch
          %1666 = sbr.rel (%p1664) target = $region76
        $region75: #{attention_block_forward.3} parent=43 // pred_region
          %s1668 = ssub.s32 16, 16
          %1669 = vsyncadd %s1640, %s1668
          %s1670 = smul.addr %s38, 16
          %s1671 = scalar_lea.hbm %s7, %s1670
          %s1673 = sshll.u32 %s1642, 4
          %s1674 = int_to_ptr.vmem [resolvable:$true] %s1673
          %1676 = dma.vmem_to_hbm [thread:$0]  %s1674, 16, %s1671, %s1640
        $region76: #{attention_block_forward.3} parent=43 // pred_fallthru
          _
        // Predicated region
        $region77: #{attention_block_forward.3} parent=43 // pred_check
          %p1677 = pneg %p244
        $region78: #{attention_block_forward.3} parent=43 // pred_check_branch
          %1679 = sbr.rel (%p1677) target = $region80
        $region79: #{attention_block_forward.3} parent=43 // pred_region
          %s1681 = ssub.s32 16, 16
          %1682 = vsyncadd %s1644, %s1681
          %s1683 = smul.addr %s38, 16
          %s1684 = scalar_lea.hbm %s8, %s1683
          %s1686 = sshll.u32 %s1646, 4
          %s1687 = int_to_ptr.vmem [resolvable:$true] %s1686
          %1689 = dma.vmem_to_hbm [thread:$0]  %s1687, 16, %s1684, %s1644
        $region80: #{attention_block_forward.3} parent=43 // pred_fallthru
          _
        // Predicated region
        $region81: #{attention_block_forward.3} parent=43 // pred_check
          %p1690 = pneg %p270
        $region82: #{attention_block_forward.3} parent=43 // pred_check_branch
          %1692 = sbr.rel (%p1690) target = $region84
        $region83: #{attention_block_forward.3} parent=43 // pred_region
          %s1694 = ssub.s32 16, 16
          %1695 = vsyncadd %s1648, %s1694
          %s1696 = smul.addr %s38, 16
          %s1697 = scalar_lea.hbm %s9, %s1696
          %s1699 = sshll.u32 %s1650, 4
          %s1700 = int_to_ptr.vmem [resolvable:$true] %s1699
          %1702 = dma.vmem_to_hbm [thread:$0]  %s1700, 16, %s1697, %s1648
        $region84: #{attention_block_forward.3} parent=43 // pred_fallthru
          _
      $region44: #{attention_block_forward.3} parent=5 // pred_fallthru
        _
      %p1703 = scmp.le.s32.totalorder 2, %s33
      // Predicated region
      $region85: #{attention_block_forward.3} parent=5 // pred_check
        %p1704 = pneg %p1703
      $region86: #{attention_block_forward.3} parent=5 // pred_check_branch
        %1706 = sbr.rel (%p1704) target = $region88
      $region87: #{attention_block_forward.3} parent=5 // pred_region
        %s1707 = ssub.s32 %s33, 2
        // Predicated region
        $region89: #{attention_block_forward.3} parent=87 // pred_check
          %p1708 = pneg %p198
        $region90: #{attention_block_forward.3} parent=87 // pred_check_branch
          %1710 = sbr.rel (%p1708) target = $region92
        $region91: #{attention_block_forward.3} parent=87 // pred_region
          %s1711 = sand.u32 %s183, 1
          %s1712 = scalar_lea.sflag [#allocation4], %s1711
          %s1713 = sand.u32 %s183, 1
          %s1714 = scalar_lea.vmem [#allocation13], %s1713
          %1715 = dma.done %s1712, 16
        $region92: #{attention_block_forward.3} parent=87 // pred_fallthru
          _
        // Predicated region
        $region93: #{attention_block_forward.3} parent=87 // pred_check
          %p1716 = pneg %p224
        $region94: #{attention_block_forward.3} parent=87 // pred_check_branch
          %1718 = sbr.rel (%p1716) target = $region96
        $region95: #{attention_block_forward.3} parent=87 // pred_region
          %s1719 = sand.u32 %s39, 1
          %s1720 = scalar_lea.sflag [#allocation15], %s1719
          %s1721 = sand.u32 %s209, 1
          %s1722 = scalar_lea.vmem [#allocation14], %s1721
          %1723 = dma.done %s1720, 16
        $region96: #{attention_block_forward.3} parent=87 // pred_fallthru
          _
        // Predicated region
        $region97: #{attention_block_forward.3} parent=87 // pred_check
          %p1724 = pneg %p250
        $region98: #{attention_block_forward.3} parent=87 // pred_check_branch
          %1726 = sbr.rel (%p1724) target = $region100
        $region99: #{attention_block_forward.3} parent=87 // pred_region
          %s1727 = sand.u32 %s39, 1
          %s1728 = scalar_lea.sflag [#allocation15], %s1727
          %s1729 = sand.u32 %s235, 1
          %s1730 = scalar_lea.vmem [#allocation16], %s1729
          %1731 = dma.done %s1728, 16
        $region100: #{attention_block_forward.3} parent=87 // pred_fallthru
          _
        // Predicated region
        $region101: #{attention_block_forward.3} parent=87 // pred_check
          %p1732 = pneg %p276
        $region102: #{attention_block_forward.3} parent=87 // pred_check_branch
          %1734 = sbr.rel (%p1732) target = $region104
        $region103: #{attention_block_forward.3} parent=87 // pred_region
          %s1735 = sand.u32 %s261, 1
          %s1736 = scalar_lea.sflag [#allocation18], %s1735
          %s1737 = sand.u32 %s261, 1
          %s1738 = scalar_lea.vmem [#allocation17], %s1737
          %1739 = dma.done %s1736, 16
        $region104: #{attention_block_forward.3} parent=87 // pred_fallthru
          _
      $region88: #{attention_block_forward.3} parent=5 // pred_fallthru
        _
    $region6: #{attention_block_forward.3} parent=1 // loop_footer
      %s37 = sadd.s32 1, %s33
    $region7: #{attention_block_forward.3} parent=1 // loop_footer_branch
      %32 = sbr.rel target = $region3
    $region8: #{attention_block_forward.3} parent=1 // loop_exit
      _
    %1740 = vsyncpa [#allocation3], 1
    %s1741 = scalar_lea.sflag [#allocation3], 1
    %1742 = vsyncpa %s1741, 1
    %1743 = vsyncpa [#allocation6], 1
    %s1744 = scalar_lea.sflag [#allocation6], 1
    %1745 = vsyncpa %s1744, 1
    %1746 = vsyncpa [#allocation9], 1
    %1747 = vsyncpa [#allocation12], 1
    %1748 = vsyncpa [#allocation4], 1
    %s1749 = scalar_lea.sflag [#allocation4], 1
    %1750 = vsyncpa %s1749, 1
    %1751 = vsyncpa [#allocation15], 1
    %s1752 = scalar_lea.sflag [#allocation15], 1
    %1753 = vsyncpa %s1752, 1
    %1754 = vsyncpa [#allocation18], 1
    %s1755 = scalar_lea.sflag [#allocation18], 1
    %1756 = vsyncpa %s1755, 1

// kernel: attention_block_forward.4
$region0: #{attention_block_forward.4}
  #allocation0 [shape = 'u32[]', space=smem, size = 0x4, offset = 0x4, fixed_abs, tag = 'smem constant byte address 0x4 - core index']
  #allocation1 [shape = 'u32[144,128]{1,0:T(1,128)}', space=vmem, size = 0x12000, scoped, tag = 'internal scratch']
  #allocation2 [shape = 'f32[1,1]{1,0:T(1,128)S(6)}', space=smem, size = 0x200, scoped, tag = 'scoped memory for attention_block_forward.4']
  %s0 = inlined_call_operand.hbm [shape: bf16[512,128], index: 0, kind: input, shape index: {}]
  %s1 = inlined_call_operand.hbm [shape: bf16[512,128], index: 1, kind: input, shape index: {}]
  %s2 = inlined_call_operand.hbm [shape: bf16[128,128], index: 2, kind: input, shape index: {}]
  %s3 = inlined_call_operand.hbm [shape: bf16[128,128], index: 3, kind: input, shape index: {}]
  %s4 = inlined_call_operand.hbm [shape: f32[1,128], index: 4, kind: input, shape index: {}]
  %s5 = inlined_call_operand.hbm [shape: f32[1,128], index: 5, kind: input, shape index: {}]
  %s6 = inlined_call_operand.hbm [shape: f32[1,128], index: 6, kind: input, shape index: {}]
  %s7 = inlined_call_operand.hbm [shape: f32[1,128], index: 7, kind: input, shape index: {}]
  %s8 = inlined_call_operand.hbm [shape: f32[1,128], index: 8, kind: input, shape index: {}]
  %s9 = inlined_call_operand.<no memory space> [shape: f32[1,1], index: 9, kind: input, shape index: {}]
  %s10 = inlined_call_operand.hbm [shape: f32[512,1], index: 10, kind: output, shape index: {0}]
  %s11 = inlined_call_operand.hbm [shape: f32[2,1,1], index: 11, kind: output, shape index: {1}]
  %s12 = inlined_call_operand.hbm [shape: f32[2,1,1], index: 12, kind: output, shape index: {2}]
  %13 = xla_tuple %s10, %s11, %s12
  %s14 = sld [smem:[#allocation0]]
  $region125: #{attention_block_forward.4} parent=0
    _
  %s16 = ssub.s32 1, %s14
  %s17 = scalar_select 0, %s16, %s14
  %18 = sst [smem:[#allocation2]] %s9
  $region1: #{attention_block_forward.4} parent=0
    #allocation3 [shape = 'u8[131072]{0}', space=vmem, size = 0x20000, scoped, tag = 'input window, operand 0']
    #allocation4 [shape = 's32[2]{0}', space=sflag, size = 0x8, scoped, tag = 'scoped memory for attention_block_forward.4']
    #allocation5 [shape = 's32[2]{0}', space=sflag, size = 0x8, scoped, tag = 'scoped memory for attention_block_forward.4']
    #allocation6 [shape = 'u8[131072]{0}', space=vmem, size = 0x20000, scoped, tag = 'input window, operand 1']
    #allocation7 [shape = 's32[2]{0}', space=sflag, size = 0x8, scoped, tag = 'scoped memory for attention_block_forward.4']
    #allocation8 [shape = 'u8[32768]{0}', space=vmem, size = 0x8000, scoped, tag = 'input window, operand 2, single buffered']
    #allocation9 [shape = 'u8[32768]{0}', space=vmem, size = 0x8000, scoped, tag = 'input window, operand 3, single buffered']
    #allocation10 [shape = 's32[1]{0}', space=sflag, size = 0x4, scoped, tag = 'scoped memory for attention_block_forward.4']
    #allocation11 [shape = 'u8[512]{0}', space=vmem, size = 0x400, scoped, tag = 'input window, operand 4, single buffered']
    #allocation12 [shape = 'u8[512]{0}', space=vmem, size = 0x400, scoped, tag = 'input window, operand 5, single buffered']
    #allocation13 [shape = 's32[1]{0}', space=sflag, size = 0x4, scoped, tag = 'scoped memory for attention_block_forward.4']
    #allocation14 [shape = 'u8[512]{0}', space=vmem, size = 0x400, scoped, tag = 'input window, operand 6, single buffered']
    #allocation15 [shape = 'u8[512]{0}', space=vmem, size = 0x400, scoped, tag = 'input window, operand 7, single buffered']
    #allocation16 [shape = 's32[1]{0}', space=sflag, size = 0x4, scoped, tag = 'scoped memory for attention_block_forward.4']
    #allocation17 [shape = 'u8[512]{0}', space=vmem, size = 0x400, scoped, tag = 'input window, operand 8, single buffered']
    #allocation18 [shape = 'u8[262144]{0}', space=vmem, size = 0x40000, scoped, tag = 'output window, operand 0']
    #allocation19 [shape = 'u8[1024]{0}', space=vmem, size = 0x400, scoped, tag = 'output window, operand 1']
    #allocation20 [shape = 's32[2]{0}', space=sflag, size = 0x8, scoped, tag = 'scoped memory for attention_block_forward.4']
    #allocation21 [shape = 'u8[1024]{0}', space=vmem, size = 0x400, scoped, tag = 'output window, operand 2']
    %19 = vsyncpa [#allocation4], 0
    %s20 = scalar_lea.sflag [#allocation4], 1
    %21 = vsyncpa %s20, 0
    %22 = vsyncpa [#allocation7], 0
    %s23 = scalar_lea.sflag [#allocation7], 1
    %24 = vsyncpa %s23, 0
    %25 = vsyncpa [#allocation10], 0
    %26 = vsyncpa [#allocation13], 0
    %27 = vsyncpa [#allocation16], 0
    %28 = vsyncpa [#allocation5], 0
    %s29 = scalar_lea.sflag [#allocation5], 1
    %30 = vsyncpa %s29, 0
    %31 = vsyncpa [#allocation20], 0
    %s32 = scalar_lea.sflag [#allocation20], 1
    %33 = vsyncpa %s32, 0
    loop: start=0, step=1, limit=4
    $region2: #{attention_block_forward.4} parent=1 // loop_pre_header
      _
    $region3: #{attention_block_forward.4} parent=1 // loop_header
      %s35 = sphi 0, %s39
      %p36 = scmp.ge.s32.totalorder %s35, 4
      %s45 = sphi 0, %s47
      %s48 = sphi 0, %s45
      %s49 = sphi 0, %s48
      %s65 = sphi 0, %s49
      %s71 = sphi 0, %s73
      %s74 = sphi 0, %s71
      %s75 = sphi 0, %s74
      %s91 = sphi 0, %s75
      %s95 = sphi 0, %s95
      %s97 = sphi 0, %s95
      %s98 = sphi 0, %s97
      %s112 = sphi 0, %s98
      %s116 = sphi 0, %s116
      %s118 = sphi 0, %s116
      %s119 = sphi 0, %s118
      %s133 = sphi 0, %s119
      %s137 = sphi 0, %s137
      %s139 = sphi 0, %s137
      %s140 = sphi 0, %s139
      %s154 = sphi 0, %s140
      %s158 = sphi 0, %s158
      %s160 = sphi 0, %s158
      %s161 = sphi 0, %s160
      %s175 = sphi 0, %s161
      %s179 = sphi 0, %s179
      %s181 = sphi 0, %s179
      %s182 = sphi 0, %s181
      %s196 = sphi 0, %s182
      %s200 = sphi 0, %s200
      %s202 = sphi 0, %s200
      %s203 = sphi 0, %s202
      %s217 = sphi 0, %s203
      %s221 = sphi 0, %s221
      %s223 = sphi 0, %s221
      %s224 = sphi 0, %s223
      %s238 = sphi 0, %s224
      %s242 = sphi 0, %s242
      %s244 = sphi 0, %s242
      %s245 = sphi 0, %s244
      %s259 = sphi 0, %s245
      %s265 = sphi 0, %s267
      %s268 = sphi 0, %s265
      %s269 = sphi 0, %s268
      %s285 = sphi 0, %s269
      %s291 = sphi 0, %s293
      %s294 = sphi 0, %s291
      %s295 = sphi 0, %s294
      %s311 = sphi 0, %s295
      %s317 = sphi 0, %s319
      %s320 = sphi 0, %s317
      %s321 = sphi 0, %s320
      %s337 = sphi 0, %s321
    $region4: #{attention_block_forward.4} parent=1 // loop_header_branch
      %38 = sbr.rel (%p36) target = $region8
    $region5: #{attention_block_forward.4} parent=1 // loop_body
      %s40 = ssub.s32 %s35, 1
      %s41 = ssub.s32 %s35, 2
      %s42 = sadd.s32 %s35, 1
      %s43 = ssub.s32 %s35, %s42
      %p44 = scmp.eq.s32.totalorder %s43, 0
      %s46 = sadd.s32 %s45, 1
      %s47 = scalar_select %p44, %s45, %s46
      %p50 = pneg %p44
      %p51 = scmp.eq.s32.totalorder %s35, 1
      %p52 = por %p50, %p51
      %p53 = scmp.ne.s32.totalorder %s45, %s48
      %p54 = scmp.eq.s32.totalorder %s35, 0
      %p55 = por %p53, %p54
      %p56 = scmp.ne.s32.totalorder %s45, %s48
      %p57 = scmp.eq.s32.totalorder %s40, 1
      %p58 = por %p56, %p57
      %p59 = scmp.ne.s32.totalorder %s48, %s49
      %p60 = scmp.eq.s32.totalorder %s40, 0
      %p61 = por %p59, %p60
      %p62 = scmp.ne.s32.totalorder %s48, %s49
      %p63 = scmp.eq.s32.totalorder %s41, 1
      %p64 = por %p62, %p63
      %p66 = scmp.ne.s32.totalorder %s49, %s65
      %p67 = scmp.eq.s32.totalorder %s41, 0
      %p68 = por %p66, %p67
      %s69 = ssub.s32 %s35, %s42
      %p70 = scmp.eq.s32.totalorder %s69, 0
      %s72 = sadd.s32 %s71, 1
      %s73 = scalar_select %p70, %s71, %s72
      %p76 = pneg %p70
      %p77 = scmp.eq.s32.totalorder %s35, 1
      %p78 = por %p76, %p77
      %p79 = scmp.ne.s32.totalorder %s71, %s74
      %p80 = scmp.eq.s32.totalorder %s35, 0
      %p81 = por %p79, %p80
      %p82 = scmp.ne.s32.totalorder %s71, %s74
      %p83 = scmp.eq.s32.totalorder %s40, 1
      %p84 = por %p82, %p83
      %p85 = scmp.ne.s32.totalorder %s74, %s75
      %p86 = scmp.eq.s32.totalorder %s40, 0
      %p87 = por %p85, %p86
      %p88 = scmp.ne.s32.totalorder %s74, %s75
      %p89 = scmp.eq.s32.totalorder %s41, 1
      %p90 = por %p88, %p89
      %p92 = scmp.ne.s32.totalorder %s75, %s91
      %p93 = scmp.eq.s32.totalorder %s41, 0
      %p94 = por %p92, %p93
      %s96 = sadd.s32 %s95, 1
      %p99 = scmp.eq.s32.totalorder %s35, 1
      %p100 = scmp.ne.s32.totalorder %s95, %s97
      %p101 = scmp.eq.s32.totalorder %s35, 0
      %p102 = por %p100, %p101
      %p103 = scmp.ne.s32.totalorder %s95, %s97
      %p104 = scmp.eq.s32.totalorder %s40, 1
      %p105 = por %p103, %p104
      %p106 = scmp.ne.s32.totalorder %s97, %s98
      %p107 = scmp.eq.s32.totalorder %s40, 0
      %p108 = por %p106, %p107
      %p109 = scmp.ne.s32.totalorder %s97, %s98
      %p110 = scmp.eq.s32.totalorder %s41, 1
      %p111 = por %p109, %p110
      %p113 = scmp.ne.s32.totalorder %s98, %s112
      %p114 = scmp.eq.s32.totalorder %s41, 0
      %p115 = por %p113, %p114
      %s117 = sadd.s32 %s116, 1
      %p120 = scmp.eq.s32.totalorder %s35, 1
      %p121 = scmp.ne.s32.totalorder %s116, %s118
      %p122 = scmp.eq.s32.totalorder %s35, 0
      %p123 = por %p121, %p122
      %p124 = scmp.ne.s32.totalorder %s116, %s118
      %p125 = scmp.eq.s32.totalorder %s40, 1
      %p126 = por %p124, %p125
      %p127 = scmp.ne.s32.totalorder %s118, %s119
      %p128 = scmp.eq.s32.totalorder %s40, 0
      %p129 = por %p127, %p128
      %p130 = scmp.ne.s32.totalorder %s118, %s119
      %p131 = scmp.eq.s32.totalorder %s41, 1
      %p132 = por %p130, %p131
      %p134 = scmp.ne.s32.totalorder %s119, %s133
      %p135 = scmp.eq.s32.totalorder %s41, 0
      %p136 = por %p134, %p135
      %s138 = sadd.s32 %s137, 1
      %p141 = scmp.eq.s32.totalorder %s35, 1
      %p142 = scmp.ne.s32.totalorder %s137, %s139
      %p143 = scmp.eq.s32.totalorder %s35, 0
      %p144 = por %p142, %p143
      %p145 = scmp.ne.s32.totalorder %s137, %s139
      %p146 = scmp.eq.s32.totalorder %s40, 1
      %p147 = por %p145, %p146
      %p148 = scmp.ne.s32.totalorder %s139, %s140
      %p149 = scmp.eq.s32.totalorder %s40, 0
      %p150 = por %p148, %p149
      %p151 = scmp.ne.s32.totalorder %s139, %s140
      %p152 = scmp.eq.s32.totalorder %s41, 1
      %p153 = por %p151, %p152
      %p155 = scmp.ne.s32.totalorder %s140, %s154
      %p156 = scmp.eq.s32.totalorder %s41, 0
      %p157 = por %p155, %p156
      %s159 = sadd.s32 %s158, 1
      %p162 = scmp.eq.s32.totalorder %s35, 1
      %p163 = scmp.ne.s32.totalorder %s158, %s160
      %p164 = scmp.eq.s32.totalorder %s35, 0
      %p165 = por %p163, %p164
      %p166 = scmp.ne.s32.totalorder %s158, %s160
      %p167 = scmp.eq.s32.totalorder %s40, 1
      %p168 = por %p166, %p167
      %p169 = scmp.ne.s32.totalorder %s160, %s161
      %p170 = scmp.eq.s32.totalorder %s40, 0
      %p171 = por %p169, %p170
      %p172 = scmp.ne.s32.totalorder %s160, %s161
      %p173 = scmp.eq.s32.totalorder %s41, 1
      %p174 = por %p172, %p173
      %p176 = scmp.ne.s32.totalorder %s161, %s175
      %p177 = scmp.eq.s32.totalorder %s41, 0
      %p178 = por %p176, %p177
      %s180 = sadd.s32 %s179, 1
      %p183 = scmp.eq.s32.totalorder %s35, 1
      %p184 = scmp.ne.s32.totalorder %s179, %s181
      %p185 = scmp.eq.s32.totalorder %s35, 0
      %p186 = por %p184, %p185
      %p187 = scmp.ne.s32.totalorder %s179, %s181
      %p188 = scmp.eq.s32.totalorder %s40, 1
      %p189 = por %p187, %p188
      %p190 = scmp.ne.s32.totalorder %s181, %s182
      %p191 = scmp.eq.s32.totalorder %s40, 0
      %p192 = por %p190, %p191
      %p193 = scmp.ne.s32.totalorder %s181, %s182
      %p194 = scmp.eq.s32.totalorder %s41, 1
      %p195 = por %p193, %p194
      %p197 = scmp.ne.s32.totalorder %s182, %s196
      %p198 = scmp.eq.s32.totalorder %s41, 0
      %p199 = por %p197, %p198
      %s201 = sadd.s32 %s200, 1
      %p204 = scmp.eq.s32.totalorder %s35, 1
      %p205 = scmp.ne.s32.totalorder %s200, %s202
      %p206 = scmp.eq.s32.totalorder %s35, 0
      %p207 = por %p205, %p206
      %p208 = scmp.ne.s32.totalorder %s200, %s202
      %p209 = scmp.eq.s32.totalorder %s40, 1
      %p210 = por %p208, %p209
      %p211 = scmp.ne.s32.totalorder %s202, %s203
      %p212 = scmp.eq.s32.totalorder %s40, 0
      %p213 = por %p211, %p212
      %p214 = scmp.ne.s32.totalorder %s202, %s203
      %p215 = scmp.eq.s32.totalorder %s41, 1
      %p216 = por %p214, %p215
      %p218 = scmp.ne.s32.totalorder %s203, %s217
      %p219 = scmp.eq.s32.totalorder %s41, 0
      %p220 = por %p218, %p219
      %s222 = sadd.s32 %s221, 1
      %p225 = scmp.eq.s32.totalorder %s35, 1
      %p226 = scmp.ne.s32.totalorder %s221, %s223
      %p227 = scmp.eq.s32.totalorder %s35, 0
      %p228 = por %p226, %p227
      %p229 = scmp.ne.s32.totalorder %s221, %s223
      %p230 = scmp.eq.s32.totalorder %s40, 1
      %p231 = por %p229, %p230
      %p232 = scmp.ne.s32.totalorder %s223, %s224
      %p233 = scmp.eq.s32.totalorder %s40, 0
      %p234 = por %p232, %p233
      %p235 = scmp.ne.s32.totalorder %s223, %s224
      %p236 = scmp.eq.s32.totalorder %s41, 1
      %p237 = por %p235, %p236
      %p239 = scmp.ne.s32.totalorder %s224, %s238
      %p240 = scmp.eq.s32.totalorder %s41, 0
      %p241 = por %p239, %p240
      %s243 = sadd.s32 %s242, 1
      %p246 = scmp.eq.s32.totalorder %s35, 1
      %p247 = scmp.ne.s32.totalorder %s242, %s244
      %p248 = scmp.eq.s32.totalorder %s35, 0
      %p249 = por %p247, %p248
      %p250 = scmp.ne.s32.totalorder %s242, %s244
      %p251 = scmp.eq.s32.totalorder %s40, 1
      %p252 = por %p250, %p251
      %p253 = scmp.ne.s32.totalorder %s244, %s245
      %p254 = scmp.eq.s32.totalorder %s40, 0
      %p255 = por %p253, %p254
      %p256 = scmp.ne.s32.totalorder %s244, %s245
      %p257 = scmp.eq.s32.totalorder %s41, 1
      %p258 = por %p256, %p257
      %p260 = scmp.ne.s32.totalorder %s245, %s259
      %p261 = scmp.eq.s32.totalorder %s41, 0
      %p262 = por %p260, %p261
      %s263 = ssub.s32 %s35, %s42
      %p264 = scmp.eq.s32.totalorder %s263, 0
      %s266 = sadd.s32 %s265, 1
      %s267 = scalar_select %p264, %s265, %s266
      %p270 = pneg %p264
      %p271 = scmp.eq.s32.totalorder %s35, 1
      %p272 = por %p270, %p271
      %p273 = scmp.ne.s32.totalorder %s265, %s268
      %p274 = scmp.eq.s32.totalorder %s35, 0
      %p275 = por %p273, %p274
      %p276 = scmp.ne.s32.totalorder %s265, %s268
      %p277 = scmp.eq.s32.totalorder %s40, 1
      %p278 = por %p276, %p277
      %p279 = scmp.ne.s32.totalorder %s268, %s269
      %p280 = scmp.eq.s32.totalorder %s40, 0
      %p281 = por %p279, %p280
      %p282 = scmp.ne.s32.totalorder %s268, %s269
      %p283 = scmp.eq.s32.totalorder %s41, 1
      %p284 = por %p282, %p283
      %p286 = scmp.ne.s32.totalorder %s269, %s285
      %p287 = scmp.eq.s32.totalorder %s41, 0
      %p288 = por %p286, %p287
      %s289 = ssub.s32 %s35, %s42
      %p290 = scmp.eq.s32.totalorder %s289, 0
      %s292 = sadd.s32 %s291, 1
      %s293 = scalar_select %p290, %s291, %s292
      %p296 = pneg %p290
      %p297 = scmp.eq.s32.totalorder %s35, 1
      %p298 = por %p296, %p297
      %p299 = scmp.ne.s32.totalorder %s291, %s294
      %p300 = scmp.eq.s32.totalorder %s35, 0
      %p301 = por %p299, %p300
      %p302 = scmp.ne.s32.totalorder %s291, %s294
      %p303 = scmp.eq.s32.totalorder %s40, 1
      %p304 = por %p302, %p303
      %p305 = scmp.ne.s32.totalorder %s294, %s295
      %p306 = scmp.eq.s32.totalorder %s40, 0
      %p307 = por %p305, %p306
      %p308 = scmp.ne.s32.totalorder %s294, %s295
      %p309 = scmp.eq.s32.totalorder %s41, 1
      %p310 = por %p308, %p309
      %p312 = scmp.ne.s32.totalorder %s295, %s311
      %p313 = scmp.eq.s32.totalorder %s41, 0
      %p314 = por %p312, %p313
      %s315 = ssub.s32 %s35, %s42
      %p316 = scmp.eq.s32.totalorder %s315, 0
      %s318 = sadd.s32 %s317, 1
      %s319 = scalar_select %p316, %s317, %s318
      %p322 = pneg %p316
      %p323 = scmp.eq.s32.totalorder %s35, 1
      %p324 = por %p322, %p323
      %p325 = scmp.ne.s32.totalorder %s317, %s320
      %p326 = scmp.eq.s32.totalorder %s35, 0
      %p327 = por %p325, %p326
      %p328 = scmp.ne.s32.totalorder %s317, %s320
      %p329 = scmp.eq.s32.totalorder %s40, 1
      %p330 = por %p328, %p329
      %p331 = scmp.ne.s32.totalorder %s320, %s321
      %p332 = scmp.eq.s32.totalorder %s40, 0
      %p333 = por %p331, %p332
      %p334 = scmp.ne.s32.totalorder %s320, %s321
      %p335 = scmp.eq.s32.totalorder %s41, 1
      %p336 = por %p334, %p335
      %p338 = scmp.ne.s32.totalorder %s321, %s337
      %p339 = scmp.eq.s32.totalorder %s41, 0
      %p340 = por %p338, %p339
      %p341 = scmp.le.s32.totalorder 1, %s35
      %p342 = scmp.lt.s32.totalorder %s35, 3
      %p343 = pnand %p341, %p342
      %p344 = pneg %p343
      // Predicated region
      $region9: #{attention_block_forward.4} parent=5 // pred_check
        _
      $region10: #{attention_block_forward.4} parent=5 // pred_check_branch
        %346 = sbr.rel (%p343) target = $region12
      $region11: #{attention_block_forward.4} parent=5 // pred_region
        %s347 = ssub.s32 %s35, 1
        // Predicated region
        $region13: #{attention_block_forward.4} parent=11 // pred_check
          %p348 = pneg %p108
        $region14: #{attention_block_forward.4} parent=11 // pred_check_branch
          %350 = sbr.rel (%p348) target = $region16
        $region15: #{attention_block_forward.4} parent=11 // pred_region
          %s352 = ssub.s32 1024, 1024
          %353 = vsyncadd [#allocation7], %s352
          %s354 = sshll.u32 [#allocation8], 4
          %s355 = int_to_ptr.vmem [resolvable:$true] %s354
          %360 = dma.hbm_to_vmem [thread:$0]  %s2, 1024, %s355, [#allocation7], 64, 64, 4
        $region16: #{attention_block_forward.4} parent=11 // pred_fallthru
          _
        // Predicated region
        $region17: #{attention_block_forward.4} parent=11 // pred_check
          %p361 = pneg %p129
        $region18: #{attention_block_forward.4} parent=11 // pred_check_branch
          %363 = sbr.rel (%p361) target = $region20
        $region19: #{attention_block_forward.4} parent=11 // pred_region
          %s365 = ssub.s32 1024, 1024
          %366 = vsyncadd [#allocation10], %s365
          %s367 = sshll.u32 [#allocation9], 4
          %s368 = int_to_ptr.vmem [resolvable:$true] %s367
          %373 = dma.hbm_to_vmem [thread:$0]  %s3, 1024, %s368, [#allocation10], 64, 64, 4
        $region20: #{attention_block_forward.4} parent=11 // pred_fallthru
          _
        // Predicated region
        $region21: #{attention_block_forward.4} parent=11 // pred_check
          %p374 = pneg %p150
        $region22: #{attention_block_forward.4} parent=11 // pred_check_branch
          %376 = sbr.rel (%p374) target = $region24
        $region23: #{attention_block_forward.4} parent=11 // pred_region
          %s378 = ssub.s32 16, 16
          %379 = vsyncadd [#allocation10], %s378
          %s381 = sshll.u32 [#allocation11], 4
          %s382 = int_to_ptr.vmem [resolvable:$true] %s381
          %384 = dma.hbm_to_vmem [thread:$0]  %s4, 16, %s382, [#allocation10]
        $region24: #{attention_block_forward.4} parent=11 // pred_fallthru
          _
        // Predicated region
        $region25: #{attention_block_forward.4} parent=11 // pred_check
          %p385 = pneg %p171
        $region26: #{attention_block_forward.4} parent=11 // pred_check_branch
          %387 = sbr.rel (%p385) target = $region28
        $region27: #{attention_block_forward.4} parent=11 // pred_region
          %s389 = ssub.s32 16, 16
          %390 = vsyncadd [#allocation13], %s389
          %s392 = sshll.u32 [#allocation12], 4
          %s393 = int_to_ptr.vmem [resolvable:$true] %s392
          %395 = dma.hbm_to_vmem [thread:$0]  %s5, 16, %s393, [#allocation13]
        $region28: #{attention_block_forward.4} parent=11 // pred_fallthru
          _
        // Predicated region
        $region29: #{attention_block_forward.4} parent=11 // pred_check
          %p396 = pneg %p192
        $region30: #{attention_block_forward.4} parent=11 // pred_check_branch
          %398 = sbr.rel (%p396) target = $region32
        $region31: #{attention_block_forward.4} parent=11 // pred_region
          %s400 = ssub.s32 16, 16
          %401 = vsyncadd [#allocation13], %s400
          %s403 = sshll.u32 [#allocation14], 4
          %s404 = int_to_ptr.vmem [resolvable:$true] %s403
          %406 = dma.hbm_to_vmem [thread:$0]  %s6, 16, %s404, [#allocation13]
        $region32: #{attention_block_forward.4} parent=11 // pred_fallthru
          _
        // Predicated region
        $region33: #{attention_block_forward.4} parent=11 // pred_check
          %p407 = pneg %p213
        $region34: #{attention_block_forward.4} parent=11 // pred_check_branch
          %409 = sbr.rel (%p407) target = $region36
        $region35: #{attention_block_forward.4} parent=11 // pred_region
          %s411 = ssub.s32 16, 16
          %412 = vsyncadd [#allocation16], %s411
          %s414 = sshll.u32 [#allocation15], 4
          %s415 = int_to_ptr.vmem [resolvable:$true] %s414
          %417 = dma.hbm_to_vmem [thread:$0]  %s7, 16, %s415, [#allocation16]
        $region36: #{attention_block_forward.4} parent=11 // pred_fallthru
          _
        // Predicated region
        $region37: #{attention_block_forward.4} parent=11 // pred_check
          %p418 = pneg %p234
        $region38: #{attention_block_forward.4} parent=11 // pred_check_branch
          %420 = sbr.rel (%p418) target = $region40
        $region39: #{attention_block_forward.4} parent=11 // pred_region
          %s422 = ssub.s32 16, 16
          %423 = vsyncadd [#allocation16], %s422
          %s425 = sshll.u32 [#allocation17], 4
          %s426 = int_to_ptr.vmem [resolvable:$true] %s425
          %428 = dma.hbm_to_vmem [thread:$0]  %s8, 16, %s426, [#allocation16]
        $region40: #{attention_block_forward.4} parent=11 // pred_fallthru
          _
        // Predicated region
        $region41: #{attention_block_forward.4} parent=11 // pred_check
          %p429 = pneg %p255
        $region42: #{attention_block_forward.4} parent=11 // pred_check_branch
          %431 = sbr.rel (%p429) target = $region44
        $region43: #{attention_block_forward.4} parent=11 // pred_region
          _
        $region44: #{attention_block_forward.4} parent=11 // pred_fallthru
          _
      $region12: #{attention_block_forward.4} parent=5 // pred_fallthru
        _
      %p432 = scmp.lt.s32.totalorder %s35, 2
      // Predicated region
      $region45: #{attention_block_forward.4} parent=5 // pred_check
        %p433 = pneg %p432
      $region46: #{attention_block_forward.4} parent=5 // pred_check_branch
        %435 = sbr.rel (%p433) target = $region48
      $region47: #{attention_block_forward.4} parent=5 // pred_region
        // Predicated region
        $region49: #{attention_block_forward.4} parent=47 // pred_check
          %p436 = pneg %p55
        $region50: #{attention_block_forward.4} parent=47 // pred_check_branch
          %438 = sbr.rel (%p436) target = $region52
        $region51: #{attention_block_forward.4} parent=47 // pred_region
          %s439 = sand.u32 %s45, 1
          %s440 = scalar_lea.sflag [#allocation4], %s439
          %s441 = sand.u32 %s45, 1
          %s442 = smul.addr %s441, 128
          %s443 = scalar_lea.vmem [#allocation3], %s442
          %s444 = smul.u32 32, %s35
          %s446 = ssub.s32 2048, 2048
          %447 = vsyncadd %s440, %s446
          %s448 = smul.addr %s444, 64
          %s449 = scalar_lea.hbm %s0, %s448
          %s450 = sshll.u32 %s443, 4
          %s451 = int_to_ptr.vmem [resolvable:$true] %s450
          %456 = dma.hbm_to_vmem [thread:$0]  %s449, 2048, %s451, %s440, 64, 64, 4
        $region52: #{attention_block_forward.4} parent=47 // pred_fallthru
          _
        // Predicated region
        $region53: #{attention_block_forward.4} parent=47 // pred_check
          %p457 = pneg %p81
        $region54: #{attention_block_forward.4} parent=47 // pred_check_branch
          %459 = sbr.rel (%p457) target = $region56
        $region55: #{attention_block_forward.4} parent=47 // pred_region
          %s460 = sand.u32 %s35, 1
          %s461 = scalar_lea.sflag [#allocation7], %s460
          %s462 = sand.u32 %s71, 1
          %s463 = smul.addr %s462, 128
          %s464 = scalar_lea.vmem [#allocation6], %s463
          %s465 = smul.u32 32, %s35
          %s467 = ssub.s32 2048, 2048
          %468 = vsyncadd %s461, %s467
          %s469 = smul.addr %s465, 64
          %s470 = scalar_lea.hbm %s1, %s469
          %s471 = sshll.u32 %s464, 4
          %s472 = int_to_ptr.vmem [resolvable:$true] %s471
          %477 = dma.hbm_to_vmem [thread:$0]  %s470, 2048, %s472, %s461, 64, 64, 4
        $region56: #{attention_block_forward.4} parent=47 // pred_fallthru
          _
      $region48: #{attention_block_forward.4} parent=5 // pred_fallthru
        _
      %p478 = scmp.le.s32.totalorder 1, %s35
      %p479 = scmp.lt.s32.totalorder %s35, 3
      %p480 = pnand %p478, %p479
      %p481 = pneg %p480
      // Predicated region
      $region57: #{attention_block_forward.4} parent=5 // pred_check
        _
      $region58: #{attention_block_forward.4} parent=5 // pred_check_branch
        %483 = sbr.rel (%p480) target = $region60
      $region59: #{attention_block_forward.4} parent=5 // pred_region
        %s484 = ssub.s32 %s35, 1
        %s485 = sand.u32 %s48, 1
        %s486 = scalar_lea.sflag [#allocation4], %s485
        %s487 = sand.u32 %s48, 1
        %s488 = smul.addr %s487, 128
        %s489 = scalar_lea.vmem [#allocation3], %s488
        // Predicated region
        $region61: #{attention_block_forward.4} parent=59 // pred_check
          %p490 = pneg %p61
        $region62: #{attention_block_forward.4} parent=59 // pred_check_branch
          %492 = sbr.rel (%p490) target = $region64
        $region63: #{attention_block_forward.4} parent=59 // pred_region
          %493 = dma.done %s486, 2048
        $region64: #{attention_block_forward.4} parent=59 // pred_fallthru
          _
        %s494 = sand.u32 %s40, 1
        %s495 = scalar_lea.sflag [#allocation7], %s494
        %s496 = sand.u32 %s74, 1
        %s497 = smul.addr %s496, 128
        %s498 = scalar_lea.vmem [#allocation6], %s497
        // Predicated region
        $region65: #{attention_block_forward.4} parent=59 // pred_check
          %p499 = pneg %p87
        $region66: #{attention_block_forward.4} parent=59 // pred_check_branch
          %501 = sbr.rel (%p499) target = $region68
        $region67: #{attention_block_forward.4} parent=59 // pred_region
          %502 = dma.done %s495, 2048
        $region68: #{attention_block_forward.4} parent=59 // pred_fallthru
          _
        // Predicated region
        $region69: #{attention_block_forward.4} parent=59 // pred_check
          %p503 = pneg %p108
        $region70: #{attention_block_forward.4} parent=59 // pred_check_branch
          %505 = sbr.rel (%p503) target = $region72
        $region71: #{attention_block_forward.4} parent=59 // pred_region
          %506 = dma.done [#allocation7], 1024
        $region72: #{attention_block_forward.4} parent=59 // pred_fallthru
          _
        // Predicated region
        $region73: #{attention_block_forward.4} parent=59 // pred_check
          %p507 = pneg %p129
        $region74: #{attention_block_forward.4} parent=59 // pred_check_branch
          %509 = sbr.rel (%p507) target = $region76
        $region75: #{attention_block_forward.4} parent=59 // pred_region
          %510 = dma.done [#allocation10], 1024
        $region76: #{attention_block_forward.4} parent=59 // pred_fallthru
          _
        // Predicated region
        $region77: #{attention_block_forward.4} parent=59 // pred_check
          %p511 = pneg %p150
        $region78: #{attention_block_forward.4} parent=59 // pred_check_branch
          %513 = sbr.rel (%p511) target = $region80
        $region79: #{attention_block_forward.4} parent=59 // pred_region
          %514 = dma.done [#allocation10], 16
        $region80: #{attention_block_forward.4} parent=59 // pred_fallthru
          _
        // Predicated region
        $region81: #{attention_block_forward.4} parent=59 // pred_check
          %p515 = pneg %p171
        $region82: #{attention_block_forward.4} parent=59 // pred_check_branch
          %517 = sbr.rel (%p515) target = $region84
        $region83: #{attention_block_forward.4} parent=59 // pred_region
          %518 = dma.done [#allocation13], 16
        $region84: #{attention_block_forward.4} parent=59 // pred_fallthru
          _
        // Predicated region
        $region85: #{attention_block_forward.4} parent=59 // pred_check
          %p519 = pneg %p192
        $region86: #{attention_block_forward.4} parent=59 // pred_check_branch
          %521 = sbr.rel (%p519) target = $region88
        $region87: #{attention_block_forward.4} parent=59 // pred_region
          %522 = dma.done [#allocation13], 16
        $region88: #{attention_block_forward.4} parent=59 // pred_fallthru
          _
        // Predicated region
        $region89: #{attention_block_forward.4} parent=59 // pred_check
          %p523 = pneg %p213
        $region90: #{attention_block_forward.4} parent=59 // pred_check_branch
          %525 = sbr.rel (%p523) target = $region92
        $region91: #{attention_block_forward.4} parent=59 // pred_region
          %526 = dma.done [#allocation16], 16
        $region92: #{attention_block_forward.4} parent=59 // pred_fallthru
          _
        // Predicated region
        $region93: #{attention_block_forward.4} parent=59 // pred_check
          %p527 = pneg %p234
        $region94: #{attention_block_forward.4} parent=59 // pred_check_branch
          %529 = sbr.rel (%p527) target = $region96
        $region95: #{attention_block_forward.4} parent=59 // pred_region
          %530 = dma.done [#allocation16], 16
        $region96: #{attention_block_forward.4} parent=59 // pred_fallthru
          _
        %s531 = sand.u32 %s48, 1
        %s532 = scalar_lea.sflag [#allocation4], %s531
        %s533 = sand.u32 %s48, 1
        %s534 = smul.addr %s533, 128
        %s535 = scalar_lea.vmem [#allocation3], %s534
        %p536 = pneg %p61
        %p537 = pneg %p58
        %s538 = sand.u32 %s40, 1
        %s539 = scalar_lea.sflag [#allocation7], %s538
        %s540 = sand.u32 %s74, 1
        %s541 = smul.addr %s540, 128
        %s542 = scalar_lea.vmem [#allocation6], %s541
        %p543 = pneg %p87
        %p544 = pneg %p84
        %p545 = pneg %p108
        %p546 = pneg %p105
        %p547 = pneg %p129
        %p548 = pneg %p126
        %p549 = pneg %p150
        %p550 = pneg %p147
        %p551 = pneg %p171
        %p552 = pneg %p168
        %p553 = pneg %p192
        %p554 = pneg %p189
        %p555 = pneg %p213
        %p556 = pneg %p210
        %p557 = pneg %p234
        %p558 = pneg %p231
        %p559 = pneg %p255
        %p560 = pneg %p252
        %p561 = pneg %p281
        %p562 = pneg %p278
        %s563 = sand.u32 %s268, 1
        %s564 = scalar_lea.sflag [#allocation5], %s563
        %s565 = sand.u32 %s268, 1
        %s566 = smul.addr %s565, 256
        %s567 = scalar_lea.vmem [#allocation18], %s566
        %p568 = pneg %p307
        %p569 = pneg %p304
        %s570 = sand.u32 %s40, 1
        %s571 = scalar_lea.sflag [#allocation20], %s570
        %s572 = sand.u32 %s294, 1
        %s573 = scalar_lea.vmem [#allocation19], %s572
        %p574 = pneg %p333
        %p575 = pneg %p330
        %s576 = sand.u32 %s40, 1
        %s577 = scalar_lea.sflag [#allocation20], %s576
        %s578 = sand.u32 %s320, 1
        %s579 = scalar_lea.vmem [#allocation21], %s578
        %s580 = smul.u32 32, %s40
        %s581 = smul.u32 32, %s40
        %s582 = smul.u32 32, %s40
        %v584 = vld [vmem:[%s489] sm:$0xf]
        %v585 = vld [vmem:[%s489 + $0x4] sm:$0xf]
        %v586 = vld [vmem:[%s489 + $0x8] sm:$0xf]
        %v587 = vld [vmem:[%s489 + $0xc] sm:$0xf]
        %v588 = vld [vmem:[%s489 + $0x10] sm:$0xf]
        %v589 = vld [vmem:[%s489 + $0x14] sm:$0xf]
        %v590 = vld [vmem:[%s489 + $0x18] sm:$0xf]
        %v591 = vld [vmem:[%s489 + $0x1c] sm:$0xf]
        %v592 = vld [vmem:[%s489 + $0x20] sm:$0xf]
        %v593 = vld [vmem:[%s489 + $0x24] sm:$0xf]
        %v594 = vld [vmem:[%s489 + $0x28] sm:$0xf]
        %v595 = vld [vmem:[%s489 + $0x2c] sm:$0xf]
        %v596 = vld [vmem:[%s489 + $0x30] sm:$0xf]
        %v597 = vld [vmem:[%s489 + $0x34] sm:$0xf]
        %v598 = vld [vmem:[%s489 + $0x38] sm:$0xf]
        %v599 = vld [vmem:[%s489 + $0x3c] sm:$0xf]
        %v600 = vld [vmem:[%s489 + $0x40] sm:$0xf]
        %v601 = vld [vmem:[%s489 + $0x44] sm:$0xf]
        %v602 = vld [vmem:[%s489 + $0x48] sm:$0xf]
        %v603 = vld [vmem:[%s489 + $0x4c] sm:$0xf]
        %v604 = vld [vmem:[%s489 + $0x50] sm:$0xf]
        %v605 = vld [vmem:[%s489 + $0x54] sm:$0xf]
        %v606 = vld [vmem:[%s489 + $0x58] sm:$0xf]
        %v607 = vld [vmem:[%s489 + $0x5c] sm:$0xf]
        %v608 = vld [vmem:[%s489 + $0x60] sm:$0xf]
        %v609 = vld [vmem:[%s489 + $0x64] sm:$0xf]
        %v610 = vld [vmem:[%s489 + $0x68] sm:$0xf]
        %v611 = vld [vmem:[%s489 + $0x6c] sm:$0xf]
        %v612 = vld [vmem:[%s489 + $0x70] sm:$0xf]
        %v613 = vld [vmem:[%s489 + $0x74] sm:$0xf]
        %v614 = vld [vmem:[%s489 + $0x78] sm:$0xf]
        %v615 = vld [vmem:[%s489 + $0x7c] sm:$0xf]
        %v616 = vld [vmem:[#allocation8] sm:$0xf]
        %v617 = vld [vmem:[#allocation8 + $0x4] sm:$0xf]
        %v618 = vld [vmem:[#allocation8 + $0x8] sm:$0xf]
        %v619 = vld [vmem:[#allocation8 + $0xc] sm:$0xf]
        %v620 = vld [vmem:[#allocation8 + $0x10] sm:$0xf]
        %v621 = vld [vmem:[#allocation8 + $0x14] sm:$0xf]
        %v622 = vld [vmem:[#allocation8 + $0x18] sm:$0xf]
        %v623 = vld [vmem:[#allocation8 + $0x1c] sm:$0xf]
        %v624 = vld [vmem:[#allocation8 + $0x20] sm:$0xf]
        %v625 = vld [vmem:[#allocation8 + $0x24] sm:$0xf]
        %v626 = vld [vmem:[#allocation8 + $0x28] sm:$0xf]
        %v627 = vld [vmem:[#allocation8 + $0x2c] sm:$0xf]
        %v628 = vld [vmem:[#allocation8 + $0x30] sm:$0xf]
        %v629 = vld [vmem:[#allocation8 + $0x34] sm:$0xf]
        %v630 = vld [vmem:[#allocation8 + $0x38] sm:$0xf]
        %v631 = vld [vmem:[#allocation8 + $0x3c] sm:$0xf]
        %v664 = vunpack.c.l.b16 %v584
        %v665 = vunpack.c.l.b16 %v585
        %v666 = vunpack.c.l.b16 %v586
        %v667 = vunpack.c.l.b16 %v587
        %v668 = vunpack.c.l.b16 %v588
        %v669 = vunpack.c.l.b16 %v589
        %v670 = vunpack.c.l.b16 %v590
        %v671 = vunpack.c.l.b16 %v591
        %v672 = vunpack.c.l.b16 %v592
        %v673 = vunpack.c.l.b16 %v593
        %v674 = vunpack.c.l.b16 %v594
        %v675 = vunpack.c.l.b16 %v595
        %v676 = vunpack.c.l.b16 %v596
        %v677 = vunpack.c.l.b16 %v597
        %v678 = vunpack.c.l.b16 %v598
        %v679 = vunpack.c.l.b16 %v599
        %v680 = vunpack.c.l.b16 %v600
        %v681 = vunpack.c.l.b16 %v601
        %v682 = vunpack.c.l.b16 %v602
        %v683 = vunpack.c.l.b16 %v603
        %v684 = vunpack.c.l.b16 %v604
        %v685 = vunpack.c.l.b16 %v605
        %v686 = vunpack.c.l.b16 %v606
        %v687 = vunpack.c.l.b16 %v607
        %v688 = vunpack.c.l.b16 %v608
        %v689 = vunpack.c.l.b16 %v609
        %v690 = vunpack.c.l.b16 %v610
        %v691 = vunpack.c.l.b16 %v611
        %v692 = vunpack.c.l.b16 %v612
        %v693 = vunpack.c.l.b16 %v613
        %v694 = vunpack.c.l.b16 %v614
        %v695 = vunpack.c.l.b16 %v615
        %v696 = vpack.c.b16 %v665, %v664
        %v697 = vpack.c.b16 %v667, %v666
        %v698 = vpack.c.b16 %v669, %v668
        %v699 = vpack.c.b16 %v671, %v670
        %v700 = vpack.c.b16 %v673, %v672
        %v701 = vpack.c.b16 %v675, %v674
        %v702 = vpack.c.b16 %v677, %v676
        %v703 = vpack.c.b16 %v679, %v678
        %v704 = vpack.c.b16 %v681, %v680
        %v705 = vpack.c.b16 %v683, %v682
        %v706 = vpack.c.b16 %v685, %v684
        %v707 = vpack.c.b16 %v687, %v686
        %v708 = vpack.c.b16 %v689, %v688
        %v709 = vpack.c.b16 %v691, %v690
        %v710 = vpack.c.b16 %v693, %v692
        %v711 = vpack.c.b16 %v695, %v694
        %v744 = vunpack.c.l.b16 %v616
        %v745 = vunpack.c.l.b16 %v617
        %v746 = vunpack.c.l.b16 %v618
        %v747 = vunpack.c.l.b16 %v619
        %v748 = vunpack.c.l.b16 %v620
        %v749 = vunpack.c.l.b16 %v621
        %v750 = vunpack.c.l.b16 %v622
        %v751 = vunpack.c.l.b16 %v623
        %v752 = vunpack.c.l.b16 %v624
        %v753 = vunpack.c.l.b16 %v625
        %v754 = vunpack.c.l.b16 %v626
        %v755 = vunpack.c.l.b16 %v627
        %v756 = vunpack.c.l.b16 %v628
        %v757 = vunpack.c.l.b16 %v629
        %v758 = vunpack.c.l.b16 %v630
        %v759 = vunpack.c.l.b16 %v631
        %v760 = vpack.c.b16 %v745, %v744
        %v761 = vpack.c.b16 %v747, %v746
        %v762 = vpack.c.b16 %v749, %v748
        %v763 = vpack.c.b16 %v751, %v750
        %v764 = vpack.c.b16 %v753, %v752
        %v765 = vpack.c.b16 %v755, %v754
        %v766 = vpack.c.b16 %v757, %v756
        %v767 = vpack.c.b16 %v759, %v758
        %776 = vmatprep.subr.bf16.mxu0 0
        %777 = vmatpush1.bf16.msra.mxu0 %v760
        %778 = vmatprep.subr.bf16.mxu0 0
        %779 = vmatpush1.bf16.msra.mxu0 %v761
        %780 = vmatprep.subr.bf16.mxu0 0
        %781 = vmatpush1.bf16.msra.mxu0 %v762
        %782 = vmatprep.subr.bf16.mxu0 0
        %783 = vmatpush1.bf16.msra.mxu0 %v763
        %784 = vmatprep.subr.bf16.mxu0 0
        %785 = vmatpush1.bf16.msra.mxu0 %v764
        %786 = vmatprep.subr.bf16.mxu0 0
        %787 = vmatpush1.bf16.msra.mxu0 %v765
        %788 = vmatprep.subr.bf16.mxu0 0
        %789 = vmatpush1.bf16.msra.mxu0 %v766
        %790 = vmatprep.subr.bf16.mxu0 0
        %791 = vmatpush1.bf16.msra.mxu0 %v767
        %792 = vmatprep.subr.bf16.mxu0 0
        %793 = vmatpush1.bf16.msra.mxu0 0
        %794 = vmatprep.subr.bf16.mxu0 0
        %795 = vmatpush1.bf16.msra.mxu0 0
        %796 = vmatprep.subr.bf16.mxu0 0
        %797 = vmatpush1.bf16.msra.mxu0 0
        %798 = vmatprep.subr.bf16.mxu0 0
        %799 = vmatpush1.bf16.msra.mxu0 0
        %800 = vmatprep.subr.bf16.mxu0 0
        %801 = vmatpush1.bf16.msra.mxu0 0
        %802 = vmatprep.subr.bf16.mxu0 0
        %803 = vmatpush1.bf16.msra.mxu0 0
        %804 = vmatprep.subr.bf16.mxu0 0
        %805 = vmatpush1.bf16.msra.mxu0 0
        %806 = vmatprep.subr.bf16.mxu0 0
        %807 = vmatpush1.bf16.msra.mxu0 0
        %808 = vmatprep.mubr.bf16.mxu0 0
        %809 = vmatmul.mubr.bf16.gmra.mrb[0].mxu0 %v696
        %v810 = vpop.f32.mrb[0].mxu0
        %v811 = vadd.f32 0.0, %v810
        %v812 = vpop.f32.mrb[0].mxu0
        %v813 = vpop.f32.mrb[0].mxu0
        %v814 = vadd.f32 0.0, %v813
        %v815 = vpop.f32.mrb[0].mxu0
        %816 = vmatprep.mubr.bf16.mxu0 0
        %817 = vmatmul.mubr.bf16.gmra.mrb[0].mxu0 %v697
        %v818 = vpop.f32.mrb[0].mxu0
        %v819 = vadd.f32 0.0, %v818
        %v820 = vpop.f32.mrb[0].mxu0
        %v821 = vpop.f32.mrb[0].mxu0
        %v822 = vadd.f32 0.0, %v821
        %v823 = vpop.f32.mrb[0].mxu0
        %824 = vmatprep.mubr.bf16.mxu0 0
        %825 = vmatmul.mubr.bf16.gmra.mrb[0].mxu0 %v698
        %v826 = vpop.f32.mrb[0].mxu0
        %v827 = vadd.f32 0.0, %v826
        %v828 = vpop.f32.mrb[0].mxu0
        %v829 = vpop.f32.mrb[0].mxu0
        %v830 = vadd.f32 0.0, %v829
        %v831 = vpop.f32.mrb[0].mxu0
        %832 = vmatprep.mubr.bf16.mxu0 0
        %833 = vmatmul.mubr.bf16.gmra.mrb[0].mxu0 %v699
        %v834 = vpop.f32.mrb[0].mxu0
        %v835 = vadd.f32 0.0, %v834
        %v836 = vpop.f32.mrb[0].mxu0
        %v837 = vpop.f32.mrb[0].mxu0
        %v838 = vadd.f32 0.0, %v837
        %v839 = vpop.f32.mrb[0].mxu0
        %840 = vmatprep.mubr.bf16.mxu0 0
        %841 = vmatmul.mubr.bf16.gmra.mrb[0].mxu0 %v700
        %v842 = vpop.f32.mrb[0].mxu0
        %v843 = vadd.f32 0.0, %v842
        %v844 = vpop.f32.mrb[0].mxu0
        %v845 = vpop.f32.mrb[0].mxu0
        %v846 = vadd.f32 0.0, %v845
        %v847 = vpop.f32.mrb[0].mxu0
        %848 = vmatprep.mubr.bf16.mxu0 0
        %849 = vmatmul.mubr.bf16.gmra.mrb[0].mxu0 %v701
        %v850 = vpop.f32.mrb[0].mxu0
        %v851 = vadd.f32 0.0, %v850
        %v852 = vpop.f32.mrb[0].mxu0
        %v853 = vpop.f32.mrb[0].mxu0
        %v854 = vadd.f32 0.0, %v853
        %v855 = vpop.f32.mrb[0].mxu0
        %856 = vmatprep.mubr.bf16.mxu0 0
        %857 = vmatmul.mubr.bf16.gmra.mrb[0].mxu0 %v702
        %v858 = vpop.f32.mrb[0].mxu0
        %v859 = vadd.f32 0.0, %v858
        %v860 = vpop.f32.mrb[0].mxu0
        %v861 = vpop.f32.mrb[0].mxu0
        %v862 = vadd.f32 0.0, %v861
        %v863 = vpop.f32.mrb[0].mxu0
        %864 = vmatprep.mubr.bf16.mxu0 0
        %865 = vmatmul.mubr.bf16.gmra.mrb[0].mxu0 %v703
        %v866 = vpop.f32.mrb[0].mxu0
        %v867 = vadd.f32 0.0, %v866
        %v868 = vpop.f32.mrb[0].mxu0
        %v869 = vpop.f32.mrb[0].mxu0
        %v870 = vadd.f32 0.0, %v869
        %v871 = vpop.f32.mrb[0].mxu0
        %872 = vmatprep.mubr.bf16.mxu0 0
        %873 = vmatmul.mubr.bf16.gmra.mrb[0].mxu0 %v704
        %v874 = vpop.f32.mrb[0].mxu0
        %v875 = vadd.f32 0.0, %v874
        %v876 = vpop.f32.mrb[0].mxu0
        %v877 = vpop.f32.mrb[0].mxu0
        %v878 = vadd.f32 0.0, %v877
        %v879 = vpop.f32.mrb[0].mxu0
        %880 = vmatprep.mubr.bf16.mxu0 0
        %881 = vmatmul.mubr.bf16.gmra.mrb[0].mxu0 %v705
        %v882 = vpop.f32.mrb[0].mxu0
        %v883 = vadd.f32 0.0, %v882
        %v884 = vpop.f32.mrb[0].mxu0
        %v885 = vpop.f32.mrb[0].mxu0
        %v886 = vadd.f32 0.0, %v885
        %v887 = vpop.f32.mrb[0].mxu0
        %888 = vmatprep.mubr.bf16.mxu0 0
        %889 = vmatmul.mubr.bf16.gmra.mrb[0].mxu0 %v706
        %v890 = vpop.f32.mrb[0].mxu0
        %v891 = vadd.f32 0.0, %v890
        %v892 = vpop.f32.mrb[0].mxu0
        %v893 = vpop.f32.mrb[0].mxu0
        %v894 = vadd.f32 0.0, %v893
        %v895 = vpop.f32.mrb[0].mxu0
        %896 = vmatprep.mubr.bf16.mxu0 0
        %897 = vmatmul.mubr.bf16.gmra.mrb[0].mxu0 %v707
        %v898 = vpop.f32.mrb[0].mxu0
        %v899 = vadd.f32 0.0, %v898
        %v900 = vpop.f32.mrb[0].mxu0
        %v901 = vpop.f32.mrb[0].mxu0
        %v902 = vadd.f32 0.0, %v901
        %v903 = vpop.f32.mrb[0].mxu0
        %904 = vmatprep.mubr.bf16.mxu0 0
        %905 = vmatmul.mubr.bf16.gmra.mrb[0].mxu0 %v708
        %v906 = vpop.f32.mrb[0].mxu0
        %v907 = vadd.f32 0.0, %v906
        %v908 = vpop.f32.mrb[0].mxu0
        %v909 = vpop.f32.mrb[0].mxu0
        %v910 = vadd.f32 0.0, %v909
        %v911 = vpop.f32.mrb[0].mxu0
        %912 = vmatprep.mubr.bf16.mxu0 0
        %913 = vmatmul.mubr.bf16.gmra.mrb[0].mxu0 %v709
        %v914 = vpop.f32.mrb[0].mxu0
        %v915 = vadd.f32 0.0, %v914
        %v916 = vpop.f32.mrb[0].mxu0
        %v917 = vpop.f32.mrb[0].mxu0
        %v918 = vadd.f32 0.0, %v917
        %v919 = vpop.f32.mrb[0].mxu0
        %920 = vmatprep.mubr.bf16.mxu0 0
        %921 = vmatmul.mubr.bf16.gmra.mrb[0].mxu0 %v710
        %v922 = vpop.f32.mrb[0].mxu0
        %v923 = vadd.f32 0.0, %v922
        %v924 = vpop.f32.mrb[0].mxu0
        %v925 = vpop.f32.mrb[0].mxu0
        %v926 = vadd.f32 0.0, %v925
        %v927 = vpop.f32.mrb[0].mxu0
        %928 = vmatprep.mubr.bf16.mxu0 0
        %929 = vmatmul.mubr.bf16.gmra.mrb[0].mxu0 %v711
        %v930 = vpop.f32.mrb[0].mxu0
        %v931 = vadd.f32 0.0, %v930
        %v932 = vpop.f32.mrb[0].mxu0
        %v933 = vpop.f32.mrb[0].mxu0
        %v934 = vadd.f32 0.0, %v933
        %v935 = vpop.f32.mrb[0].mxu0
        %936 = vdwg.mxu0
        %v937 = vld [vmem:[%s498] sm:$0xf]
        %v938 = vld [vmem:[%s498 + $0x4] sm:$0xf]
        %v939 = vld [vmem:[%s498 + $0x8] sm:$0xf]
        %v940 = vld [vmem:[%s498 + $0xc] sm:$0xf]
        %v941 = vld [vmem:[%s498 + $0x10] sm:$0xf]
        %v942 = vld [vmem:[%s498 + $0x14] sm:$0xf]
        %v943 = vld [vmem:[%s498 + $0x18] sm:$0xf]
        %v944 = vld [vmem:[%s498 + $0x1c] sm:$0xf]
        %v945 = vld [vmem:[%s498 + $0x20] sm:$0xf]
        %v946 = vld [vmem:[%s498 + $0x24] sm:$0xf]
        %v947 = vld [vmem:[%s498 + $0x28] sm:$0xf]
        %v948 = vld [vmem:[%s498 + $0x2c] sm:$0xf]
        %v949 = vld [vmem:[%s498 + $0x30] sm:$0xf]
        %v950 = vld [vmem:[%s498 + $0x34] sm:$0xf]
        %v951 = vld [vmem:[%s498 + $0x38] sm:$0xf]
        %v952 = vld [vmem:[%s498 + $0x3c] sm:$0xf]
        %v953 = vld [vmem:[%s498 + $0x40] sm:$0xf]
        %v954 = vld [vmem:[%s498 + $0x44] sm:$0xf]
        %v955 = vld [vmem:[%s498 + $0x48] sm:$0xf]
        %v956 = vld [vmem:[%s498 + $0x4c] sm:$0xf]
        %v957 = vld [vmem:[%s498 + $0x50] sm:$0xf]
        %v958 = vld [vmem:[%s498 + $0x54] sm:$0xf]
        %v959 = vld [vmem:[%s498 + $0x58] sm:$0xf]
        %v960 = vld [vmem:[%s498 + $0x5c] sm:$0xf]
        %v961 = vld [vmem:[%s498 + $0x60] sm:$0xf]
        %v962 = vld [vmem:[%s498 + $0x64] sm:$0xf]
        %v963 = vld [vmem:[%s498 + $0x68] sm:$0xf]
        %v964 = vld [vmem:[%s498 + $0x6c] sm:$0xf]
        %v965 = vld [vmem:[%s498 + $0x70] sm:$0xf]
        %v966 = vld [vmem:[%s498 + $0x74] sm:$0xf]
        %v967 = vld [vmem:[%s498 + $0x78] sm:$0xf]
        %v968 = vld [vmem:[%s498 + $0x7c] sm:$0xf]
        %v969 = vld [vmem:[#allocation9] sm:$0xf]
        %v970 = vld [vmem:[#allocation9 + $0x4] sm:$0xf]
        %v971 = vld [vmem:[#allocation9 + $0x8] sm:$0xf]
        %v972 = vld [vmem:[#allocation9 + $0xc] sm:$0xf]
        %v973 = vld [vmem:[#allocation9 + $0x10] sm:$0xf]
        %v974 = vld [vmem:[#allocation9 + $0x14] sm:$0xf]
        %v975 = vld [vmem:[#allocation9 + $0x18] sm:$0xf]
        %v976 = vld [vmem:[#allocation9 + $0x1c] sm:$0xf]
        %v977 = vld [vmem:[#allocation9 + $0x20] sm:$0xf]
        %v978 = vld [vmem:[#allocation9 + $0x24] sm:$0xf]
        %v979 = vld [vmem:[#allocation9 + $0x28] sm:$0xf]
        %v980 = vld [vmem:[#allocation9 + $0x2c] sm:$0xf]
        %v981 = vld [vmem:[#allocation9 + $0x30] sm:$0xf]
        %v982 = vld [vmem:[#allocation9 + $0x34] sm:$0xf]
        %v983 = vld [vmem:[#allocation9 + $0x38] sm:$0xf]
        %v984 = vld [vmem:[#allocation9 + $0x3c] sm:$0xf]
        %v1017 = vunpack.c.l.b16 %v937
        %v1018 = vunpack.c.l.b16 %v938
        %v1019 = vunpack.c.l.b16 %v939
        %v1020 = vunpack.c.l.b16 %v940
        %v1021 = vunpack.c.l.b16 %v941
        %v1022 = vunpack.c.l.b16 %v942
        %v1023 = vunpack.c.l.b16 %v943
        %v1024 = vunpack.c.l.b16 %v944
        %v1025 = vunpack.c.l.b16 %v945
        %v1026 = vunpack.c.l.b16 %v946
        %v1027 = vunpack.c.l.b16 %v947
        %v1028 = vunpack.c.l.b16 %v948
        %v1029 = vunpack.c.l.b16 %v949
        %v1030 = vunpack.c.l.b16 %v950
        %v1031 = vunpack.c.l.b16 %v951
        %v1032 = vunpack.c.l.b16 %v952
        %v1033 = vunpack.c.l.b16 %v953
        %v1034 = vunpack.c.l.b16 %v954
        %v1035 = vunpack.c.l.b16 %v955
        %v1036 = vunpack.c.l.b16 %v956
        %v1037 = vunpack.c.l.b16 %v957
        %v1038 = vunpack.c.l.b16 %v958
        %v1039 = vunpack.c.l.b16 %v959
        %v1040 = vunpack.c.l.b16 %v960
        %v1041 = vunpack.c.l.b16 %v961
        %v1042 = vunpack.c.l.b16 %v962
        %v1043 = vunpack.c.l.b16 %v963
        %v1044 = vunpack.c.l.b16 %v964
        %v1045 = vunpack.c.l.b16 %v965
        %v1046 = vunpack.c.l.b16 %v966
        %v1047 = vunpack.c.l.b16 %v967
        %v1048 = vunpack.c.l.b16 %v968
        %v1049 = vpack.c.b16 %v1018, %v1017
        %v1050 = vpack.c.b16 %v1020, %v1019
        %v1051 = vpack.c.b16 %v1022, %v1021
        %v1052 = vpack.c.b16 %v1024, %v1023
        %v1053 = vpack.c.b16 %v1026, %v1025
        %v1054 = vpack.c.b16 %v1028, %v1027
        %v1055 = vpack.c.b16 %v1030, %v1029
        %v1056 = vpack.c.b16 %v1032, %v1031
        %v1057 = vpack.c.b16 %v1034, %v1033
        %v1058 = vpack.c.b16 %v1036, %v1035
        %v1059 = vpack.c.b16 %v1038, %v1037
        %v1060 = vpack.c.b16 %v1040, %v1039
        %v1061 = vpack.c.b16 %v1042, %v1041
        %v1062 = vpack.c.b16 %v1044, %v1043
        %v1063 = vpack.c.b16 %v1046, %v1045
        %v1064 = vpack.c.b16 %v1048, %v1047
        %v1097 = vunpack.c.l.b16 %v969
        %v1098 = vunpack.c.l.b16 %v970
        %v1099 = vunpack.c.l.b16 %v971
        %v1100 = vunpack.c.l.b16 %v972
        %v1101 = vunpack.c.l.b16 %v973
        %v1102 = vunpack.c.l.b16 %v974
        %v1103 = vunpack.c.l.b16 %v975
        %v1104 = vunpack.c.l.b16 %v976
        %v1105 = vunpack.c.l.b16 %v977
        %v1106 = vunpack.c.l.b16 %v978
        %v1107 = vunpack.c.l.b16 %v979
        %v1108 = vunpack.c.l.b16 %v980
        %v1109 = vunpack.c.l.b16 %v981
        %v1110 = vunpack.c.l.b16 %v982
        %v1111 = vunpack.c.l.b16 %v983
        %v1112 = vunpack.c.l.b16 %v984
        %v1113 = vpack.c.b16 %v1098, %v1097
        %v1114 = vpack.c.b16 %v1100, %v1099
        %v1115 = vpack.c.b16 %v1102, %v1101
        %v1116 = vpack.c.b16 %v1104, %v1103
        %v1117 = vpack.c.b16 %v1106, %v1105
        %v1118 = vpack.c.b16 %v1108, %v1107
        %v1119 = vpack.c.b16 %v1110, %v1109
        %v1120 = vpack.c.b16 %v1112, %v1111
        %1129 = vmatprep.subr.bf16.mxu0 0
        %1130 = vmatpush1.bf16.msra.mxu0 %v1113
        %1131 = vmatprep.subr.bf16.mxu0 0
        %1132 = vmatpush1.bf16.msra.mxu0 %v1114
        %1133 = vmatprep.subr.bf16.mxu0 0
        %1134 = vmatpush1.bf16.msra.mxu0 %v1115
        %1135 = vmatprep.subr.bf16.mxu0 0
        %1136 = vmatpush1.bf16.msra.mxu0 %v1116
        %1137 = vmatprep.subr.bf16.mxu0 0
        %1138 = vmatpush1.bf16.msra.mxu0 %v1117
        %1139 = vmatprep.subr.bf16.mxu0 0
        %1140 = vmatpush1.bf16.msra.mxu0 %v1118
        %1141 = vmatprep.subr.bf16.mxu0 0
        %1142 = vmatpush1.bf16.msra.mxu0 %v1119
        %1143 = vmatprep.subr.bf16.mxu0 0
        %1144 = vmatpush1.bf16.msra.mxu0 %v1120
        %1145 = vmatprep.subr.bf16.mxu0 0
        %1146 = vmatpush1.bf16.msra.mxu0 0
        %1147 = vmatprep.subr.bf16.mxu0 0
        %1148 = vmatpush1.bf16.msra.mxu0 0
        %1149 = vmatprep.subr.bf16.mxu0 0
        %1150 = vmatpush1.bf16.msra.mxu0 0
        %1151 = vmatprep.subr.bf16.mxu0 0
        %1152 = vmatpush1.bf16.msra.mxu0 0
        %1153 = vmatprep.subr.bf16.mxu0 0
        %1154 = vmatpush1.bf16.msra.mxu0 0
        %1155 = vmatprep.subr.bf16.mxu0 0
        %1156 = vmatpush1.bf16.msra.mxu0 0
        %1157 = vmatprep.subr.bf16.mxu0 0
        %1158 = vmatpush1.bf16.msra.mxu0 0
        %1159 = vmatprep.subr.bf16.mxu0 0
        %1160 = vmatpush1.bf16.msra.mxu0 0
        %1161 = vmatprep.mubr.bf16.mxu0 0
        %1162 = vmatmul.mubr.bf16.gmra.mrb[0].mxu0 %v1049
        %v1163 = vpop.f32.mrb[0].mxu0
        %v1164 = vadd.f32 0.0, %v1163
        %v1165 = vpop.f32.mrb[0].mxu0
        %v1166 = vpop.f32.mrb[0].mxu0
        %v1167 = vadd.f32 0.0, %v1166
        %v1168 = vpop.f32.mrb[0].mxu0
        %1169 = vmatprep.mubr.bf16.mxu0 0
        %1170 = vmatmul.mubr.bf16.gmra.mrb[0].mxu0 %v1050
        %v1171 = vpop.f32.mrb[0].mxu0
        %v1172 = vadd.f32 0.0, %v1171
        %v1173 = vpop.f32.mrb[0].mxu0
        %v1174 = vpop.f32.mrb[0].mxu0
        %v1175 = vadd.f32 0.0, %v1174
        %v1176 = vpop.f32.mrb[0].mxu0
        %1177 = vmatprep.mubr.bf16.mxu0 0
        %1178 = vmatmul.mubr.bf16.gmra.mrb[0].mxu0 %v1051
        %v1179 = vpop.f32.mrb[0].mxu0
        %v1180 = vadd.f32 0.0, %v1179
        %v1181 = vpop.f32.mrb[0].mxu0
        %v1182 = vpop.f32.mrb[0].mxu0
        %v1183 = vadd.f32 0.0, %v1182
        %v1184 = vpop.f32.mrb[0].mxu0
        %1185 = vmatprep.mubr.bf16.mxu0 0
        %1186 = vmatmul.mubr.bf16.gmra.mrb[0].mxu0 %v1052
        %v1187 = vpop.f32.mrb[0].mxu0
        %v1188 = vadd.f32 0.0, %v1187
        %v1189 = vpop.f32.mrb[0].mxu0
        %v1190 = vpop.f32.mrb[0].mxu0
        %v1191 = vadd.f32 0.0, %v1190
        %v1192 = vpop.f32.mrb[0].mxu0
        %1193 = vmatprep.mubr.bf16.mxu0 0
        %1194 = vmatmul.mubr.bf16.gmra.mrb[0].mxu0 %v1053
        %v1195 = vpop.f32.mrb[0].mxu0
        %v1196 = vadd.f32 0.0, %v1195
        %v1197 = vpop.f32.mrb[0].mxu0
        %v1198 = vpop.f32.mrb[0].mxu0
        %v1199 = vadd.f32 0.0, %v1198
        %v1200 = vpop.f32.mrb[0].mxu0
        %1201 = vmatprep.mubr.bf16.mxu0 0
        %1202 = vmatmul.mubr.bf16.gmra.mrb[0].mxu0 %v1054
        %v1203 = vpop.f32.mrb[0].mxu0
        %v1204 = vadd.f32 0.0, %v1203
        %v1205 = vpop.f32.mrb[0].mxu0
        %v1206 = vpop.f32.mrb[0].mxu0
        %v1207 = vadd.f32 0.0, %v1206
        %v1208 = vpop.f32.mrb[0].mxu0
        %1209 = vmatprep.mubr.bf16.mxu0 0
        %1210 = vmatmul.mubr.bf16.gmra.mrb[0].mxu0 %v1055
        %v1211 = vpop.f32.mrb[0].mxu0
        %v1212 = vadd.f32 0.0, %v1211
        %v1213 = vpop.f32.mrb[0].mxu0
        %v1214 = vpop.f32.mrb[0].mxu0
        %v1215 = vadd.f32 0.0, %v1214
        %v1216 = vpop.f32.mrb[0].mxu0
        %1217 = vmatprep.mubr.bf16.mxu0 0
        %1218 = vmatmul.mubr.bf16.gmra.mrb[0].mxu0 %v1056
        %v1219 = vpop.f32.mrb[0].mxu0
        %v1220 = vadd.f32 0.0, %v1219
        %v1221 = vpop.f32.mrb[0].mxu0
        %v1222 = vpop.f32.mrb[0].mxu0
        %v1223 = vadd.f32 0.0, %v1222
        %v1224 = vpop.f32.mrb[0].mxu0
        %1225 = vmatprep.mubr.bf16.mxu0 0
        %1226 = vmatmul.mubr.bf16.gmra.mrb[0].mxu0 %v1057
        %v1227 = vpop.f32.mrb[0].mxu0
        %v1228 = vadd.f32 0.0, %v1227
        %v1229 = vpop.f32.mrb[0].mxu0
        %v1230 = vpop.f32.mrb[0].mxu0
        %v1231 = vadd.f32 0.0, %v1230
        %v1232 = vpop.f32.mrb[0].mxu0
        %1233 = vmatprep.mubr.bf16.mxu0 0
        %1234 = vmatmul.mubr.bf16.gmra.mrb[0].mxu0 %v1058
        %v1235 = vpop.f32.mrb[0].mxu0
        %v1236 = vadd.f32 0.0, %v1235
        %v1237 = vpop.f32.mrb[0].mxu0
        %v1238 = vpop.f32.mrb[0].mxu0
        %v1239 = vadd.f32 0.0, %v1238
        %v1240 = vpop.f32.mrb[0].mxu0
        %1241 = vmatprep.mubr.bf16.mxu0 0
        %1242 = vmatmul.mubr.bf16.gmra.mrb[0].mxu0 %v1059
        %v1243 = vpop.f32.mrb[0].mxu0
        %v1244 = vadd.f32 0.0, %v1243
        %v1245 = vpop.f32.mrb[0].mxu0
        %v1246 = vpop.f32.mrb[0].mxu0
        %v1247 = vadd.f32 0.0, %v1246
        %v1248 = vpop.f32.mrb[0].mxu0
        %1249 = vmatprep.mubr.bf16.mxu0 0
        %1250 = vmatmul.mubr.bf16.gmra.mrb[0].mxu0 %v1060
        %v1251 = vpop.f32.mrb[0].mxu0
        %v1252 = vadd.f32 0.0, %v1251
        %v1253 = vpop.f32.mrb[0].mxu0
        %v1254 = vpop.f32.mrb[0].mxu0
        %v1255 = vadd.f32 0.0, %v1254
        %v1256 = vpop.f32.mrb[0].mxu0
        %1257 = vmatprep.mubr.bf16.mxu0 0
        %1258 = vmatmul.mubr.bf16.gmra.mrb[0].mxu0 %v1061
        %v1259 = vpop.f32.mrb[0].mxu0
        %v1260 = vadd.f32 0.0, %v1259
        %v1261 = vpop.f32.mrb[0].mxu0
        %v1262 = vpop.f32.mrb[0].mxu0
        %v1263 = vadd.f32 0.0, %v1262
        %v1264 = vpop.f32.mrb[0].mxu0
        %1265 = vmatprep.mubr.bf16.mxu0 0
        %1266 = vmatmul.mubr.bf16.gmra.mrb[0].mxu0 %v1062
        %v1267 = vpop.f32.mrb[0].mxu0
        %v1268 = vadd.f32 0.0, %v1267
        %v1269 = vpop.f32.mrb[0].mxu0
        %v1270 = vpop.f32.mrb[0].mxu0
        %v1271 = vadd.f32 0.0, %v1270
        %v1272 = vpop.f32.mrb[0].mxu0
        %1273 = vmatprep.mubr.bf16.mxu0 0
        %1274 = vmatmul.mubr.bf16.gmra.mrb[0].mxu0 %v1063
        %v1275 = vpop.f32.mrb[0].mxu0
        %v1276 = vadd.f32 0.0, %v1275
        %v1277 = vpop.f32.mrb[0].mxu0
        %v1278 = vpop.f32.mrb[0].mxu0
        %v1279 = vadd.f32 0.0, %v1278
        %v1280 = vpop.f32.mrb[0].mxu0
        %1281 = vmatprep.mubr.bf16.mxu0 0
        %1282 = vmatmul.mubr.bf16.gmra.mrb[0].mxu0 %v1064
        %v1283 = vpop.f32.mrb[0].mxu0
        %v1284 = vadd.f32 0.0, %v1283
        %v1285 = vpop.f32.mrb[0].mxu0
        %v1286 = vpop.f32.mrb[0].mxu0
        %v1287 = vadd.f32 0.0, %v1286
        %v1288 = vpop.f32.mrb[0].mxu0
        %1289 = vdwg.mxu0
        %v1290 = vld [vmem:[#allocation11] sm:$0x1]
        %v1292 = vlaneseq
        %v1293 = vshrl.u32 %v1292, 7
        %v1294 = vsub.s32 0, %v1293
        %v1295 = vrot.slane %v1290, %v1294
        %v1297 = vmul.f32 %v811, %v1295
        %v1298 = vmul.f32 %v814, %v1295
        %v1299 = vmul.f32 %v819, %v1295
        %v1300 = vmul.f32 %v822, %v1295
        %v1301 = vmul.f32 %v827, %v1295
        %v1302 = vmul.f32 %v830, %v1295
        %v1303 = vmul.f32 %v835, %v1295
        %v1304 = vmul.f32 %v838, %v1295
        %v1305 = vmul.f32 %v843, %v1295
        %v1306 = vmul.f32 %v846, %v1295
        %v1307 = vmul.f32 %v851, %v1295
        %v1308 = vmul.f32 %v854, %v1295
        %v1309 = vmul.f32 %v859, %v1295
        %v1310 = vmul.f32 %v862, %v1295
        %v1311 = vmul.f32 %v867, %v1295
        %v1312 = vmul.f32 %v870, %v1295
        %v1313 = vmul.f32 %v875, %v1295
        %v1314 = vmul.f32 %v878, %v1295
        %v1315 = vmul.f32 %v883, %v1295
        %v1316 = vmul.f32 %v886, %v1295
        %v1317 = vmul.f32 %v891, %v1295
        %v1318 = vmul.f32 %v894, %v1295
        %v1319 = vmul.f32 %v899, %v1295
        %v1320 = vmul.f32 %v902, %v1295
        %v1321 = vmul.f32 %v907, %v1295
        %v1322 = vmul.f32 %v910, %v1295
        %v1323 = vmul.f32 %v915, %v1295
        %v1324 = vmul.f32 %v918, %v1295
        %v1325 = vmul.f32 %v923, %v1295
        %v1326 = vmul.f32 %v926, %v1295
        %v1327 = vmul.f32 %v931, %v1295
        %v1328 = vmul.f32 %v934, %v1295
        %v1329 = vld [vmem:[#allocation12] sm:$0x1]
        %v1331 = vlaneseq
        %v1332 = vshrl.u32 %v1331, 7
        %v1333 = vsub.s32 0, %v1332
        %v1334 = vrot.slane %v1329, %v1333
        %v1336 = vadd.f32 %v1297, %v1334
        %v1337 = vadd.f32 %v1298, %v1334
        %v1338 = vadd.f32 %v1299, %v1334
        %v1339 = vadd.f32 %v1300, %v1334
        %v1340 = vadd.f32 %v1301, %v1334
        %v1341 = vadd.f32 %v1302, %v1334
        %v1342 = vadd.f32 %v1303, %v1334
        %v1343 = vadd.f32 %v1304, %v1334
        %v1344 = vadd.f32 %v1305, %v1334
        %v1345 = vadd.f32 %v1306, %v1334
        %v1346 = vadd.f32 %v1307, %v1334
        %v1347 = vadd.f32 %v1308, %v1334
        %v1348 = vadd.f32 %v1309, %v1334
        %v1349 = vadd.f32 %v1310, %v1334
        %v1350 = vadd.f32 %v1311, %v1334
        %v1351 = vadd.f32 %v1312, %v1334
        %v1352 = vadd.f32 %v1313, %v1334
        %v1353 = vadd.f32 %v1314, %v1334
        %v1354 = vadd.f32 %v1315, %v1334
        %v1355 = vadd.f32 %v1316, %v1334
        %v1356 = vadd.f32 %v1317, %v1334
        %v1357 = vadd.f32 %v1318, %v1334
        %v1358 = vadd.f32 %v1319, %v1334
        %v1359 = vadd.f32 %v1320, %v1334
        %v1360 = vadd.f32 %v1321, %v1334
        %v1361 = vadd.f32 %v1322, %v1334
        %v1362 = vadd.f32 %v1323, %v1334
        %v1363 = vadd.f32 %v1324, %v1334
        %v1364 = vadd.f32 %v1325, %v1334
        %v1365 = vadd.f32 %v1326, %v1334
        %v1366 = vadd.f32 %v1327, %v1334
        %v1367 = vadd.f32 %v1328, %v1334
        %v1368 = vld [vmem:[#allocation14] sm:$0x1]
        %v1370 = vlaneseq
        %v1371 = vshrl.u32 %v1370, 7
        %v1372 = vsub.s32 0, %v1371
        %v1373 = vrot.slane %v1368, %v1372
        %v1375 = vmul.f32 %v1164, %v1373
        %v1376 = vmul.f32 %v1167, %v1373
        %v1377 = vmul.f32 %v1172, %v1373
        %v1378 = vmul.f32 %v1175, %v1373
        %v1379 = vmul.f32 %v1180, %v1373
        %v1380 = vmul.f32 %v1183, %v1373
        %v1381 = vmul.f32 %v1188, %v1373
        %v1382 = vmul.f32 %v1191, %v1373
        %v1383 = vmul.f32 %v1196, %v1373
        %v1384 = vmul.f32 %v1199, %v1373
        %v1385 = vmul.f32 %v1204, %v1373
        %v1386 = vmul.f32 %v1207, %v1373
        %v1387 = vmul.f32 %v1212, %v1373
        %v1388 = vmul.f32 %v1215, %v1373
        %v1389 = vmul.f32 %v1220, %v1373
        %v1390 = vmul.f32 %v1223, %v1373
        %v1391 = vmul.f32 %v1228, %v1373
        %v1392 = vmul.f32 %v1231, %v1373
        %v1393 = vmul.f32 %v1236, %v1373
        %v1394 = vmul.f32 %v1239, %v1373
        %v1395 = vmul.f32 %v1244, %v1373
        %v1396 = vmul.f32 %v1247, %v1373
        %v1397 = vmul.f32 %v1252, %v1373
        %v1398 = vmul.f32 %v1255, %v1373
        %v1399 = vmul.f32 %v1260, %v1373
        %v1400 = vmul.f32 %v1263, %v1373
        %v1401 = vmul.f32 %v1268, %v1373
        %v1402 = vmul.f32 %v1271, %v1373
        %v1403 = vmul.f32 %v1276, %v1373
        %v1404 = vmul.f32 %v1279, %v1373
        %v1405 = vmul.f32 %v1284, %v1373
        %v1406 = vmul.f32 %v1287, %v1373
        %v1407 = vld [vmem:[#allocation15] sm:$0x1]
        %v1409 = vlaneseq
        %v1410 = vshrl.u32 %v1409, 7
        %v1411 = vsub.s32 0, %v1410
        %v1412 = vrot.slane %v1407, %v1411
        %v1414 = vadd.f32 %v1375, %v1412
        %v1415 = vadd.f32 %v1376, %v1412
        %v1416 = vadd.f32 %v1377, %v1412
        %v1417 = vadd.f32 %v1378, %v1412
        %v1418 = vadd.f32 %v1379, %v1412
        %v1419 = vadd.f32 %v1380, %v1412
        %v1420 = vadd.f32 %v1381, %v1412
        %v1421 = vadd.f32 %v1382, %v1412
        %v1422 = vadd.f32 %v1383, %v1412
        %v1423 = vadd.f32 %v1384, %v1412
        %v1424 = vadd.f32 %v1385, %v1412
        %v1425 = vadd.f32 %v1386, %v1412
        %v1426 = vadd.f32 %v1387, %v1412
        %v1427 = vadd.f32 %v1388, %v1412
        %v1428 = vadd.f32 %v1389, %v1412
        %v1429 = vadd.f32 %v1390, %v1412
        %v1430 = vadd.f32 %v1391, %v1412
        %v1431 = vadd.f32 %v1392, %v1412
        %v1432 = vadd.f32 %v1393, %v1412
        %v1433 = vadd.f32 %v1394, %v1412
        %v1434 = vadd.f32 %v1395, %v1412
        %v1435 = vadd.f32 %v1396, %v1412
        %v1436 = vadd.f32 %v1397, %v1412
        %v1437 = vadd.f32 %v1398, %v1412
        %v1438 = vadd.f32 %v1399, %v1412
        %v1439 = vadd.f32 %v1400, %v1412
        %v1440 = vadd.f32 %v1401, %v1412
        %v1441 = vadd.f32 %v1402, %v1412
        %v1442 = vadd.f32 %v1403, %v1412
        %v1443 = vadd.f32 %v1404, %v1412
        %v1444 = vadd.f32 %v1405, %v1412
        %v1445 = vadd.f32 %v1406, %v1412
        %v1446 = vadd.f32 %v1336, %v1414
        %v1447 = vadd.f32 %v1337, %v1415
        %v1448 = vadd.f32 %v1338, %v1416
        %v1449 = vadd.f32 %v1339, %v1417
        %v1450 = vadd.f32 %v1340, %v1418
        %v1451 = vadd.f32 %v1341, %v1419
        %v1452 = vadd.f32 %v1342, %v1420
        %v1453 = vadd.f32 %v1343, %v1421
        %v1454 = vadd.f32 %v1344, %v1422
        %v1455 = vadd.f32 %v1345, %v1423
        %v1456 = vadd.f32 %v1346, %v1424
        %v1457 = vadd.f32 %v1347, %v1425
        %v1458 = vadd.f32 %v1348, %v1426
        %v1459 = vadd.f32 %v1349, %v1427
        %v1460 = vadd.f32 %v1350, %v1428
        %v1461 = vadd.f32 %v1351, %v1429
        %v1462 = vadd.f32 %v1352, %v1430
        %v1463 = vadd.f32 %v1353, %v1431
        %v1464 = vadd.f32 %v1354, %v1432
        %v1465 = vadd.f32 %v1355, %v1433
        %v1466 = vadd.f32 %v1356, %v1434
        %v1467 = vadd.f32 %v1357, %v1435
        %v1468 = vadd.f32 %v1358, %v1436
        %v1469 = vadd.f32 %v1359, %v1437
        %v1470 = vadd.f32 %v1360, %v1438
        %v1471 = vadd.f32 %v1361, %v1439
        %v1472 = vadd.f32 %v1362, %v1440
        %v1473 = vadd.f32 %v1363, %v1441
        %v1474 = vadd.f32 %v1364, %v1442
        %v1475 = vadd.f32 %v1365, %v1443
        %v1476 = vadd.f32 %v1366, %v1444
        %v1477 = vadd.f32 %v1367, %v1445
        %v1478 = vmax.f32 %v1446, 0.0
        %v1479 = vmax.f32 %v1447, 0.0
        %v1480 = vmax.f32 %v1448, 0.0
        %v1481 = vmax.f32 %v1449, 0.0
        %v1482 = vmax.f32 %v1450, 0.0
        %v1483 = vmax.f32 %v1451, 0.0
        %v1484 = vmax.f32 %v1452, 0.0
        %v1485 = vmax.f32 %v1453, 0.0
        %v1486 = vmax.f32 %v1454, 0.0
        %v1487 = vmax.f32 %v1455, 0.0
        %v1488 = vmax.f32 %v1456, 0.0
        %v1489 = vmax.f32 %v1457, 0.0
        %v1490 = vmax.f32 %v1458, 0.0
        %v1491 = vmax.f32 %v1459, 0.0
        %v1492 = vmax.f32 %v1460, 0.0
        %v1493 = vmax.f32 %v1461, 0.0
        %v1494 = vmax.f32 %v1462, 0.0
        %v1495 = vmax.f32 %v1463, 0.0
        %v1496 = vmax.f32 %v1464, 0.0
        %v1497 = vmax.f32 %v1465, 0.0
        %v1498 = vmax.f32 %v1466, 0.0
        %v1499 = vmax.f32 %v1467, 0.0
        %v1500 = vmax.f32 %v1468, 0.0
        %v1501 = vmax.f32 %v1469, 0.0
        %v1502 = vmax.f32 %v1470, 0.0
        %v1503 = vmax.f32 %v1471, 0.0
        %v1504 = vmax.f32 %v1472, 0.0
        %v1505 = vmax.f32 %v1473, 0.0
        %v1506 = vmax.f32 %v1474, 0.0
        %v1507 = vmax.f32 %v1475, 0.0
        %v1508 = vmax.f32 %v1476, 0.0
        %v1509 = vmax.f32 %v1477, 0.0
        %v1510 = vld [vmem:[#allocation17] sm:$0x1]
        %v1512 = vlaneseq
        %v1513 = vshrl.u32 %v1512, 7
        %v1514 = vsub.s32 0, %v1513
        %v1515 = vrot.slane %v1510, %v1514
        %v1517 = vmul.f32 %v1478, %v1515
        %v1518 = vmul.f32 %v1479, %v1515
        %v1519 = vmul.f32 %v1480, %v1515
        %v1520 = vmul.f32 %v1481, %v1515
        %v1521 = vmul.f32 %v1482, %v1515
        %v1522 = vmul.f32 %v1483, %v1515
        %v1523 = vmul.f32 %v1484, %v1515
        %v1524 = vmul.f32 %v1485, %v1515
        %v1525 = vmul.f32 %v1486, %v1515
        %v1526 = vmul.f32 %v1487, %v1515
        %v1527 = vmul.f32 %v1488, %v1515
        %v1528 = vmul.f32 %v1489, %v1515
        %v1529 = vmul.f32 %v1490, %v1515
        %v1530 = vmul.f32 %v1491, %v1515
        %v1531 = vmul.f32 %v1492, %v1515
        %v1532 = vmul.f32 %v1493, %v1515
        %v1533 = vmul.f32 %v1494, %v1515
        %v1534 = vmul.f32 %v1495, %v1515
        %v1535 = vmul.f32 %v1496, %v1515
        %v1536 = vmul.f32 %v1497, %v1515
        %v1537 = vmul.f32 %v1498, %v1515
        %v1538 = vmul.f32 %v1499, %v1515
        %v1539 = vmul.f32 %v1500, %v1515
        %v1540 = vmul.f32 %v1501, %v1515
        %v1541 = vmul.f32 %v1502, %v1515
        %v1542 = vmul.f32 %v1503, %v1515
        %v1543 = vmul.f32 %v1504, %v1515
        %v1544 = vmul.f32 %v1505, %v1515
        %v1545 = vmul.f32 %v1506, %v1515
        %v1546 = vmul.f32 %v1507, %v1515
        %v1547 = vmul.f32 %v1508, %v1515
        %v1548 = vmul.f32 %v1509, %v1515
        %1549 = vadd.xlane.f32.xlu0 %v1517
        %v1550 = vpop.xlane.xlu0 %1549
        %1551 = vadd.xlane.f32.xlu0 %v1518
        %v1552 = vpop.xlane.xlu0 %1551
        %1553 = vadd.xlane.f32.xlu0 %v1519
        %v1554 = vpop.xlane.xlu0 %1553
        %1555 = vadd.xlane.f32.xlu0 %v1520
        %v1556 = vpop.xlane.xlu0 %1555
        %1557 = vadd.xlane.f32.xlu0 %v1521
        %v1558 = vpop.xlane.xlu0 %1557
        %1559 = vadd.xlane.f32.xlu0 %v1522
        %v1560 = vpop.xlane.xlu0 %1559
        %1561 = vadd.xlane.f32.xlu0 %v1523
        %v1562 = vpop.xlane.xlu0 %1561
        %1563 = vadd.xlane.f32.xlu0 %v1524
        %v1564 = vpop.xlane.xlu0 %1563
        %1565 = vadd.xlane.f32.xlu0 %v1525
        %v1566 = vpop.xlane.xlu0 %1565
        %1567 = vadd.xlane.f32.xlu0 %v1526
        %v1568 = vpop.xlane.xlu0 %1567
        %1569 = vadd.xlane.f32.xlu0 %v1527
        %v1570 = vpop.xlane.xlu0 %1569
        %1571 = vadd.xlane.f32.xlu0 %v1528
        %v1572 = vpop.xlane.xlu0 %1571
        %1573 = vadd.xlane.f32.xlu0 %v1529
        %v1574 = vpop.xlane.xlu0 %1573
        %1575 = vadd.xlane.f32.xlu0 %v1530
        %v1576 = vpop.xlane.xlu0 %1575
        %1577 = vadd.xlane.f32.xlu0 %v1531
        %v1578 = vpop.xlane.xlu0 %1577
        %1579 = vadd.xlane.f32.xlu0 %v1532
        %v1580 = vpop.xlane.xlu0 %1579
        %1581 = vadd.xlane.f32.xlu0 %v1533
        %v1582 = vpop.xlane.xlu0 %1581
        %1583 = vadd.xlane.f32.xlu0 %v1534
        %v1584 = vpop.xlane.xlu0 %1583
        %1585 = vadd.xlane.f32.xlu0 %v1535
        %v1586 = vpop.xlane.xlu0 %1585
        %1587 = vadd.xlane.f32.xlu0 %v1536
        %v1588 = vpop.xlane.xlu0 %1587
        %1589 = vadd.xlane.f32.xlu0 %v1537
        %v1590 = vpop.xlane.xlu0 %1589
        %1591 = vadd.xlane.f32.xlu0 %v1538
        %v1592 = vpop.xlane.xlu0 %1591
        %1593 = vadd.xlane.f32.xlu0 %v1539
        %v1594 = vpop.xlane.xlu0 %1593
        %1595 = vadd.xlane.f32.xlu0 %v1540
        %v1596 = vpop.xlane.xlu0 %1595
        %1597 = vadd.xlane.f32.xlu0 %v1541
        %v1598 = vpop.xlane.xlu0 %1597
        %1599 = vadd.xlane.f32.xlu0 %v1542
        %v1600 = vpop.xlane.xlu0 %1599
        %1601 = vadd.xlane.f32.xlu0 %v1543
        %v1602 = vpop.xlane.xlu0 %1601
        %1603 = vadd.xlane.f32.xlu0 %v1544
        %v1604 = vpop.xlane.xlu0 %1603
        %1605 = vadd.xlane.f32.xlu0 %v1545
        %v1606 = vpop.xlane.xlu0 %1605
        %1607 = vadd.xlane.f32.xlu0 %v1546
        %v1608 = vpop.xlane.xlu0 %1607
        %1609 = vadd.xlane.f32.xlu0 %v1547
        %v1610 = vpop.xlane.xlu0 %1609
        %1611 = vadd.xlane.f32.xlu0 %v1548
        %v1612 = vpop.xlane.xlu0 %1611
        %s1613 = sld [smem:[#allocation2]]
        %v1614 = vstv %s1613
        %v1615 = vadd.f32 %v1550, %v1614
        %v1616 = vadd.f32 %v1552, %v1614
        %v1617 = vadd.f32 %v1554, %v1614
        %v1618 = vadd.f32 %v1556, %v1614
        %v1619 = vadd.f32 %v1558, %v1614
        %v1620 = vadd.f32 %v1560, %v1614
        %v1621 = vadd.f32 %v1562, %v1614
        %v1622 = vadd.f32 %v1564, %v1614
        %v1623 = vadd.f32 %v1566, %v1614
        %v1624 = vadd.f32 %v1568, %v1614
        %v1625 = vadd.f32 %v1570, %v1614
        %v1626 = vadd.f32 %v1572, %v1614
        %v1627 = vadd.f32 %v1574, %v1614
        %v1628 = vadd.f32 %v1576, %v1614
        %v1629 = vadd.f32 %v1578, %v1614
        %v1630 = vadd.f32 %v1580, %v1614
        %v1631 = vadd.f32 %v1582, %v1614
        %v1632 = vadd.f32 %v1584, %v1614
        %v1633 = vadd.f32 %v1586, %v1614
        %v1634 = vadd.f32 %v1588, %v1614
        %v1635 = vadd.f32 %v1590, %v1614
        %v1636 = vadd.f32 %v1592, %v1614
        %v1637 = vadd.f32 %v1594, %v1614
        %v1638 = vadd.f32 %v1596, %v1614
        %v1639 = vadd.f32 %v1598, %v1614
        %v1640 = vadd.f32 %v1600, %v1614
        %v1641 = vadd.f32 %v1602, %v1614
        %v1642 = vadd.f32 %v1604, %v1614
        %v1643 = vadd.f32 %v1606, %v1614
        %v1644 = vadd.f32 %v1608, %v1614
        %v1645 = vadd.f32 %v1610, %v1614
        %v1646 = vadd.f32 %v1612, %v1614
        %vm1647 = vcmask 7168
        %1648 = vst.msk [vmem:[%s567] sm:$0xff] %vm1647, %v1615
        %1649 = vst.msk [vmem:[%s567 + $0x8] sm:$0xff] %vm1647, %v1616
        %1650 = vst.msk [vmem:[%s567 + $0x10] sm:$0xff] %vm1647, %v1617
        %1651 = vst.msk [vmem:[%s567 + $0x18] sm:$0xff] %vm1647, %v1618
        %1652 = vst.msk [vmem:[%s567 + $0x20] sm:$0xff] %vm1647, %v1619
        %1653 = vst.msk [vmem:[%s567 + $0x28] sm:$0xff] %vm1647, %v1620
        %1654 = vst.msk [vmem:[%s567 + $0x30] sm:$0xff] %vm1647, %v1621
        %1655 = vst.msk [vmem:[%s567 + $0x38] sm:$0xff] %vm1647, %v1622
        %1656 = vst.msk [vmem:[%s567 + $0x40] sm:$0xff] %vm1647, %v1623
        %1657 = vst.msk [vmem:[%s567 + $0x48] sm:$0xff] %vm1647, %v1624
        %1658 = vst.msk [vmem:[%s567 + $0x50] sm:$0xff] %vm1647, %v1625
        %1659 = vst.msk [vmem:[%s567 + $0x58] sm:$0xff] %vm1647, %v1626
        %1660 = vst.msk [vmem:[%s567 + $0x60] sm:$0xff] %vm1647, %v1627
        %1661 = vst.msk [vmem:[%s567 + $0x68] sm:$0xff] %vm1647, %v1628
        %1662 = vst.msk [vmem:[%s567 + $0x70] sm:$0xff] %vm1647, %v1629
        %1663 = vst.msk [vmem:[%s567 + $0x78] sm:$0xff] %vm1647, %v1630
        %1664 = vst.msk [vmem:[%s567 + $0x80] sm:$0xff] %vm1647, %v1631
        %1665 = vst.msk [vmem:[%s567 + $0x88] sm:$0xff] %vm1647, %v1632
        %1666 = vst.msk [vmem:[%s567 + $0x90] sm:$0xff] %vm1647, %v1633
        %1667 = vst.msk [vmem:[%s567 + $0x98] sm:$0xff] %vm1647, %v1634
        %1668 = vst.msk [vmem:[%s567 + $0xa0] sm:$0xff] %vm1647, %v1635
        %1669 = vst.msk [vmem:[%s567 + $0xa8] sm:$0xff] %vm1647, %v1636
        %1670 = vst.msk [vmem:[%s567 + $0xb0] sm:$0xff] %vm1647, %v1637
        %1671 = vst.msk [vmem:[%s567 + $0xb8] sm:$0xff] %vm1647, %v1638
        %1672 = vst.msk [vmem:[%s567 + $0xc0] sm:$0xff] %vm1647, %v1639
        %1673 = vst.msk [vmem:[%s567 + $0xc8] sm:$0xff] %vm1647, %v1640
        %1674 = vst.msk [vmem:[%s567 + $0xd0] sm:$0xff] %vm1647, %v1641
        %1675 = vst.msk [vmem:[%s567 + $0xd8] sm:$0xff] %vm1647, %v1642
        %1676 = vst.msk [vmem:[%s567 + $0xe0] sm:$0xff] %vm1647, %v1643
        %1677 = vst.msk [vmem:[%s567 + $0xe8] sm:$0xff] %vm1647, %v1644
        %1678 = vst.msk [vmem:[%s567 + $0xf0] sm:$0xff] %vm1647, %v1645
        %1679 = vst.msk [vmem:[%s567 + $0xf8] sm:$0xff] %vm1647, %v1646
        %v1680 = vlaneseq
        %v1681 = vshrl.u32 %v1680, 7
        %v1682 = vadd.s32 %v1681, 8
        %v1683 = vadd.s32 %v1681, 16
        %v1684 = vadd.s32 %v1681, 24
        %v1685 = vadd.s32 %v1681, 32
        %v1686 = vadd.s32 %v1681, 40
        %v1687 = vadd.s32 %v1681, 48
        %v1688 = vadd.s32 %v1681, 56
        %v1689 = vadd.s32 %v1681, 64
        %v1690 = vadd.s32 %v1681, 72
        %v1691 = vadd.s32 %v1681, 80
        %v1692 = vadd.s32 %v1681, 88
        %v1693 = vadd.s32 %v1681, 96
        %v1694 = vadd.s32 %v1681, 104
        %v1695 = vadd.s32 %v1681, 112
        %v1696 = vadd.s32 %v1681, 120
        %v1697 = vadd.s32 %v1681, 128
        %v1698 = vadd.s32 %v1681, 136
        %v1699 = vadd.s32 %v1681, 144
        %v1700 = vadd.s32 %v1681, 152
        %v1701 = vadd.s32 %v1681, 160
        %v1702 = vadd.s32 %v1681, 168
        %v1703 = vadd.s32 %v1681, 176
        %v1704 = vadd.s32 %v1681, 184
        %v1705 = vadd.s32 %v1681, 192
        %v1706 = vadd.s32 %v1681, 200
        %v1707 = vadd.s32 %v1681, 208
        %v1708 = vadd.s32 %v1681, 216
        %v1709 = vadd.s32 %v1681, 224
        %v1710 = vadd.s32 %v1681, 232
        %v1711 = vadd.s32 %v1681, 240
        %v1712 = vadd.s32 %v1681, 248
        %s1713 = smul.u32 %s40, 256
        %v1714 = vstv %s1713
        %v1715 = vadd.s32 %v1681, %v1714
        %v1716 = vadd.s32 %v1682, %v1714
        %v1717 = vadd.s32 %v1683, %v1714
        %v1718 = vadd.s32 %v1684, %v1714
        %v1719 = vadd.s32 %v1685, %v1714
        %v1720 = vadd.s32 %v1686, %v1714
        %v1721 = vadd.s32 %v1687, %v1714
        %v1722 = vadd.s32 %v1688, %v1714
        %v1723 = vadd.s32 %v1689, %v1714
        %v1724 = vadd.s32 %v1690, %v1714
        %v1725 = vadd.s32 %v1691, %v1714
        %v1726 = vadd.s32 %v1692, %v1714
        %v1727 = vadd.s32 %v1693, %v1714
        %v1728 = vadd.s32 %v1694, %v1714
        %v1729 = vadd.s32 %v1695, %v1714
        %v1730 = vadd.s32 %v1696, %v1714
        %v1731 = vadd.s32 %v1697, %v1714
        %v1732 = vadd.s32 %v1698, %v1714
        %v1733 = vadd.s32 %v1699, %v1714
        %v1734 = vadd.s32 %v1700, %v1714
        %v1735 = vadd.s32 %v1701, %v1714
        %v1736 = vadd.s32 %v1702, %v1714
        %v1737 = vadd.s32 %v1703, %v1714
        %v1738 = vadd.s32 %v1704, %v1714
        %v1739 = vadd.s32 %v1705, %v1714
        %v1740 = vadd.s32 %v1706, %v1714
        %v1741 = vadd.s32 %v1707, %v1714
        %v1742 = vadd.s32 %v1708, %v1714
        %v1743 = vadd.s32 %v1709, %v1714
        %v1744 = vadd.s32 %v1710, %v1714
        %v1745 = vadd.s32 %v1711, %v1714
        %v1746 = vadd.s32 %v1712, %v1714
        %vm1747 = vcmp.lt.s32.totalorder %v1715, 512
        %vm1748 = vcmp.lt.s32.totalorder %v1716, 512
        %vm1749 = vcmp.lt.s32.totalorder %v1717, 512
        %vm1750 = vcmp.lt.s32.totalorder %v1718, 512
        %vm1751 = vcmp.lt.s32.totalorder %v1719, 512
        %vm1752 = vcmp.lt.s32.totalorder %v1720, 512
        %vm1753 = vcmp.lt.s32.totalorder %v1721, 512
        %vm1754 = vcmp.lt.s32.totalorder %v1722, 512
        %vm1755 = vcmp.lt.s32.totalorder %v1723, 512
        %vm1756 = vcmp.lt.s32.totalorder %v1724, 512
        %vm1757 = vcmp.lt.s32.totalorder %v1725, 512
        %vm1758 = vcmp.lt.s32.totalorder %v1726, 512
        %vm1759 = vcmp.lt.s32.totalorder %v1727, 512
        %vm1760 = vcmp.lt.s32.totalorder %v1728, 512
        %vm1761 = vcmp.lt.s32.totalorder %v1729, 512
        %vm1762 = vcmp.lt.s32.totalorder %v1730, 512
        %vm1763 = vcmp.lt.s32.totalorder %v1731, 512
        %vm1764 = vcmp.lt.s32.totalorder %v1732, 512
        %vm1765 = vcmp.lt.s32.totalorder %v1733, 512
        %vm1766 = vcmp.lt.s32.totalorder %v1734, 512
        %vm1767 = vcmp.lt.s32.totalorder %v1735, 512
        %vm1768 = vcmp.lt.s32.totalorder %v1736, 512
        %vm1769 = vcmp.lt.s32.totalorder %v1737, 512
        %vm1770 = vcmp.lt.s32.totalorder %v1738, 512
        %vm1771 = vcmp.lt.s32.totalorder %v1739, 512
        %vm1772 = vcmp.lt.s32.totalorder %v1740, 512
        %vm1773 = vcmp.lt.s32.totalorder %v1741, 512
        %vm1774 = vcmp.lt.s32.totalorder %v1742, 512
        %vm1775 = vcmp.lt.s32.totalorder %v1743, 512
        %vm1776 = vcmp.lt.s32.totalorder %v1744, 512
        %vm1777 = vcmp.lt.s32.totalorder %v1745, 512
        %vm1778 = vcmp.lt.s32.totalorder %v1746, 512
        %v1779 = vsel %vm1747, 1, 0
        %v1780 = vsel %vm1748, 1, 0
        %v1781 = vsel %vm1749, 1, 0
        %v1782 = vsel %vm1750, 1, 0
        %v1783 = vsel %vm1751, 1, 0
        %v1784 = vsel %vm1752, 1, 0
        %v1785 = vsel %vm1753, 1, 0
        %v1786 = vsel %vm1754, 1, 0
        %v1787 = vsel %vm1755, 1, 0
        %v1788 = vsel %vm1756, 1, 0
        %v1789 = vsel %vm1757, 1, 0
        %v1790 = vsel %vm1758, 1, 0
        %v1791 = vsel %vm1759, 1, 0
        %v1792 = vsel %vm1760, 1, 0
        %v1793 = vsel %vm1761, 1, 0
        %v1794 = vsel %vm1762, 1, 0
        %v1795 = vsel %vm1763, 1, 0
        %v1796 = vsel %vm1764, 1, 0
        %v1797 = vsel %vm1765, 1, 0
        %v1798 = vsel %vm1766, 1, 0
        %v1799 = vsel %vm1767, 1, 0
        %v1800 = vsel %vm1768, 1, 0
        %v1801 = vsel %vm1769, 1, 0
        %v1802 = vsel %vm1770, 1, 0
        %v1803 = vsel %vm1771, 1, 0
        %v1804 = vsel %vm1772, 1, 0
        %v1805 = vsel %vm1773, 1, 0
        %v1806 = vsel %vm1774, 1, 0
        %v1807 = vsel %vm1775, 1, 0
        %v1808 = vsel %vm1776, 1, 0
        %v1809 = vsel %vm1777, 1, 0
        %v1810 = vsel %vm1778, 1, 0
        %v1811 = vcvt.s32.f32 %v1779
        %v1812 = vcvt.s32.f32 %v1780
        %v1813 = vcvt.s32.f32 %v1781
        %v1814 = vcvt.s32.f32 %v1782
        %v1815 = vcvt.s32.f32 %v1783
        %v1816 = vcvt.s32.f32 %v1784
        %v1817 = vcvt.s32.f32 %v1785
        %v1818 = vcvt.s32.f32 %v1786
        %v1819 = vcvt.s32.f32 %v1787
        %v1820 = vcvt.s32.f32 %v1788
        %v1821 = vcvt.s32.f32 %v1789
        %v1822 = vcvt.s32.f32 %v1790
        %v1823 = vcvt.s32.f32 %v1791
        %v1824 = vcvt.s32.f32 %v1792
        %v1825 = vcvt.s32.f32 %v1793
        %v1826 = vcvt.s32.f32 %v1794
        %v1827 = vcvt.s32.f32 %v1795
        %v1828 = vcvt.s32.f32 %v1796
        %v1829 = vcvt.s32.f32 %v1797
        %v1830 = vcvt.s32.f32 %v1798
        %v1831 = vcvt.s32.f32 %v1799
        %v1832 = vcvt.s32.f32 %v1800
        %v1833 = vcvt.s32.f32 %v1801
        %v1834 = vcvt.s32.f32 %v1802
        %v1835 = vcvt.s32.f32 %v1803
        %v1836 = vcvt.s32.f32 %v1804
        %v1837 = vcvt.s32.f32 %v1805
        %v1838 = vcvt.s32.f32 %v1806
        %v1839 = vcvt.s32.f32 %v1807
        %v1840 = vcvt.s32.f32 %v1808
        %v1841 = vcvt.s32.f32 %v1809
        %v1842 = vcvt.s32.f32 %v1810
        %v1843 = vmul.f32 %v1615, %v1811
        %v1844 = vmul.f32 %v1616, %v1812
        %v1845 = vmul.f32 %v1617, %v1813
        %v1846 = vmul.f32 %v1618, %v1814
        %v1847 = vmul.f32 %v1619, %v1815
        %v1848 = vmul.f32 %v1620, %v1816
        %v1849 = vmul.f32 %v1621, %v1817
        %v1850 = vmul.f32 %v1622, %v1818
        %v1851 = vmul.f32 %v1623, %v1819
        %v1852 = vmul.f32 %v1624, %v1820
        %v1853 = vmul.f32 %v1625, %v1821
        %v1854 = vmul.f32 %v1626, %v1822
        %v1855 = vmul.f32 %v1627, %v1823
        %v1856 = vmul.f32 %v1628, %v1824
        %v1857 = vmul.f32 %v1629, %v1825
        %v1858 = vmul.f32 %v1630, %v1826
        %v1859 = vmul.f32 %v1631, %v1827
        %v1860 = vmul.f32 %v1632, %v1828
        %v1861 = vmul.f32 %v1633, %v1829
        %v1862 = vmul.f32 %v1634, %v1830
        %v1863 = vmul.f32 %v1635, %v1831
        %v1864 = vmul.f32 %v1636, %v1832
        %v1865 = vmul.f32 %v1637, %v1833
        %v1866 = vmul.f32 %v1638, %v1834
        %v1867 = vmul.f32 %v1639, %v1835
        %v1868 = vmul.f32 %v1640, %v1836
        %v1869 = vmul.f32 %v1641, %v1837
        %v1870 = vmul.f32 %v1642, %v1838
        %v1871 = vmul.f32 %v1643, %v1839
        %v1872 = vmul.f32 %v1644, %v1840
        %v1873 = vmul.f32 %v1645, %v1841
        %v1874 = vmul.f32 %v1646, %v1842
        %v1875 = vadd.f32 %v1843, %v1844
        %v1876 = vadd.f32 %v1875, %v1845
        %v1877 = vadd.f32 %v1876, %v1846
        %v1878 = vadd.f32 %v1877, %v1847
        %v1879 = vadd.f32 %v1878, %v1848
        %v1880 = vadd.f32 %v1879, %v1849
        %v1881 = vadd.f32 %v1880, %v1850
        %v1882 = vadd.f32 %v1881, %v1851
        %v1883 = vadd.f32 %v1882, %v1852
        %v1884 = vadd.f32 %v1883, %v1853
        %v1885 = vadd.f32 %v1884, %v1854
        %v1886 = vadd.f32 %v1885, %v1855
        %v1887 = vadd.f32 %v1886, %v1856
        %v1888 = vadd.f32 %v1887, %v1857
        %v1889 = vadd.f32 %v1888, %v1858
        %v1890 = vadd.f32 %v1889, %v1859
        %v1891 = vadd.f32 %v1890, %v1860
        %v1892 = vadd.f32 %v1891, %v1861
        %v1893 = vadd.f32 %v1892, %v1862
        %v1894 = vadd.f32 %v1893, %v1863
        %v1895 = vadd.f32 %v1894, %v1864
        %v1896 = vadd.f32 %v1895, %v1865
        %v1897 = vadd.f32 %v1896, %v1866
        %v1898 = vadd.f32 %v1897, %v1867
        %v1899 = vadd.f32 %v1898, %v1868
        %v1900 = vadd.f32 %v1899, %v1869
        %v1901 = vadd.f32 %v1900, %v1870
        %v1902 = vadd.f32 %v1901, %v1871
        %v1903 = vadd.f32 %v1902, %v1872
        %v1904 = vadd.f32 %v1903, %v1873
        %v1905 = vadd.f32 %v1904, %v1874
        %v1906 = vrot.slane %v1905, 4
        %v1907 = vadd.f32 %v1905, %v1906
        %v1908 = vrot.slane %v1907, 2
        %v1909 = vadd.f32 %v1907, %v1908
        %v1910 = vrot.slane %v1909, 1
        %v1911 = vadd.f32 %v1909, %v1910
        %vm1912 = vcmask 0
        %1913 = vst.msk [vmem:[%s573] sm:$0x1] %vm1912, %v1911
        %v1914 = vmul.f32 %v1843, %v1615
        %v1915 = vmul.f32 %v1844, %v1616
        %v1916 = vmul.f32 %v1845, %v1617
        %v1917 = vmul.f32 %v1846, %v1618
        %v1918 = vmul.f32 %v1847, %v1619
        %v1919 = vmul.f32 %v1848, %v1620
        %v1920 = vmul.f32 %v1849, %v1621
        %v1921 = vmul.f32 %v1850, %v1622
        %v1922 = vmul.f32 %v1851, %v1623
        %v1923 = vmul.f32 %v1852, %v1624
        %v1924 = vmul.f32 %v1853, %v1625
        %v1925 = vmul.f32 %v1854, %v1626
        %v1926 = vmul.f32 %v1855, %v1627
        %v1927 = vmul.f32 %v1856, %v1628
        %v1928 = vmul.f32 %v1857, %v1629
        %v1929 = vmul.f32 %v1858, %v1630
        %v1930 = vmul.f32 %v1859, %v1631
        %v1931 = vmul.f32 %v1860, %v1632
        %v1932 = vmul.f32 %v1861, %v1633
        %v1933 = vmul.f32 %v1862, %v1634
        %v1934 = vmul.f32 %v1863, %v1635
        %v1935 = vmul.f32 %v1864, %v1636
        %v1936 = vmul.f32 %v1865, %v1637
        %v1937 = vmul.f32 %v1866, %v1638
        %v1938 = vmul.f32 %v1867, %v1639
        %v1939 = vmul.f32 %v1868, %v1640
        %v1940 = vmul.f32 %v1869, %v1641
        %v1941 = vmul.f32 %v1870, %v1642
        %v1942 = vmul.f32 %v1871, %v1643
        %v1943 = vmul.f32 %v1872, %v1644
        %v1944 = vmul.f32 %v1873, %v1645
        %v1945 = vmul.f32 %v1874, %v1646
        %v1946 = vadd.f32 %v1914, %v1915
        %v1947 = vadd.f32 %v1946, %v1916
        %v1948 = vadd.f32 %v1947, %v1917
        %v1949 = vadd.f32 %v1948, %v1918
        %v1950 = vadd.f32 %v1949, %v1919
        %v1951 = vadd.f32 %v1950, %v1920
        %v1952 = vadd.f32 %v1951, %v1921
        %v1953 = vadd.f32 %v1952, %v1922
        %v1954 = vadd.f32 %v1953, %v1923
        %v1955 = vadd.f32 %v1954, %v1924
        %v1956 = vadd.f32 %v1955, %v1925
        %v1957 = vadd.f32 %v1956, %v1926
        %v1958 = vadd.f32 %v1957, %v1927
        %v1959 = vadd.f32 %v1958, %v1928
        %v1960 = vadd.f32 %v1959, %v1929
        %v1961 = vadd.f32 %v1960, %v1930
        %v1962 = vadd.f32 %v1961, %v1931
        %v1963 = vadd.f32 %v1962, %v1932
        %v1964 = vadd.f32 %v1963, %v1933
        %v1965 = vadd.f32 %v1964, %v1934
        %v1966 = vadd.f32 %v1965, %v1935
        %v1967 = vadd.f32 %v1966, %v1936
        %v1968 = vadd.f32 %v1967, %v1937
        %v1969 = vadd.f32 %v1968, %v1938
        %v1970 = vadd.f32 %v1969, %v1939
        %v1971 = vadd.f32 %v1970, %v1940
        %v1972 = vadd.f32 %v1971, %v1941
        %v1973 = vadd.f32 %v1972, %v1942
        %v1974 = vadd.f32 %v1973, %v1943
        %v1975 = vadd.f32 %v1974, %v1944
        %v1976 = vadd.f32 %v1975, %v1945
        %v1977 = vrot.slane %v1976, 4
        %v1978 = vadd.f32 %v1976, %v1977
        %v1979 = vrot.slane %v1978, 2
        %v1980 = vadd.f32 %v1978, %v1979
        %v1981 = vrot.slane %v1980, 1
        %v1982 = vadd.f32 %v1980, %v1981
        %1983 = vst.msk [vmem:[%s579] sm:$0x1] %vm1912, %v1982
        %s1984 = sand.u32 %s268, 1
        %s1985 = scalar_lea.sflag [#allocation5], %s1984
        %s1986 = sand.u32 %s268, 1
        %s1987 = smul.addr %s1986, 256
        %s1988 = scalar_lea.vmem [#allocation18], %s1987
        %s1989 = sand.u32 %s40, 1
        %s1990 = scalar_lea.sflag [#allocation20], %s1989
        %s1991 = sand.u32 %s294, 1
        %s1992 = scalar_lea.vmem [#allocation19], %s1991
        %s1993 = sand.u32 %s40, 1
        %s1994 = scalar_lea.sflag [#allocation20], %s1993
        %s1995 = sand.u32 %s320, 1
        %s1996 = scalar_lea.vmem [#allocation21], %s1995
        // Predicated region
        $region97: #{attention_block_forward.4} parent=59 // pred_check
          %p1997 = pneg %p278
        $region98: #{attention_block_forward.4} parent=59 // pred_check_branch
          %1999 = sbr.rel (%p1997) target = $region100
        $region99: #{attention_block_forward.4} parent=59 // pred_region
          %s2000 = smul.u32 32, %s40
          %s2002 = ssub.s32 4096, 4096
          %2003 = vsyncadd %s1985, %s2002
          %s2004 = smul.addr %s2000, 128
          %s2005 = scalar_lea.hbm %s10, %s2004
          %s2006 = sshll.u32 %s1988, 4
          %s2007 = int_to_ptr.vmem [resolvable:$true] %s2006
          %2012 = dma.vmem_to_hbm [thread:$0]  %s2007, 4096, %s2005, %s1985, 128, 128, 8
        $region100: #{attention_block_forward.4} parent=59 // pred_fallthru
          _
        // Predicated region
        $region101: #{attention_block_forward.4} parent=59 // pred_check
          %p2013 = pneg %p304
        $region102: #{attention_block_forward.4} parent=59 // pred_check_branch
          %2015 = sbr.rel (%p2013) target = $region104
        $region103: #{attention_block_forward.4} parent=59 // pred_region
          %s2017 = ssub.s32 16, 16
          %2018 = vsyncadd %s1990, %s2017
          %s2019 = smul.addr %s40, 16
          %s2020 = scalar_lea.hbm %s11, %s2019
          %s2022 = sshll.u32 %s1992, 4
          %s2023 = int_to_ptr.vmem [resolvable:$true] %s2022
          %2025 = dma.vmem_to_hbm [thread:$0]  %s2023, 16, %s2020, %s1990
        $region104: #{attention_block_forward.4} parent=59 // pred_fallthru
          _
        // Predicated region
        $region105: #{attention_block_forward.4} parent=59 // pred_check
          %p2026 = pneg %p330
        $region106: #{attention_block_forward.4} parent=59 // pred_check_branch
          %2028 = sbr.rel (%p2026) target = $region108
        $region107: #{attention_block_forward.4} parent=59 // pred_region
          %s2030 = ssub.s32 16, 16
          %2031 = vsyncadd %s1994, %s2030
          %s2032 = smul.addr %s40, 16
          %s2033 = scalar_lea.hbm %s12, %s2032
          %s2035 = sshll.u32 %s1996, 4
          %s2036 = int_to_ptr.vmem [resolvable:$true] %s2035
          %2038 = dma.vmem_to_hbm [thread:$0]  %s2036, 16, %s2033, %s1994
        $region108: #{attention_block_forward.4} parent=59 // pred_fallthru
          _
      $region60: #{attention_block_forward.4} parent=5 // pred_fallthru
        _
      %p2039 = scmp.le.s32.totalorder 2, %s35
      // Predicated region
      $region109: #{attention_block_forward.4} parent=5 // pred_check
        %p2040 = pneg %p2039
      $region110: #{attention_block_forward.4} parent=5 // pred_check_branch
        %2042 = sbr.rel (%p2040) target = $region112
      $region111: #{attention_block_forward.4} parent=5 // pred_region
        %s2043 = ssub.s32 %s35, 2
        // Predicated region
        $region113: #{attention_block_forward.4} parent=111 // pred_check
          %p2044 = pneg %p284
        $region114: #{attention_block_forward.4} parent=111 // pred_check_branch
          %2046 = sbr.rel (%p2044) target = $region116
        $region115: #{attention_block_forward.4} parent=111 // pred_region
          %s2047 = sand.u32 %s269, 1
          %s2048 = scalar_lea.sflag [#allocation5], %s2047
          %s2049 = sand.u32 %s269, 1
          %s2050 = smul.addr %s2049, 256
          %s2051 = scalar_lea.vmem [#allocation18], %s2050
          %2052 = dma.done %s2048, 4096
        $region116: #{attention_block_forward.4} parent=111 // pred_fallthru
          _
        // Predicated region
        $region117: #{attention_block_forward.4} parent=111 // pred_check
          %p2053 = pneg %p310
        $region118: #{attention_block_forward.4} parent=111 // pred_check_branch
          %2055 = sbr.rel (%p2053) target = $region120
        $region119: #{attention_block_forward.4} parent=111 // pred_region
          %s2056 = sand.u32 %s41, 1
          %s2057 = scalar_lea.sflag [#allocation20], %s2056
          %s2058 = sand.u32 %s295, 1
          %s2059 = scalar_lea.vmem [#allocation19], %s2058
          %2060 = dma.done %s2057, 16
        $region120: #{attention_block_forward.4} parent=111 // pred_fallthru
          _
        // Predicated region
        $region121: #{attention_block_forward.4} parent=111 // pred_check
          %p2061 = pneg %p336
        $region122: #{attention_block_forward.4} parent=111 // pred_check_branch
          %2063 = sbr.rel (%p2061) target = $region124
        $region123: #{attention_block_forward.4} parent=111 // pred_region
          %s2064 = sand.u32 %s41, 1
          %s2065 = scalar_lea.sflag [#allocation20], %s2064
          %s2066 = sand.u32 %s321, 1
          %s2067 = scalar_lea.vmem [#allocation21], %s2066
          %2068 = dma.done %s2065, 16
        $region124: #{attention_block_forward.4} parent=111 // pred_fallthru
          _
      $region112: #{attention_block_forward.4} parent=5 // pred_fallthru
        _
    $region6: #{attention_block_forward.4} parent=1 // loop_footer
      %s39 = sadd.s32 1, %s35
    $region7: #{attention_block_forward.4} parent=1 // loop_footer_branch
      %34 = sbr.rel target = $region3
    $region8: #{attention_block_forward.4} parent=1 // loop_exit
      _
    %2069 = vsyncpa [#allocation4], 1
    %s2070 = scalar_lea.sflag [#allocation4], 1
    %2071 = vsyncpa %s2070, 1
    %2072 = vsyncpa [#allocation7], 1
    %s2073 = scalar_lea.sflag [#allocation7], 1
    %2074 = vsyncpa %s2073, 1
    %2075 = vsyncpa [#allocation10], 1
    %2076 = vsyncpa [#allocation13], 1
    %2077 = vsyncpa [#allocation16], 1
    %2078 = vsyncpa [#allocation5], 1
    %s2079 = scalar_lea.sflag [#allocation5], 1
    %2080 = vsyncpa %s2079, 1
    %2081 = vsyncpa [#allocation20], 1
    %s2082 = scalar_lea.sflag [#allocation20], 1
    %2083 = vsyncpa %s2082, 1

</llo_original>
